<compile_context>
chip_gen: v6e
topology: v6e:2x2x1
jax: 0.10.0
libtpu: 0.0.40
codegen_flags: <defaults>
</compile_context>

<pallas_src>
import functools

import numpy as np

import jax
import jax.numpy as jnp
from jax.experimental import pallas as pl
from jax.experimental.pallas import tpu as pltpu


# --------------------------------------------------------------------------- #
# Static index bookkeeping shared by the host-side packing and the kernels.
# --------------------------------------------------------------------------- #

def _conv1_row_perm():
    """conv1-output row order (per image) = (class(p,q), ii, jj) where the
    covered output position is (oh, ow) = (2*ii + 1-p, 2*jj + 1-q).  This is
    exactly the order in which conv2's s2d scratch consumes conv1's output, so
    the in-kernel scatter is 4 contiguous [8,8,32] block writes per image."""
    perm = []
    for cls in range(4):
        p, q = cls // 2, cls % 2
        for ii in range(8):
            for jj in range(8):
                perm.append((2 * ii + 1 - p) * 16 + (2 * jj + 1 - q))
    return np.asarray(perm, np.int32)


_X1_PERM = _conv1_row_perm()


def _pick_block_batch(batch):
    """Largest Bt <= 8 dividing the batch that still leaves a grid >= 2 (v7x)."""
    for bt in (8, 4, 2, 1):
        if batch % bt == 0 and batch // bt >= 2:
            return bt
    for bt in (8, 4, 2, 1):
        if batch % bt == 0:
            return bt
    return 1


# --------------------------------------------------------------------------- #
# Pallas kernels
# --------------------------------------------------------------------------- #

def _conv12_kernel(x1_ref, w1_ref, b1_ref, w2_ref, b2_ref, o_ref, h1_ref, *, bt):
    """Fused conv1 + conv2 (both 4x4/stride-2/pad-1 + bias + ReLU).

    x1_ref: [bt, 256, 48]  bf16  conv1 im2col, rows class-ordered (see perm)
    w1_ref: [48, 32]       bf16  (ki,kj,c) x n
    w2_ref: [512, 64]      bf16  merged-tap K order (a, b, p, q, c) x n
    o_ref:  [bt, 8, 8, 64] bf16  conv2 activations, NHWC
    h1_ref: [bt, 4, 9, 17, 32] bf16 scratch: class-separated, zero-padded s2d
            of conv1's output (valid data at [:, :, i0:i0+8, 8:16, :]).
    """
    # ---- conv1: one big-M GEMM over all 16 taps (M = bt*256, K = 48) -------
    lhs1 = x1_ref[...].reshape(bt * 256, 48)
    h1 = jnp.dot(lhs1, w1_ref[...], preferred_element_type=jnp.float32)
    h1 = jnp.maximum(h1 + b1_ref[...], 0.0).astype(jnp.bfloat16)      # [bt*256, 32]

    # ---- scatter conv1 output into the padded s2d scratch (aligned writes) -
    h1_ref[...] = jnp.zeros(h1_ref.shape, h1_ref.dtype)
    for b in range(bt):
        for cls in range(4):
            p, _q = cls // 2, cls % 2
            i0 = 1 - p                                    # first valid s2d row
            blk = h1[(b * 4 + cls) * 64:(b * 4 + cls + 1) * 64, :].reshape(8, 8, 32)
            h1_ref[b, cls, i0:i0 + 8, 8:16, :] = blk      # sublane offset 8: aligned

    # ---- conv2: merge all 16 taps into one K=512 GEMM (M = bt*64) ----------
    chunks = []
    for a in range(2):
        for bp in range(2):
            for cls in range(4):
                _p, q = cls // 2, cls % 2
                c0 = 8 + bp - (1 - q)                     # sublane start in {7,8,9}
                v = h1_ref[:, cls, a:a + 8, c0:c0 + 8, :]          # [bt, 8, 8, 32]
                chunks.append(v.reshape(bt * 64, 32))
    lhs2 = jnp.concatenate(chunks, axis=1)                          # [bt*64, 512]
    h2 = jnp.dot(lhs2, w2_ref[...], preferred_element_type=jnp.float32)
    h2 = jnp.maximum(h2 + b2_ref[...], 0.0)
    o_ref[...] = h2.astype(o_ref.dtype).reshape(bt, 8, 8, 64)


def _conv3_fc_kernel(x3_ref, w3_ref, b3_ref, wfc_ref, bfc_ref, o_ref, fc_ref, *, bt):
    """Fused conv3 (+bias+ReLU) and the mu/logvar Linear layers.

    x3_ref:  [bt, 16, 1024]  bf16  conv3 im2col, K order (ki,kj,c)
    w3_ref:  [1024, 128]     bf16
    wfc_ref: [2048, NF]      bf16  K order (spatial r, channel c); NF = pad(2L,128)
    o_ref:   [bt, 1, NF]     f32   (mu ++ logvar, lane-padded)
    fc_ref:  [bt, 2048]      bf16  scratch holding the flattened conv3 output
    """
    # ---- conv3: single K=1024 GEMM (M = bt*16) ------------------------------
    lhs3 = x3_ref[...].reshape(bt * 16, 1024)
    h3 = jnp.dot(lhs3, w3_ref[...], preferred_element_type=jnp.float32)
    h3 = jnp.maximum(h3 + b3_ref[...], 0.0).astype(jnp.bfloat16)       # [bt*16, 128]

    # ---- lay the 16 spatial rows along lanes -> one [bt, 2048] FC LHS -------
    for b in range(bt):
        for r in range(16):
            src = h3[b * 16 + r:b * 16 + r + 1, :]
            fc_ref[b:b + 1, r * 128:(r + 1) * 128] = src

    # ---- fc_mu ++ fc_logvar as a single K=2048 GEMM -------------------------
    out = jnp.dot(fc_ref[...], wfc_ref[...], preferred_element_type=jnp.float32)
    out = out + bfc_ref[...]
    o_ref[:, 0, :] = out


# --------------------------------------------------------------------------- #
# pallas_call wrappers
# --------------------------------------------------------------------------- #

_COMPILER_PARAMS = pltpu.CompilerParams(
    dimension_semantics=("parallel",),          # batch blocks -> both v7x TCs
    vmem_limit_bytes=32 * 1024 * 1024,          # usage is << 1 MiB per step
)


def conv12_call(x1, w1, b1, w2, b2, *, bt):
    batch = x1.shape[0]
    flops = 2 * batch * 256 * 48 * 32 + 2 * batch * 64 * 512 * 64
    bytes_accessed = ((x1.size + w1.size + w2.size) * 2
                      + (b1.size + b2.size) * 4 + batch * 8 * 8 * 64 * 2)
    return pl.pallas_call(
        functools.partial(_conv12_kernel, bt=bt),
        out_shape=jax.ShapeDtypeStruct((batch, 8, 8, 64), jnp.bfloat16),
        grid=(batch // bt,),
        in_specs=[
            pl.BlockSpec((bt, 256, 48), lambda i: (i, 0, 0)),
            pl.BlockSpec((48, 32), lambda i: (0, 0)),
            pl.BlockSpec((1, 32), lambda i: (0, 0)),
            pl.BlockSpec((512, 64), lambda i: (0, 0)),
            pl.BlockSpec((1, 64), lambda i: (0, 0)),
        ],
        out_specs=pl.BlockSpec((bt, 8, 8, 64), lambda i: (i, 0, 0, 0)),
        scratch_shapes=[pltpu.VMEM((bt, 4, 9, 17, 32), jnp.bfloat16)],
        compiler_params=_COMPILER_PARAMS,
        cost_estimate=pl.CostEstimate(flops=flops, transcendentals=0,
                                      bytes_accessed=bytes_accessed),
    )(x1, w1, b1, w2, b2)


def conv3_fc_call(x3, w3, b3, wfc, bfc, *, bt):
    batch = x3.shape[0]
    nf = wfc.shape[1]
    flops = 2 * batch * 16 * 1024 * 128 + 2 * batch * 2048 * nf
    bytes_accessed = ((x3.size + w3.size + wfc.size) * 2
                      + (b3.size + bfc.size) * 4 + batch * nf * 4)
    out = pl.pallas_call(
        functools.partial(_conv3_fc_kernel, bt=bt),
        out_shape=jax.ShapeDtypeStruct((batch, 1, nf), jnp.float32),
        grid=(batch // bt,),
        in_specs=[
            pl.BlockSpec((bt, 16, 1024), lambda i: (i, 0, 0)),
            pl.BlockSpec((1024, 128), lambda i: (0, 0)),
            pl.BlockSpec((1, 128), lambda i: (0, 0)),
            pl.BlockSpec((2048, nf), lambda i: (0, 0)),
            pl.BlockSpec((1, nf), lambda i: (0, 0)),
        ],
        out_specs=pl.BlockSpec((bt, 1, nf), lambda i: (i, 0, 0)),
        scratch_shapes=[pltpu.VMEM((bt, 2048), jnp.bfloat16)],
        compiler_params=_COMPILER_PARAMS,
        cost_estimate=pl.CostEstimate(flops=flops, transcendentals=0,
                                      bytes_accessed=bytes_accessed),
    )(x3, w3, b3, wfc, bfc)
    return out[:, 0, :]


# --------------------------------------------------------------------------- #
# Host-side (XLA) boundary glue: tiny, done once per forward on small tensors.
# --------------------------------------------------------------------------- #

def build_conv1_im2col(x_nhwc):
    """[B,32,32,3] -> [B,256,48] bf16 conv1 im2col, rows class-ordered."""
    batch = x_nhwc.shape[0]
    xp = jnp.pad(x_nhwc, ((0, 0), (1, 1), (1, 1), (0, 0)))
    taps = [xp[:, ki:ki + 32:2, kj:kj + 32:2, :]
            for ki in range(4) for kj in range(4)]
    pat = jnp.stack(taps, axis=3)                       # [B,16,16,16,3]
    pat = pat.reshape(batch, 256, 48)                   # rows (oh,ow), K (ki,kj,c)
    return pat[:, _X1_PERM, :]


def build_conv3_im2col(h2):
    """[B,8,8,64] -> [B,16,1024] bf16 conv3 im2col, K order (ki,kj,c)."""
    batch = h2.shape[0]
    xp = jnp.pad(h2, ((0, 0), (1, 1), (1, 1), (0, 0)))
    taps = [xp[:, ki:ki + 8:2, kj:kj + 8:2, :]
            for ki in range(4) for kj in range(4)]
    pat = jnp.stack(taps, axis=3)                       # [B,4,4,16,64]
    return pat.reshape(batch, 16, 1024)


def prepare_params(params):
    """One-time weight repacking to the kernels' K orders (bf16, biases f32)."""

    def im2col_w(w):                                     # OIHW -> [(ki,kj,c), n]
        n, c, kh, kw = w.shape
        return jnp.transpose(w, (2, 3, 1, 0)).reshape(kh * kw * c, n).astype(jnp.bfloat16)

    def s2d_w(w):                                        # OIHW -> [(a,b,p,q,c), n]
        wt = jnp.transpose(w, (2, 3, 1, 0))              # [ki, kj, c, n]
        blocks = []
        for a in range(2):
            for bcol in range(2):
                for p in range(2):
                    for q in range(2):
                        blocks.append(wt[2 * a + p, 2 * bcol + q])   # [c, n]
        return jnp.concatenate(blocks, axis=0).astype(jnp.bfloat16)

    def bias_row(b):
        return b.reshape(1, -1).astype(jnp.float32)

    latent = params["w_mu"].shape[0]
    nf = max(128, ((2 * latent + 127) // 128) * 128)
    # PyTorch Flatten is NCHW (f = c*16 + r); reorder K to (r, c) used in-kernel.
    wcat = jnp.concatenate([params["w_mu"], params["w_lv"]], axis=0)    # [2L, 2048]
    wcat = wcat.reshape(2 * latent, 128, 16)                            # [n, c, r]
    wfc = jnp.transpose(wcat, (2, 1, 0)).reshape(2048, 2 * latent)      # [(r,c), n]
    wfc = jnp.pad(wfc, ((0, 0), (0, nf - 2 * latent))).astype(jnp.bfloat16)
    bfc = jnp.pad(jnp.concatenate([params["b_mu"], params["b_lv"]]),
                  (0, nf - 2 * latent)).reshape(1, nf).astype(jnp.float32)
    return {
        "w1": im2col_w(params["w1"]), "b1": bias_row(params["b1"]),
        "w2": s2d_w(params["w2"]),    "b2": bias_row(params["b2"]),
        "w3": im2col_w(params["w3"]), "b3": bias_row(params["b3"]),
        "wfc": wfc, "bfc": bfc,
    }


def encoder_forward(x_nchw, prep, *, latent_dim):
    batch = x_nchw.shape[0]
    bt = _pick_block_batch(batch)
    x_nhwc = jnp.transpose(x_nchw, (0, 2, 3, 1)).astype(jnp.bfloat16)
    x1 = build_conv1_im2col(x_nhwc)                                     # [B,256,48]
    h2 = conv12_call(x1, prep["w1"], prep["b1"], prep["w2"], prep["b2"], bt=bt)
    x3 = build_conv3_im2col(h2)                                         # [B,16,1024]
    out = conv3_fc_call(x3, prep["w3"], prep["b3"], prep["wfc"], prep["bfc"], bt=bt)
    return out[:, :latent_dim], out[:, latent_dim:2 * latent_dim]


# --------------------------------------------------------------------------- #
# Pure-JAX reference
# --------------------------------------------------------------------------- #

def encoder_reference(x, params):
    def conv(h, w, b):
        y = jax.lax.conv_general_dilated(
            h, w, window_strides=(2, 2), padding=((1, 1), (1, 1)),
            dimension_numbers=("NCHW", "OIHW", "NCHW"))
        return jax.nn.relu(y + b[None, :, None, None])

    h = conv(x, params["w1"], params["b1"])
    h = conv(h, params["w2"], params["b2"])
    h = conv(h, params["w3"], params["b3"])
    flat = h.reshape(x.shape[0], -1)
    mu = flat @ params["w_mu"].T + params["b_mu"]
    lv = flat @ params["w_lv"].T + params["b_lv"]
    return mu, lv


# --------------------------------------------------------------------------- #
# main
# --------------------------------------------------------------------------- #

def init_params(key, latent_dim):
    ks = jax.random.split(key, 10)
    s = 0.05
    return {
        "w1": jax.random.normal(ks[0], (32, 3, 4, 4), jnp.float32) * s,
        "b1": jax.random.normal(ks[1], (32,), jnp.float32) * s,
        "w2": jax.random.normal(ks[2], (64, 32, 4, 4), jnp.float32) * s,
        "b2": jax.random.normal(ks[3], (64,), jnp.float32) * s,
        "w3": jax.random.normal(ks[4], (128, 64, 4, 4), jnp.float32) * s,
        "b3": jax.random.normal(ks[5], (128,), jnp.float32) * s,
        "w_mu": jax.random.normal(ks[6], (latent_dim, 128 * 4 * 4), jnp.float32) * s,
        "b_mu": jax.random.normal(ks[7], (latent_dim,), jnp.float32) * s,
        "w_lv": jax.random.normal(ks[8], (latent_dim, 128 * 4 * 4), jnp.float32) * s,
        "b_lv": jax.random.normal(ks[9], (latent_dim,), jnp.float32) * s,
    }


if __name__ == "__main__":
    latent_dim = 16
    key = jax.random.PRNGKey(0)
    k_params, k_x = jax.random.split(key)
    params = init_params(k_params, latent_dim)

    # Input implied by the module: 3x32x32 images (128*4*4 after 3 stride-2 convs).
    x = jax.random.normal(k_x, (2, 3, 32, 32), jnp.float32)

    prep = prepare_params(params)
    fwd = jax.jit(functools.partial(encoder_forward, latent_dim=latent_dim))
    mu, logvar = fwd(x, prep)
    mu = jax.block_until_ready(mu)
    logvar = jax.block_until_ready(logvar)

    mu_ref, lv_ref = jax.jit(encoder_reference)(x, params)
    assert mu.shape == (2, latent_dim) and logvar.shape == (2, latent_dim)
    # bf16 operands (f32 accumulation) -> loosened tolerance vs the f32 reference.
    assert jnp.allclose(mu, mu_ref, atol=5e-2, rtol=5e-2), \
        float(jnp.max(jnp.abs(mu - mu_ref)))
    assert jnp.allclose(logvar, lv_ref, atol=5e-2, rtol=5e-2), \
        float(jnp.max(jnp.abs(logvar - lv_ref)))

    print("KERNEL_OK")
</pallas_src>

<mosaic_0001>
module attributes {stable_mosaic.version = 11 : i64} {
  func.func @_conv12_kernel(%arg0: i32, %arg1: memref<1x256x48xbf16, #tpu.memory_space<vmem>>, %arg2: memref<48x32xbf16, #tpu.memory_space<vmem>>, %arg3: memref<1x32xf32, #tpu.memory_space<vmem>>, %arg4: memref<512x64xbf16, #tpu.memory_space<vmem>>, %arg5: memref<1x64xf32, #tpu.memory_space<vmem>>, %arg6: memref<1x8x8x64xbf16, #tpu.memory_space<vmem>>, %arg7: memref<1x4x9x17x32xbf16, #tpu.memory_space<vmem>>) attributes {dimension_semantics = [#tpu.dimension_semantics<parallel>], iteration_bounds = array<i64: 2>, scalar_prefetch = 0 : i64, scratch_operands = 1 : i64, tpu.core_type = #tpu.core_type<tc>, window_params = [{transform_indices = @transform_0, window_bounds = array<i64: 1, 256, 48>}, {pipeline_mode = #tpu.pipeline_mode<synchronous>, transform_indices = @transform_1, window_bounds = array<i64: 48, 32>}, {pipeline_mode = #tpu.pipeline_mode<synchronous>, transform_indices = @transform_2, window_bounds = array<i64: 1, 32>}, {pipeline_mode = #tpu.pipeline_mode<synchronous>, transform_indices = @transform_3, window_bounds = array<i64: 512, 64>}, {pipeline_mode = #tpu.pipeline_mode<synchronous>, transform_indices = @transform_4, window_bounds = array<i64: 1, 64>}, {transform_indices = @transform_5, window_bounds = array<i64: 1, 8, 8, 64>}]} {
    %c0 = arith.constant 0 : index
    %c0_0 = arith.constant 0 : index
    %c0_1 = arith.constant 0 : index
    %0 = vector.load %arg1[%c0, %c0_0, %c0_1] : memref<1x256x48xbf16, #tpu.memory_space<vmem>>, vector<1x256x48xbf16>
    %1 = vector.shape_cast %0 : vector<1x256x48xbf16> to vector<256x48xbf16>
    %c0_2 = arith.constant 0 : index
    %c0_3 = arith.constant 0 : index
    %2 = vector.load %arg2[%c0_2, %c0_3] : memref<48x32xbf16, #tpu.memory_space<vmem>>, vector<48x32xbf16>
    %cst = arith.constant dense<0.000000e+00> : vector<256x32xf32>
    %3 = tpu.matmul %1, %2, %cst {dimension_numbers = #tpu.dot_dimension_numbers<[1], [0], [0], [1], [0, 0, 1, 1], [], []>} : vector<256x48xbf16>, vector<48x32xbf16>, vector<256x32xf32> -> vector<256x32xf32>
    %c0_4 = arith.constant 0 : index
    %c0_5 = arith.constant 0 : index
    %4 = vector.load %arg3[%c0_4, %c0_5] : memref<1x32xf32, #tpu.memory_space<vmem>>, vector<1x32xf32>
    %5 = vector.broadcast %4 : vector<1x32xf32> to vector<256x32xf32>
    %6 = arith.addf %3, %5 : vector<256x32xf32>
    %cst_6 = arith.constant 0.000000e+00 : f32
    %7 = vector.broadcast %cst_6 : f32 to vector<256x32xf32>
    %8 = arith.maximumf %6, %7 : vector<256x32xf32>
    %9 = arith.truncf %8 : vector<256x32xf32> to vector<256x32xbf16>
    %cst_7 = arith.constant 0.000000e+00 : bf16
    %10 = vector.broadcast %cst_7 : bf16 to vector<1x4x9x17x32xbf16>
    %c0_8 = arith.constant 0 : index
    %c0_9 = arith.constant 0 : index
    %c0_10 = arith.constant 0 : index
    %c0_11 = arith.constant 0 : index
    %c0_12 = arith.constant 0 : index
    %11 = vector.load %arg7[%c0_8, %c0_9, %c0_10, %c0_11, %c0_12] : memref<1x4x9x17x32xbf16, #tpu.memory_space<vmem>>, vector<1x4x9x17x32xbf16>
    tpu.vector_store %arg7[%c0_8, %c0_9, %c0_10, %c0_11, %c0_12], %10 {strides = array<i32>} : memref<1x4x9x17x32xbf16, #tpu.memory_space<vmem>>, vector<1x4x9x17x32xbf16>,
    %12 = vector.extract_strided_slice %9 {offsets = [0, 0], sizes = [64, 32], strides = [1, 1]} : vector<256x32xbf16> to vector<64x32xbf16>
    %13 = vector.shape_cast %12 : vector<64x32xbf16> to vector<8x8x32xbf16>
    %c0_13 = arith.constant 0 : index
    %c0_14 = arith.constant 0 : index
    %c1 = arith.constant 1 : index
    %c8 = arith.constant 8 : index
    %c0_15 = arith.constant 0 : index
    %14 = vector.load %arg7[%c0_13, %c0_14, %c1, %c8, %c0_15] : memref<1x4x9x17x32xbf16, #tpu.memory_space<vmem>>, vector<1x1x8x8x32xbf16>
    %15 = vector.shape_cast %14 : vector<1x1x8x8x32xbf16> to vector<8x8x32xbf16>
    %16 = vector.shape_cast %13 : vector<8x8x32xbf16> to vector<1x1x8x8x32xbf16>
    tpu.vector_store %arg7[%c0_13, %c0_14, %c1, %c8, %c0_15], %16 {strides = array<i32>} : memref<1x4x9x17x32xbf16, #tpu.memory_space<vmem>>, vector<1x1x8x8x32xbf16>,
    %17 = vector.extract_strided_slice %9 {offsets = [64, 0], sizes = [64, 32], strides = [1, 1]} : vector<256x32xbf16> to vector<64x32xbf16>
    %18 = vector.shape_cast %17 : vector<64x32xbf16> to vector<8x8x32xbf16>
    %c0_16 = arith.constant 0 : index
    %c1_17 = arith.constant 1 : index
    %c1_18 = arith.constant 1 : index
    %c8_19 = arith.constant 8 : index
    %c0_20 = arith.constant 0 : index
    %19 = vector.load %arg7[%c0_16, %c1_17, %c1_18, %c8_19, %c0_20] : memref<1x4x9x17x32xbf16, #tpu.memory_space<vmem>>, vector<1x1x8x8x32xbf16>
    %20 = vector.shape_cast %19 : vector<1x1x8x8x32xbf16> to vector<8x8x32xbf16>
    %21 = vector.shape_cast %18 : vector<8x8x32xbf16> to vector<1x1x8x8x32xbf16>
    tpu.vector_store %arg7[%c0_16, %c1_17, %c1_18, %c8_19, %c0_20], %21 {strides = array<i32>} : memref<1x4x9x17x32xbf16, #tpu.memory_space<vmem>>, vector<1x1x8x8x32xbf16>,
    %22 = vector.extract_strided_slice %9 {offsets = [128, 0], sizes = [64, 32], strides = [1, 1]} : vector<256x32xbf16> to vector<64x32xbf16>
    %23 = vector.shape_cast %22 : vector<64x32xbf16> to vector<8x8x32xbf16>
    %c0_21 = arith.constant 0 : index
    %c2 = arith.constant 2 : index
    %c0_22 = arith.constant 0 : index
    %c8_23 = arith.constant 8 : index
    %c0_24 = arith.constant 0 : index
    %24 = vector.load %arg7[%c0_21, %c2, %c0_22, %c8_23, %c0_24] : memref<1x4x9x17x32xbf16, #tpu.memory_space<vmem>>, vector<1x1x8x8x32xbf16>
    %25 = vector.shape_cast %24 : vector<1x1x8x8x32xbf16> to vector<8x8x32xbf16>
    %26 = vector.shape_cast %23 : vector<8x8x32xbf16> to vector<1x1x8x8x32xbf16>
    tpu.vector_store %arg7[%c0_21, %c2, %c0_22, %c8_23, %c0_24], %26 {strides = array<i32>} : memref<1x4x9x17x32xbf16, #tpu.memory_space<vmem>>, vector<1x1x8x8x32xbf16>,
    %27 = vector.extract_strided_slice %9 {offsets = [192, 0], sizes = [64, 32], strides = [1, 1]} : vector<256x32xbf16> to vector<64x32xbf16>
    %28 = vector.shape_cast %27 : vector<64x32xbf16> to vector<8x8x32xbf16>
    %c0_25 = arith.constant 0 : index
    %c3 = arith.constant 3 : index
    %c0_26 = arith.constant 0 : index
    %c8_27 = arith.constant 8 : index
    %c0_28 = arith.constant 0 : index
    %29 = vector.load %arg7[%c0_25, %c3, %c0_26, %c8_27, %c0_28] : memref<1x4x9x17x32xbf16, #tpu.memory_space<vmem>>, vector<1x1x8x8x32xbf16>
    %30 = vector.shape_cast %29 : vector<1x1x8x8x32xbf16> to vector<8x8x32xbf16>
    %31 = vector.shape_cast %28 : vector<8x8x32xbf16> to vector<1x1x8x8x32xbf16>
    tpu.vector_store %arg7[%c0_25, %c3, %c0_26, %c8_27, %c0_28], %31 {strides = array<i32>} : memref<1x4x9x17x32xbf16, #tpu.memory_space<vmem>>, vector<1x1x8x8x32xbf16>,
    %c0_29 = arith.constant 0 : index
    %c0_30 = arith.constant 0 : index
    %c0_31 = arith.constant 0 : index
    %c7 = arith.constant 7 : index
    %c0_32 = arith.constant 0 : index
    %32 = vector.load %arg7[%c0_29, %c0_30, %c0_31, %c7, %c0_32] : memref<1x4x9x17x32xbf16, #tpu.memory_space<vmem>>, vector<1x1x8x8x32xbf16>
    %33 = vector.shape_cast %32 : vector<1x1x8x8x32xbf16> to vector<1x8x8x32xbf16>
    %34 = vector.shape_cast %33 : vector<1x8x8x32xbf16> to vector<64x32xbf16>
    %c0_33 = arith.constant 0 : index
    %c1_34 = arith.constant 1 : index
    %c0_35 = arith.constant 0 : index
    %c8_36 = arith.constant 8 : index
    %c0_37 = arith.constant 0 : index
    %35 = vector.load %arg7[%c0_33, %c1_34, %c0_35, %c8_36, %c0_37] : memref<1x4x9x17x32xbf16, #tpu.memory_space<vmem>>, vector<1x1x8x8x32xbf16>
    %36 = vector.shape_cast %35 : vector<1x1x8x8x32xbf16> to vector<1x8x8x32xbf16>
    %37 = vector.shape_cast %36 : vector<1x8x8x32xbf16> to vector<64x32xbf16>
    %c0_38 = arith.constant 0 : index
    %c2_39 = arith.constant 2 : index
    %c0_40 = arith.constant 0 : index
    %c7_41 = arith.constant 7 : index
    %c0_42 = arith.constant 0 : index
    %38 = vector.load %arg7[%c0_38, %c2_39, %c0_40, %c7_41, %c0_42] : memref<1x4x9x17x32xbf16, #tpu.memory_space<vmem>>, vector<1x1x8x8x32xbf16>
    %39 = vector.shape_cast %38 : vector<1x1x8x8x32xbf16> to vector<1x8x8x32xbf16>
    %40 = vector.shape_cast %39 : vector<1x8x8x32xbf16> to vector<64x32xbf16>
    %c0_43 = arith.constant 0 : index
    %c3_44 = arith.constant 3 : index
    %c0_45 = arith.constant 0 : index
    %c8_46 = arith.constant 8 : index
    %c0_47 = arith.constant 0 : index
    %41 = vector.load %arg7[%c0_43, %c3_44, %c0_45, %c8_46, %c0_47] : memref<1x4x9x17x32xbf16, #tpu.memory_space<vmem>>, vector<1x1x8x8x32xbf16>
    %42 = vector.shape_cast %41 : vector<1x1x8x8x32xbf16> to vector<1x8x8x32xbf16>
    %43 = vector.shape_cast %42 : vector<1x8x8x32xbf16> to vector<64x32xbf16>
    %c0_48 = arith.constant 0 : index
    %c0_49 = arith.constant 0 : index
    %c0_50 = arith.constant 0 : index
    %c8_51 = arith.constant 8 : index
    %c0_52 = arith.constant 0 : index
    %44 = vector.load %arg7[%c0_48, %c0_49, %c0_50, %c8_51, %c0_52] : memref<1x4x9x17x32xbf16, #tpu.memory_space<vmem>>, vector<1x1x8x8x32xbf16>
    %45 = vector.shape_cast %44 : vector<1x1x8x8x32xbf16> to vector<1x8x8x32xbf16>
    %46 = vector.shape_cast %45 : vector<1x8x8x32xbf16> to vector<64x32xbf16>
    %c0_53 = arith.constant 0 : index
    %c1_54 = arith.constant 1 : index
    %c0_55 = arith.constant 0 : index
    %c9 = arith.constant 9 : index
    %c0_56 = arith.constant 0 : index
    %47 = vector.load %arg7[%c0_53, %c1_54, %c0_55, %c9, %c0_56] : memref<1x4x9x17x32xbf16, #tpu.memory_space<vmem>>, vector<1x1x8x8x32xbf16>
    %48 = vector.shape_cast %47 : vector<1x1x8x8x32xbf16> to vector<1x8x8x32xbf16>
    %49 = vector.shape_cast %48 : vector<1x8x8x32xbf16> to vector<64x32xbf16>
    %c0_57 = arith.constant 0 : index
    %c2_58 = arith.constant 2 : index
    %c0_59 = arith.constant 0 : index
    %c8_60 = arith.constant 8 : index
    %c0_61 = arith.constant 0 : index
    %50 = vector.load %arg7[%c0_57, %c2_58, %c0_59, %c8_60, %c0_61] : memref<1x4x9x17x32xbf16, #tpu.memory_space<vmem>>, vector<1x1x8x8x32xbf16>
    %51 = vector.shape_cast %50 : vector<1x1x8x8x32xbf16> to vector<1x8x8x32xbf16>
    %52 = vector.shape_cast %51 : vector<1x8x8x32xbf16> to vector<64x32xbf16>
    %c0_62 = arith.constant 0 : index
    %c3_63 = arith.constant 3 : index
    %c0_64 = arith.constant 0 : index
    %c9_65 = arith.constant 9 : index
    %c0_66 = arith.constant 0 : index
    %53 = vector.load %arg7[%c0_62, %c3_63, %c0_64, %c9_65, %c0_66] : memref<1x4x9x17x32xbf16, #tpu.memory_space<vmem>>, vector<1x1x8x8x32xbf16>
    %54 = vector.shape_cast %53 : vector<1x1x8x8x32xbf16> to vector<1x8x8x32xbf16>
    %55 = vector.shape_cast %54 : vector<1x8x8x32xbf16> to vector<64x32xbf16>
    %c0_67 = arith.constant 0 : index
    %c0_68 = arith.constant 0 : index
    %c1_69 = arith.constant 1 : index
    %c7_70 = arith.constant 7 : index
    %c0_71 = arith.constant 0 : index
    %56 = vector.load %arg7[%c0_67, %c0_68, %c1_69, %c7_70, %c0_71] : memref<1x4x9x17x32xbf16, #tpu.memory_space<vmem>>, vector<1x1x8x8x32xbf16>
    %57 = vector.shape_cast %56 : vector<1x1x8x8x32xbf16> to vector<1x8x8x32xbf16>
    %58 = vector.shape_cast %57 : vector<1x8x8x32xbf16> to vector<64x32xbf16>
    %c0_72 = arith.constant 0 : index
    %c1_73 = arith.constant 1 : index
    %c1_74 = arith.constant 1 : index
    %c8_75 = arith.constant 8 : index
    %c0_76 = arith.constant 0 : index
    %59 = vector.load %arg7[%c0_72, %c1_73, %c1_74, %c8_75, %c0_76] : memref<1x4x9x17x32xbf16, #tpu.memory_space<vmem>>, vector<1x1x8x8x32xbf16>
    %60 = vector.shape_cast %59 : vector<1x1x8x8x32xbf16> to vector<1x8x8x32xbf16>
    %61 = vector.shape_cast %60 : vector<1x8x8x32xbf16> to vector<64x32xbf16>
    %c0_77 = arith.constant 0 : index
    %c2_78 = arith.constant 2 : index
    %c1_79 = arith.constant 1 : index
    %c7_80 = arith.constant 7 : index
    %c0_81 = arith.constant 0 : index
    %62 = vector.load %arg7[%c0_77, %c2_78, %c1_79, %c7_80, %c0_81] : memref<1x4x9x17x32xbf16, #tpu.memory_space<vmem>>, vector<1x1x8x8x32xbf16>
    %63 = vector.shape_cast %62 : vector<1x1x8x8x32xbf16> to vector<1x8x8x32xbf16>
    %64 = vector.shape_cast %63 : vector<1x8x8x32xbf16> to vector<64x32xbf16>
    %c0_82 = arith.constant 0 : index
    %c3_83 = arith.constant 3 : index
    %c1_84 = arith.constant 1 : index
    %c8_85 = arith.constant 8 : index
    %c0_86 = arith.constant 0 : index
    %65 = vector.load %arg7[%c0_82, %c3_83, %c1_84, %c8_85, %c0_86] : memref<1x4x9x17x32xbf16, #tpu.memory_space<vmem>>, vector<1x1x8x8x32xbf16>
    %66 = vector.shape_cast %65 : vector<1x1x8x8x32xbf16> to vector<1x8x8x32xbf16>
    %67 = vector.shape_cast %66 : vector<1x8x8x32xbf16> to vector<64x32xbf16>
    %c0_87 = arith.constant 0 : index
    %c0_88 = arith.constant 0 : index
    %c1_89 = arith.constant 1 : index
    %c8_90 = arith.constant 8 : index
    %c0_91 = arith.constant 0 : index
    %68 = vector.load %arg7[%c0_87, %c0_88, %c1_89, %c8_90, %c0_91] : memref<1x4x9x17x32xbf16, #tpu.memory_space<vmem>>, vector<1x1x8x8x32xbf16>
    %69 = vector.shape_cast %68 : vector<1x1x8x8x32xbf16> to vector<1x8x8x32xbf16>
    %70 = vector.shape_cast %69 : vector<1x8x8x32xbf16> to vector<64x32xbf16>
    %c0_92 = arith.constant 0 : index
    %c1_93 = arith.constant 1 : index
    %c1_94 = arith.constant 1 : index
    %c9_95 = arith.constant 9 : index
    %c0_96 = arith.constant 0 : index
    %71 = vector.load %arg7[%c0_92, %c1_93, %c1_94, %c9_95, %c0_96] : memref<1x4x9x17x32xbf16, #tpu.memory_space<vmem>>, vector<1x1x8x8x32xbf16>
    %72 = vector.shape_cast %71 : vector<1x1x8x8x32xbf16> to vector<1x8x8x32xbf16>
    %73 = vector.shape_cast %72 : vector<1x8x8x32xbf16> to vector<64x32xbf16>
    %c0_97 = arith.constant 0 : index
    %c2_98 = arith.constant 2 : index
    %c1_99 = arith.constant 1 : index
    %c8_100 = arith.constant 8 : index
    %c0_101 = arith.constant 0 : index
    %74 = vector.load %arg7[%c0_97, %c2_98, %c1_99, %c8_100, %c0_101] : memref<1x4x9x17x32xbf16, #tpu.memory_space<vmem>>, vector<1x1x8x8x32xbf16>
    %75 = vector.shape_cast %74 : vector<1x1x8x8x32xbf16> to vector<1x8x8x32xbf16>
    %76 = vector.shape_cast %75 : vector<1x8x8x32xbf16> to vector<64x32xbf16>
    %c0_102 = arith.constant 0 : index
    %c3_103 = arith.constant 3 : index
    %c1_104 = arith.constant 1 : index
    %c9_105 = arith.constant 9 : index
    %c0_106 = arith.constant 0 : index
    %77 = vector.load %arg7[%c0_102, %c3_103, %c1_104, %c9_105, %c0_106] : memref<1x4x9x17x32xbf16, #tpu.memory_space<vmem>>, vector<1x1x8x8x32xbf16>
    %78 = vector.shape_cast %77 : vector<1x1x8x8x32xbf16> to vector<1x8x8x32xbf16>
    %79 = vector.shape_cast %78 : vector<1x8x8x32xbf16> to vector<64x32xbf16>
    %80 = tpu.concatenate %34, %37, %40, %43, %46, %49, %52, %55, %58, %61, %64, %67, %70, %73, %76, %79 in 1 : vector<64x32xbf16>, vector<64x32xbf16>, vector<64x32xbf16>, vector<64x32xbf16>, vector<64x32xbf16>, vector<64x32xbf16>, vector<64x32xbf16>, vector<64x32xbf16>, vector<64x32xbf16>, vector<64x32xbf16>, vector<64x32xbf16>, vector<64x32xbf16>, vector<64x32xbf16>, vector<64x32xbf16>, vector<64x32xbf16>, vector<64x32xbf16> -> vector<64x512xbf16>
    %c0_107 = arith.constant 0 : index
    %c0_108 = arith.constant 0 : index
    %81 = vector.load %arg4[%c0_107, %c0_108] : memref<512x64xbf16, #tpu.memory_space<vmem>>, vector<512x64xbf16>
    %cst_109 = arith.constant dense<0.000000e+00> : vector<64x64xf32>
    %82 = tpu.matmul %80, %81, %cst_109 {dimension_numbers = #tpu.dot_dimension_numbers<[1], [0], [0], [1], [0, 0, 1, 1], [], []>} : vector<64x512xbf16>, vector<512x64xbf16>, vector<64x64xf32> -> vector<64x64xf32>
    %c0_110 = arith.constant 0 : index
    %c0_111 = arith.constant 0 : index
    %83 = vector.load %arg5[%c0_110, %c0_111] : memref<1x64xf32, #tpu.memory_space<vmem>>, vector<1x64xf32>
    %84 = vector.broadcast %83 : vector<1x64xf32> to vector<64x64xf32>
    %85 = arith.addf %82, %84 : vector<64x64xf32>
    %cst_112 = arith.constant 0.000000e+00 : f32
    %86 = vector.broadcast %cst_112 : f32 to vector<64x64xf32>
    %87 = arith.maximumf %85, %86 : vector<64x64xf32>
    %88 = arith.truncf %87 : vector<64x64xf32> to vector<64x64xbf16>
    %89 = vector.shape_cast %88 : vector<64x64xbf16> to vector<1x8x8x64xbf16>
    %c0_113 = arith.constant 0 : index
    %c0_114 = arith.constant 0 : index
    %c0_115 = arith.constant 0 : index
    %c0_116 = arith.constant 0 : index
    %90 = vector.load %arg6[%c0_113, %c0_114, %c0_115, %c0_116] : memref<1x8x8x64xbf16, #tpu.memory_space<vmem>>, vector<1x8x8x64xbf16>
    tpu.vector_store %arg6[%c0_113, %c0_114, %c0_115, %c0_116], %89 {strides = array<i32>} : memref<1x8x8x64xbf16, #tpu.memory_space<vmem>>, vector<1x8x8x64xbf16>,
    return
  }
  func.func @transform_0(%arg0: i32) -> (i32, i32, i32) {
    %c0_i32 = arith.constant 0 : i32
    %c0_i32_0 = arith.constant 0 : i32
    %c0_i32_1 = arith.constant 0 : i32
    return %arg0, %c0_i32, %c0_i32_0 : i32, i32, i32
  }
  func.func @transform_1(%arg0: i32) -> (i32, i32) {
    %c0_i32 = arith.constant 0 : i32
    %c0_i32_0 = arith.constant 0 : i32
    %c0_i32_1 = arith.constant 0 : i32
    return %c0_i32, %c0_i32_0 : i32, i32
  }
  func.func @transform_2(%arg0: i32) -> (i32, i32) {
    %c0_i32 = arith.constant 0 : i32
    %c0_i32_0 = arith.constant 0 : i32
    %c0_i32_1 = arith.constant 0 : i32
    return %c0_i32, %c0_i32_0 : i32, i32
  }
  func.func @transform_3(%arg0: i32) -> (i32, i32) {
    %c0_i32 = arith.constant 0 : i32
    %c0_i32_0 = arith.constant 0 : i32
    %c0_i32_1 = arith.constant 0 : i32
    return %c0_i32, %c0_i32_0 : i32, i32
  }
  func.func @transform_4(%arg0: i32) -> (i32, i32) {
    %c0_i32 = arith.constant 0 : i32
    %c0_i32_0 = arith.constant 0 : i32
    %c0_i32_1 = arith.constant 0 : i32
    return %c0_i32, %c0_i32_0 : i32, i32
  }
  func.func @transform_5(%arg0: i32) -> (i32, i32, i32, i32) {
    %c0_i32 = arith.constant 0 : i32
    %c0_i32_0 = arith.constant 0 : i32
    %c0_i32_1 = arith.constant 0 : i32
    %c0_i32_2 = arith.constant 0 : i32
    return %arg0, %c0_i32, %c0_i32_0, %c0_i32_1 : i32, i32, i32, i32
  }
}

module attributes {stable_mosaic.version = 11 : i64} {
  func.func @_conv3_fc_kernel(%arg0: i32, %arg1: memref<1x16x1024xbf16, #tpu.memory_space<vmem>>, %arg2: memref<1024x128xbf16, #tpu.memory_space<vmem>>, %arg3: memref<1x128xf32, #tpu.memory_space<vmem>>, %arg4: memref<2048x128xbf16, #tpu.memory_space<vmem>>, %arg5: memref<1x128xf32, #tpu.memory_space<vmem>>, %arg6: memref<1x1x128xf32, #tpu.memory_space<vmem>>, %arg7: memref<1x2048xbf16, #tpu.memory_space<vmem>>) attributes {dimension_semantics = [#tpu.dimension_semantics<parallel>], iteration_bounds = array<i64: 2>, scalar_prefetch = 0 : i64, scratch_operands = 1 : i64, tpu.core_type = #tpu.core_type<tc>, window_params = [{transform_indices = @transform_0, window_bounds = array<i64: 1, 16, 1024>}, {pipeline_mode = #tpu.pipeline_mode<synchronous>, transform_indices = @transform_1, window_bounds = array<i64: 1024, 128>}, {pipeline_mode = #tpu.pipeline_mode<synchronous>, transform_indices = @transform_2, window_bounds = array<i64: 1, 128>}, {pipeline_mode = #tpu.pipeline_mode<synchronous>, transform_indices = @transform_3, window_bounds = array<i64: 2048, 128>}, {pipeline_mode = #tpu.pipeline_mode<synchronous>, transform_indices = @transform_4, window_bounds = array<i64: 1, 128>}, {transform_indices = @transform_5, window_bounds = array<i64: 1, 1, 128>}]} {
    %c0 = arith.constant 0 : index
    %c0_0 = arith.constant 0 : index
    %c0_1 = arith.constant 0 : index
    %0 = vector.load %arg1[%c0, %c0_0, %c0_1] : memref<1x16x1024xbf16, #tpu.memory_space<vmem>>, vector<1x16x1024xbf16>
    %1 = vector.shape_cast %0 : vector<1x16x1024xbf16> to vector<16x1024xbf16>
    %c0_2 = arith.constant 0 : index
    %c0_3 = arith.constant 0 : index
    %2 = vector.load %arg2[%c0_2, %c0_3] : memref<1024x128xbf16, #tpu.memory_space<vmem>>, vector<1024x128xbf16>
    %cst = arith.constant dense<0.000000e+00> : vector<16x128xf32>
    %3 = tpu.matmul %1, %2, %cst {dimension_numbers = #tpu.dot_dimension_numbers<[1], [0], [0], [1], [0, 0, 1, 1], [], []>} : vector<16x1024xbf16>, vector<1024x128xbf16>, vector<16x128xf32> -> vector<16x128xf32>
    %c0_4 = arith.constant 0 : index
    %c0_5 = arith.constant 0 : index
    %4 = vector.load %arg3[%c0_4, %c0_5] : memref<1x128xf32, #tpu.memory_space<vmem>>, vector<1x128xf32>
    %5 = vector.broadcast %4 : vector<1x128xf32> to vector<16x128xf32>
    %6 = arith.addf %3, %5 : vector<16x128xf32>
    %cst_6 = arith.constant 0.000000e+00 : f32
    %7 = vector.broadcast %cst_6 : f32 to vector<16x128xf32>
    %8 = arith.maximumf %6, %7 : vector<16x128xf32>
    %9 = arith.truncf %8 : vector<16x128xf32> to vector<16x128xbf16>
    %10 = vector.extract_strided_slice %9 {offsets = [0, 0], sizes = [1, 128], strides = [1, 1]} : vector<16x128xbf16> to vector<1x128xbf16>
    %c0_7 = arith.constant 0 : index
    %c0_8 = arith.constant 0 : index
    %11 = vector.load %arg7[%c0_7, %c0_8] : memref<1x2048xbf16, #tpu.memory_space<vmem>>, vector<1x128xbf16>
    tpu.vector_store %arg7[%c0_7, %c0_8], %10 {strides = array<i32>} : memref<1x2048xbf16, #tpu.memory_space<vmem>>, vector<1x128xbf16>,
    %12 = vector.extract_strided_slice %9 {offsets = [1, 0], sizes = [1, 128], strides = [1, 1]} : vector<16x128xbf16> to vector<1x128xbf16>
    %c0_9 = arith.constant 0 : index
    %c128 = arith.constant 128 : index
    %13 = vector.load %arg7[%c0_9, %c128] : memref<1x2048xbf16, #tpu.memory_space<vmem>>, vector<1x128xbf16>
    tpu.vector_store %arg7[%c0_9, %c128], %12 {strides = array<i32>} : memref<1x2048xbf16, #tpu.memory_space<vmem>>, vector<1x128xbf16>,
    %14 = vector.extract_strided_slice %9 {offsets = [2, 0], sizes = [1, 128], strides = [1, 1]} : vector<16x128xbf16> to vector<1x128xbf16>
    %c0_10 = arith.constant 0 : index
    %c256 = arith.constant 256 : index
    %15 = vector.load %arg7[%c0_10, %c256] : memref<1x2048xbf16, #tpu.memory_space<vmem>>, vector<1x128xbf16>
    tpu.vector_store %arg7[%c0_10, %c256], %14 {strides = array<i32>} : memref<1x2048xbf16, #tpu.memory_space<vmem>>, vector<1x128xbf16>,
    %16 = vector.extract_strided_slice %9 {offsets = [3, 0], sizes = [1, 128], strides = [1, 1]} : vector<16x128xbf16> to vector<1x128xbf16>
    %c0_11 = arith.constant 0 : index
    %c384 = arith.constant 384 : index
    %17 = vector.load %arg7[%c0_11, %c384] : memref<1x2048xbf16, #tpu.memory_space<vmem>>, vector<1x128xbf16>
    tpu.vector_store %arg7[%c0_11, %c384], %16 {strides = array<i32>} : memref<1x2048xbf16, #tpu.memory_space<vmem>>, vector<1x128xbf16>,
    %18 = vector.extract_strided_slice %9 {offsets = [4, 0], sizes = [1, 128], strides = [1, 1]} : vector<16x128xbf16> to vector<1x128xbf16>
    %c0_12 = arith.constant 0 : index
    %c512 = arith.constant 512 : index
    %19 = vector.load %arg7[%c0_12, %c512] : memref<1x2048xbf16, #tpu.memory_space<vmem>>, vector<1x128xbf16>
    tpu.vector_store %arg7[%c0_12, %c512], %18 {strides = array<i32>} : memref<1x2048xbf16, #tpu.memory_space<vmem>>, vector<1x128xbf16>,
    %20 = vector.extract_strided_slice %9 {offsets = [5, 0], sizes = [1, 128], strides = [1, 1]} : vector<16x128xbf16> to vector<1x128xbf16>
    %c0_13 = arith.constant 0 : index
    %c640 = arith.constant 640 : index
    %21 = vector.load %arg7[%c0_13, %c640] : memref<1x2048xbf16, #tpu.memory_space<vmem>>, vector<1x128xbf16>
    tpu.vector_store %arg7[%c0_13, %c640], %20 {strides = array<i32>} : memref<1x2048xbf16, #tpu.memory_space<vmem>>, vector<1x128xbf16>,
    %22 = vector.extract_strided_slice %9 {offsets = [6, 0], sizes = [1, 128], strides = [1, 1]} : vector<16x128xbf16> to vector<1x128xbf16>
    %c0_14 = arith.constant 0 : index
    %c768 = arith.constant 768 : index
    %23 = vector.load %arg7[%c0_14, %c768] : memref<1x2048xbf16, #tpu.memory_space<vmem>>, vector<1x128xbf16>
    tpu.vector_store %arg7[%c0_14, %c768], %22 {strides = array<i32>} : memref<1x2048xbf16, #tpu.memory_space<vmem>>, vector<1x128xbf16>,
    %24 = vector.extract_strided_slice %9 {offsets = [7, 0], sizes = [1, 128], strides = [1, 1]} : vector<16x128xbf16> to vector<1x128xbf16>
    %c0_15 = arith.constant 0 : index
    %c896 = arith.constant 896 : index
    %25 = vector.load %arg7[%c0_15, %c896] : memref<1x2048xbf16, #tpu.memory_space<vmem>>, vector<1x128xbf16>
    tpu.vector_store %arg7[%c0_15, %c896], %24 {strides = array<i32>} : memref<1x2048xbf16, #tpu.memory_space<vmem>>, vector<1x128xbf16>,
    %26 = vector.extract_strided_slice %9 {offsets = [8, 0], sizes = [1, 128], strides = [1, 1]} : vector<16x128xbf16> to vector<1x128xbf16>
    %c0_16 = arith.constant 0 : index
    %c1024 = arith.constant 1024 : index
    %27 = vector.load %arg7[%c0_16, %c1024] : memref<1x2048xbf16, #tpu.memory_space<vmem>>, vector<1x128xbf16>
    tpu.vector_store %arg7[%c0_16, %c1024], %26 {strides = array<i32>} : memref<1x2048xbf16, #tpu.memory_space<vmem>>, vector<1x128xbf16>,
    %28 = vector.extract_strided_slice %9 {offsets = [9, 0], sizes = [1, 128], strides = [1, 1]} : vector<16x128xbf16> to vector<1x128xbf16>
    %c0_17 = arith.constant 0 : index
    %c1152 = arith.constant 1152 : index
    %29 = vector.load %arg7[%c0_17, %c1152] : memref<1x2048xbf16, #tpu.memory_space<vmem>>, vector<1x128xbf16>
    tpu.vector_store %arg7[%c0_17, %c1152], %28 {strides = array<i32>} : memref<1x2048xbf16, #tpu.memory_space<vmem>>, vector<1x128xbf16>,
    %30 = vector.extract_strided_slice %9 {offsets = [10, 0], sizes = [1, 128], strides = [1, 1]} : vector<16x128xbf16> to vector<1x128xbf16>
    %c0_18 = arith.constant 0 : index
    %c1280 = arith.constant 1280 : index
    %31 = vector.load %arg7[%c0_18, %c1280] : memref<1x2048xbf16, #tpu.memory_space<vmem>>, vector<1x128xbf16>
    tpu.vector_store %arg7[%c0_18, %c1280], %30 {strides = array<i32>} : memref<1x2048xbf16, #tpu.memory_space<vmem>>, vector<1x128xbf16>,
    %32 = vector.extract_strided_slice %9 {offsets = [11, 0], sizes = [1, 128], strides = [1, 1]} : vector<16x128xbf16> to vector<1x128xbf16>
    %c0_19 = arith.constant 0 : index
    %c1408 = arith.constant 1408 : index
    %33 = vector.load %arg7[%c0_19, %c1408] : memref<1x2048xbf16, #tpu.memory_space<vmem>>, vector<1x128xbf16>
    tpu.vector_store %arg7[%c0_19, %c1408], %32 {strides = array<i32>} : memref<1x2048xbf16, #tpu.memory_space<vmem>>, vector<1x128xbf16>,
    %34 = vector.extract_strided_slice %9 {offsets = [12, 0], sizes = [1, 128], strides = [1, 1]} : vector<16x128xbf16> to vector<1x128xbf16>
    %c0_20 = arith.constant 0 : index
    %c1536 = arith.constant 1536 : index
    %35 = vector.load %arg7[%c0_20, %c1536] : memref<1x2048xbf16, #tpu.memory_space<vmem>>, vector<1x128xbf16>
    tpu.vector_store %arg7[%c0_20, %c1536], %34 {strides = array<i32>} : memref<1x2048xbf16, #tpu.memory_space<vmem>>, vector<1x128xbf16>,
    %36 = vector.extract_strided_slice %9 {offsets = [13, 0], sizes = [1, 128], strides = [1, 1]} : vector<16x128xbf16> to vector<1x128xbf16>
    %c0_21 = arith.constant 0 : index
    %c1664 = arith.constant 1664 : index
    %37 = vector.load %arg7[%c0_21, %c1664] : memref<1x2048xbf16, #tpu.memory_space<vmem>>, vector<1x128xbf16>
    tpu.vector_store %arg7[%c0_21, %c1664], %36 {strides = array<i32>} : memref<1x2048xbf16, #tpu.memory_space<vmem>>, vector<1x128xbf16>,
    %38 = vector.extract_strided_slice %9 {offsets = [14, 0], sizes = [1, 128], strides = [1, 1]} : vector<16x128xbf16> to vector<1x128xbf16>
    %c0_22 = arith.constant 0 : index
    %c1792 = arith.constant 1792 : index
    %39 = vector.load %arg7[%c0_22, %c1792] : memref<1x2048xbf16, #tpu.memory_space<vmem>>, vector<1x128xbf16>
    tpu.vector_store %arg7[%c0_22, %c1792], %38 {strides = array<i32>} : memref<1x2048xbf16, #tpu.memory_space<vmem>>, vector<1x128xbf16>,
    %40 = vector.extract_strided_slice %9 {offsets = [15, 0], sizes = [1, 128], strides = [1, 1]} : vector<16x128xbf16> to vector<1x128xbf16>
    %c0_23 = arith.constant 0 : index
    %c1920 = arith.constant 1920 : index
    %41 = vector.load %arg7[%c0_23, %c1920] : memref<1x2048xbf16, #tpu.memory_space<vmem>>, vector<1x128xbf16>
    tpu.vector_store %arg7[%c0_23, %c1920], %40 {strides = array<i32>} : memref<1x2048xbf16, #tpu.memory_space<vmem>>, vector<1x128xbf16>,
    %c0_24 = arith.constant 0 : index
    %c0_25 = arith.constant 0 : index
    %42 = vector.load %arg7[%c0_24, %c0_25] : memref<1x2048xbf16, #tpu.memory_space<vmem>>, vector<1x2048xbf16>
    %c0_26 = arith.constant 0 : index
    %c0_27 = arith.constant 0 : index
    %43 = vector.load %arg4[%c0_26, %c0_27] : memref<2048x128xbf16, #tpu.memory_space<vmem>>, vector<2048x128xbf16>
    %cst_28 = arith.constant dense<0.000000e+00> : vector<1x128xf32>
    %44 = tpu.matmul %42, %43, %cst_28 {dimension_numbers = #tpu.dot_dimension_numbers<[1], [0], [0], [1], [0, 0, 1, 1], [], []>} : vector<1x2048xbf16>, vector<2048x128xbf16>, vector<1x128xf32> -> vector<1x128xf32>
    %c0_29 = arith.constant 0 : index
    %c0_30 = arith.constant 0 : index
    %45 = vector.load %arg5[%c0_29, %c0_30] : memref<1x128xf32, #tpu.memory_space<vmem>>, vector<1x128xf32>
    %46 = arith.addf %44, %45 : vector<1x128xf32>
    %c0_31 = arith.constant 0 : index
    %c0_32 = arith.constant 0 : index
    %c0_33 = arith.constant 0 : index
    %47 = vector.load %arg6[%c0_31, %c0_32, %c0_33] : memref<1x1x128xf32, #tpu.memory_space<vmem>>, vector<1x1x128xf32>
    %48 = vector.shape_cast %47 : vector<1x1x128xf32> to vector<1x128xf32>
    %49 = vector.shape_cast %46 : vector<1x128xf32> to vector<1x1x128xf32>
    tpu.vector_store %arg6[%c0_31, %c0_32, %c0_33], %49 {strides = array<i32>} : memref<1x1x128xf32, #tpu.memory_space<vmem>>, vector<1x1x128xf32>,
    return
  }
  func.func @transform_0(%arg0: i32) -> (i32, i32, i32) {
    %c0_i32 = arith.constant 0 : i32
    %c0_i32_0 = arith.constant 0 : i32
    %c0_i32_1 = arith.constant 0 : i32
    return %arg0, %c0_i32, %c0_i32_0 : i32, i32, i32
  }
  func.func @transform_1(%arg0: i32) -> (i32, i32) {
    %c0_i32 = arith.constant 0 : i32
    %c0_i32_0 = arith.constant 0 : i32
    %c0_i32_1 = arith.constant 0 : i32
    return %c0_i32, %c0_i32_0 : i32, i32
  }
  func.func @transform_2(%arg0: i32) -> (i32, i32) {
    %c0_i32 = arith.constant 0 : i32
    %c0_i32_0 = arith.constant 0 : i32
    %c0_i32_1 = arith.constant 0 : i32
    return %c0_i32, %c0_i32_0 : i32, i32
  }
  func.func @transform_3(%arg0: i32) -> (i32, i32) {
    %c0_i32 = arith.constant 0 : i32
    %c0_i32_0 = arith.constant 0 : i32
    %c0_i32_1 = arith.constant 0 : i32
    return %c0_i32, %c0_i32_0 : i32, i32
  }
  func.func @transform_4(%arg0: i32) -> (i32, i32) {
    %c0_i32 = arith.constant 0 : i32
    %c0_i32_0 = arith.constant 0 : i32
    %c0_i32_1 = arith.constant 0 : i32
    return %c0_i32, %c0_i32_0 : i32, i32
  }
  func.func @transform_5(%arg0: i32) -> (i32, i32, i32) {
    %c0_i32 = arith.constant 0 : i32
    %c0_i32_0 = arith.constant 0 : i32
    %c0_i32_1 = arith.constant 0 : i32
    return %arg0, %c0_i32, %c0_i32_0 : i32, i32, i32
  }
}

</mosaic_0001>

<llo_original>
// kernel: encoder_forward.2
$region0: #{encoder_forward.2}
  #allocation0 [shape = 'u32[]', space=smem, size = 0x4, offset = 0x4, fixed_abs, tag = 'smem constant byte address 0x4 - core index']
  #allocation1 [shape = 'u32[144,128]{1,0:T(1,128)}', space=vmem, size = 0x12000, scoped, tag = 'internal scratch']
  #allocation2 [shape = 'bf16[1,4,9,17,32]{4,3,2,1,0:T(8,128)(2,1)}', space=vmem, size = 0x36000, scoped, tag = 'scratch operand']
  %s0 = inlined_call_operand.vmem [shape: bf16[2,256,48], index: 0, kind: input, shape index: {}]
  %s1 = inlined_call_operand.vmem [shape: bf16[48,32], index: 1, kind: input, shape index: {}]
  %s2 = inlined_call_operand.vmem [shape: f32[1,32], index: 2, kind: input, shape index: {}]
  %s3 = inlined_call_operand.vmem [shape: bf16[512,64], index: 3, kind: input, shape index: {}]
  %s4 = inlined_call_operand.vmem [shape: f32[1,64], index: 4, kind: input, shape index: {}]
  %s5 = inlined_call_operand.vmem [shape: bf16[2,8,8,64], index: 5, kind: output, shape index: {}]
  %s6 = sld [smem:[#allocation0]]
  $region53: #{encoder_forward.2} parent=0
    _
  %s8 = ssub.s32 1, %s6
  %s9 = scalar_select 0, %s8, %s6
  loop: start=0, step=1, limit=4
  $region2: #{encoder_forward.2} parent=0 // loop_pre_header
    _
  $region3: #{encoder_forward.2} parent=0 // loop_header
    %s11 = sphi 0, %s15
    %p12 = scmp.ge.s32.totalorder %s11, 4
    %s21 = sphi 0, %s23
    %s24 = sphi 0, %s21
    %s25 = sphi 0, %s24
    %s41 = sphi 0, %s25
    %s45 = sphi 0, %s45
    %s47 = sphi 0, %s45
    %s48 = sphi 0, %s47
    %s62 = sphi 0, %s48
    %s66 = sphi 0, %s66
    %s68 = sphi 0, %s66
    %s69 = sphi 0, %s68
    %s83 = sphi 0, %s69
    %s87 = sphi 0, %s87
    %s89 = sphi 0, %s87
    %s90 = sphi 0, %s89
    %s104 = sphi 0, %s90
    %s108 = sphi 0, %s108
    %s110 = sphi 0, %s108
    %s111 = sphi 0, %s110
    %s125 = sphi 0, %s111
    %s131 = sphi 0, %s133
    %s134 = sphi 0, %s131
    %s135 = sphi 0, %s134
    %s151 = sphi 0, %s135
  $region4: #{encoder_forward.2} parent=0 // loop_header_branch
    %14 = sbr.rel (%p12) target = $region8
  $region5: #{encoder_forward.2} parent=0 // loop_body
    %s16 = ssub.s32 %s11, 1
    %s17 = ssub.s32 %s11, 2
    %s18 = sadd.s32 %s11, 1
    %s19 = ssub.s32 %s11, %s18
    %p20 = scmp.eq.s32.totalorder %s19, 0
    %s22 = sadd.s32 %s21, 1
    %s23 = scalar_select %p20, %s21, %s22
    %p26 = pneg %p20
    %p27 = scmp.eq.s32.totalorder %s11, 1
    %p28 = por %p26, %p27
    %p29 = scmp.ne.s32.totalorder %s21, %s24
    %p30 = scmp.eq.s32.totalorder %s11, 0
    %p31 = por %p29, %p30
    %p32 = scmp.ne.s32.totalorder %s21, %s24
    %p33 = scmp.eq.s32.totalorder %s16, 1
    %p34 = por %p32, %p33
    %p35 = scmp.ne.s32.totalorder %s24, %s25
    %p36 = scmp.eq.s32.totalorder %s16, 0
    %p37 = por %p35, %p36
    %p38 = scmp.ne.s32.totalorder %s24, %s25
    %p39 = scmp.eq.s32.totalorder %s17, 1
    %p40 = por %p38, %p39
    %p42 = scmp.ne.s32.totalorder %s25, %s41
    %p43 = scmp.eq.s32.totalorder %s17, 0
    %p44 = por %p42, %p43
    %s46 = sadd.s32 %s45, 1
    %p49 = scmp.eq.s32.totalorder %s11, 1
    %p50 = scmp.ne.s32.totalorder %s45, %s47
    %p51 = scmp.eq.s32.totalorder %s11, 0
    %p52 = por %p50, %p51
    %p53 = scmp.ne.s32.totalorder %s45, %s47
    %p54 = scmp.eq.s32.totalorder %s16, 1
    %p55 = por %p53, %p54
    %p56 = scmp.ne.s32.totalorder %s47, %s48
    %p57 = scmp.eq.s32.totalorder %s16, 0
    %p58 = por %p56, %p57
    %p59 = scmp.ne.s32.totalorder %s47, %s48
    %p60 = scmp.eq.s32.totalorder %s17, 1
    %p61 = por %p59, %p60
    %p63 = scmp.ne.s32.totalorder %s48, %s62
    %p64 = scmp.eq.s32.totalorder %s17, 0
    %p65 = por %p63, %p64
    %s67 = sadd.s32 %s66, 1
    %p70 = scmp.eq.s32.totalorder %s11, 1
    %p71 = scmp.ne.s32.totalorder %s66, %s68
    %p72 = scmp.eq.s32.totalorder %s11, 0
    %p73 = por %p71, %p72
    %p74 = scmp.ne.s32.totalorder %s66, %s68
    %p75 = scmp.eq.s32.totalorder %s16, 1
    %p76 = por %p74, %p75
    %p77 = scmp.ne.s32.totalorder %s68, %s69
    %p78 = scmp.eq.s32.totalorder %s16, 0
    %p79 = por %p77, %p78
    %p80 = scmp.ne.s32.totalorder %s68, %s69
    %p81 = scmp.eq.s32.totalorder %s17, 1
    %p82 = por %p80, %p81
    %p84 = scmp.ne.s32.totalorder %s69, %s83
    %p85 = scmp.eq.s32.totalorder %s17, 0
    %p86 = por %p84, %p85
    %s88 = sadd.s32 %s87, 1
    %p91 = scmp.eq.s32.totalorder %s11, 1
    %p92 = scmp.ne.s32.totalorder %s87, %s89
    %p93 = scmp.eq.s32.totalorder %s11, 0
    %p94 = por %p92, %p93
    %p95 = scmp.ne.s32.totalorder %s87, %s89
    %p96 = scmp.eq.s32.totalorder %s16, 1
    %p97 = por %p95, %p96
    %p98 = scmp.ne.s32.totalorder %s89, %s90
    %p99 = scmp.eq.s32.totalorder %s16, 0
    %p100 = por %p98, %p99
    %p101 = scmp.ne.s32.totalorder %s89, %s90
    %p102 = scmp.eq.s32.totalorder %s17, 1
    %p103 = por %p101, %p102
    %p105 = scmp.ne.s32.totalorder %s90, %s104
    %p106 = scmp.eq.s32.totalorder %s17, 0
    %p107 = por %p105, %p106
    %s109 = sadd.s32 %s108, 1
    %p112 = scmp.eq.s32.totalorder %s11, 1
    %p113 = scmp.ne.s32.totalorder %s108, %s110
    %p114 = scmp.eq.s32.totalorder %s11, 0
    %p115 = por %p113, %p114
    %p116 = scmp.ne.s32.totalorder %s108, %s110
    %p117 = scmp.eq.s32.totalorder %s16, 1
    %p118 = por %p116, %p117
    %p119 = scmp.ne.s32.totalorder %s110, %s111
    %p120 = scmp.eq.s32.totalorder %s16, 0
    %p121 = por %p119, %p120
    %p122 = scmp.ne.s32.totalorder %s110, %s111
    %p123 = scmp.eq.s32.totalorder %s17, 1
    %p124 = por %p122, %p123
    %p126 = scmp.ne.s32.totalorder %s111, %s125
    %p127 = scmp.eq.s32.totalorder %s17, 0
    %p128 = por %p126, %p127
    %s129 = ssub.s32 %s11, %s18
    %p130 = scmp.eq.s32.totalorder %s129, 0
    %s132 = sadd.s32 %s131, 1
    %s133 = scalar_select %p130, %s131, %s132
    %p136 = pneg %p130
    %p137 = scmp.eq.s32.totalorder %s11, 1
    %p138 = por %p136, %p137
    %p139 = scmp.ne.s32.totalorder %s131, %s134
    %p140 = scmp.eq.s32.totalorder %s11, 0
    %p141 = por %p139, %p140
    %p142 = scmp.ne.s32.totalorder %s131, %s134
    %p143 = scmp.eq.s32.totalorder %s16, 1
    %p144 = por %p142, %p143
    %p145 = scmp.ne.s32.totalorder %s134, %s135
    %p146 = scmp.eq.s32.totalorder %s16, 0
    %p147 = por %p145, %p146
    %p148 = scmp.ne.s32.totalorder %s134, %s135
    %p149 = scmp.eq.s32.totalorder %s17, 1
    %p150 = por %p148, %p149
    %p152 = scmp.ne.s32.totalorder %s135, %s151
    %p153 = scmp.eq.s32.totalorder %s17, 0
    %p154 = por %p152, %p153
    %p155 = scmp.le.s32.totalorder 1, %s11
    %p156 = scmp.lt.s32.totalorder %s11, 3
    %p157 = pnand %p155, %p156
    %p158 = pneg %p157
    // Predicated region
    $region9: #{encoder_forward.2} parent=5 // pred_check
      _
    $region10: #{encoder_forward.2} parent=5 // pred_check_branch
      %160 = sbr.rel (%p157) target = $region12
    $region11: #{encoder_forward.2} parent=5 // pred_region
      %s161 = ssub.s32 %s11, 1
      // Predicated region
      $region13: #{encoder_forward.2} parent=11 // pred_check
        %p162 = pneg %p58
      $region14: #{encoder_forward.2} parent=11 // pred_check_branch
        %164 = sbr.rel (%p162) target = $region16
      $region15: #{encoder_forward.2} parent=11 // pred_region
        _
      $region16: #{encoder_forward.2} parent=11 // pred_fallthru
        _
      // Predicated region
      $region17: #{encoder_forward.2} parent=11 // pred_check
        %p165 = pneg %p79
      $region18: #{encoder_forward.2} parent=11 // pred_check_branch
        %167 = sbr.rel (%p165) target = $region20
      $region19: #{encoder_forward.2} parent=11 // pred_region
        _
      $region20: #{encoder_forward.2} parent=11 // pred_fallthru
        _
      // Predicated region
      $region21: #{encoder_forward.2} parent=11 // pred_check
        %p168 = pneg %p100
      $region22: #{encoder_forward.2} parent=11 // pred_check_branch
        %170 = sbr.rel (%p168) target = $region24
      $region23: #{encoder_forward.2} parent=11 // pred_region
        _
      $region24: #{encoder_forward.2} parent=11 // pred_fallthru
        _
      // Predicated region
      $region25: #{encoder_forward.2} parent=11 // pred_check
        %p171 = pneg %p121
      $region26: #{encoder_forward.2} parent=11 // pred_check_branch
        %173 = sbr.rel (%p171) target = $region28
      $region27: #{encoder_forward.2} parent=11 // pred_region
        _
      $region28: #{encoder_forward.2} parent=11 // pred_fallthru
        _
    $region12: #{encoder_forward.2} parent=5 // pred_fallthru
      _
    %p174 = scmp.lt.s32.totalorder %s11, 2
    // Predicated region
    $region29: #{encoder_forward.2} parent=5 // pred_check
      %p175 = pneg %p174
    $region30: #{encoder_forward.2} parent=5 // pred_check_branch
      %177 = sbr.rel (%p175) target = $region32
    $region31: #{encoder_forward.2} parent=5 // pred_region
      // Predicated region
      $region33: #{encoder_forward.2} parent=31 // pred_check
        %p178 = pneg %p31
      $region34: #{encoder_forward.2} parent=31 // pred_check_branch
        %180 = sbr.rel (%p178) target = $region36
      $region35: #{encoder_forward.2} parent=31 // pred_region
        %p181 = scmp.lt.s32.totalorder %s11, 1
        %s182 = scalar_select %p181, %s11, 1
        %s183 = smul.addr %s182, 32
        %s184 = smul.addr %s183, 4
        %s185 = scalar_lea.vmem %s0, %s184
      $region36: #{encoder_forward.2} parent=31 // pred_fallthru
        _
    $region32: #{encoder_forward.2} parent=5 // pred_fallthru
      _
    %p186 = scmp.le.s32.totalorder 1, %s11
    %p187 = scmp.lt.s32.totalorder %s11, 3
    %p188 = pnand %p186, %p187
    %p189 = pneg %p188
    // Predicated region
    $region37: #{encoder_forward.2} parent=5 // pred_check
      _
    $region38: #{encoder_forward.2} parent=5 // pred_check_branch
      %191 = sbr.rel (%p188) target = $region40
    $region39: #{encoder_forward.2} parent=5 // pred_region
      %s192 = ssub.s32 %s11, 1
      %p193 = scmp.lt.s32.totalorder %s16, 1
      %s194 = scalar_select %p193, %s16, 1
      %s195 = smul.addr %s194, 32
      %s196 = smul.addr %s195, 4
      %s197 = scalar_lea.vmem %s0, %s196
      %p198 = pneg %p37
      %p199 = pneg %p34
      %p200 = pneg %p58
      %p201 = pneg %p55
      %p202 = pneg %p79
      %p203 = pneg %p76
      %p204 = pneg %p100
      %p205 = pneg %p97
      %p206 = pneg %p121
      %p207 = pneg %p118
      %p208 = pneg %p147
      %p209 = pneg %p144
      %p210 = scmp.lt.s32.totalorder %s16, 1
      %s211 = scalar_select %p210, %s16, 1
      %s212 = smul.addr %s211, 8
      %s213 = smul.addr %s212, 4
      %s214 = scalar_lea.vmem %s5, %s213
      %p215 = scmp.lt.s32.totalorder %s16, 1
      %s216 = scalar_select %p215, %s16, 1
      %s217 = smul.addr %s216, 32
      %s218 = smul.addr %s217, 4
      %s219 = scalar_lea.vmem %s0, %s218
      %p220 = scmp.lt.s32.totalorder %s16, 1
      %s221 = scalar_select %p220, %s16, 1
      %s222 = smul.addr %s221, 8
      %s223 = smul.addr %s222, 4
      %s224 = scalar_lea.vmem %s5, %s223
      %v226 = vld [vmem:[%s219] sm:$0xf]
      %v227 = vld [vmem:[%s219 + $0x4] sm:$0xf]
      %v228 = vld [vmem:[%s219 + $0x8] sm:$0xf]
      %v229 = vld [vmem:[%s219 + $0xc] sm:$0xf]
      %v230 = vld [vmem:[%s219 + $0x10] sm:$0xf]
      %v231 = vld [vmem:[%s219 + $0x14] sm:$0xf]
      %v232 = vld [vmem:[%s219 + $0x18] sm:$0xf]
      %v233 = vld [vmem:[%s219 + $0x1c] sm:$0xf]
      %v234 = vld [vmem:[%s219 + $0x20] sm:$0xf]
      %v235 = vld [vmem:[%s219 + $0x24] sm:$0xf]
      %v236 = vld [vmem:[%s219 + $0x28] sm:$0xf]
      %v237 = vld [vmem:[%s219 + $0x2c] sm:$0xf]
      %v238 = vld [vmem:[%s219 + $0x30] sm:$0xf]
      %v239 = vld [vmem:[%s219 + $0x34] sm:$0xf]
      %v240 = vld [vmem:[%s219 + $0x38] sm:$0xf]
      %v241 = vld [vmem:[%s219 + $0x3c] sm:$0xf]
      %v242 = vld [vmem:[%s219 + $0x40] sm:$0xf]
      %v243 = vld [vmem:[%s219 + $0x44] sm:$0xf]
      %v244 = vld [vmem:[%s219 + $0x48] sm:$0xf]
      %v245 = vld [vmem:[%s219 + $0x4c] sm:$0xf]
      %v246 = vld [vmem:[%s219 + $0x50] sm:$0xf]
      %v247 = vld [vmem:[%s219 + $0x54] sm:$0xf]
      %v248 = vld [vmem:[%s219 + $0x58] sm:$0xf]
      %v249 = vld [vmem:[%s219 + $0x5c] sm:$0xf]
      %v250 = vld [vmem:[%s219 + $0x60] sm:$0xf]
      %v251 = vld [vmem:[%s219 + $0x64] sm:$0xf]
      %v252 = vld [vmem:[%s219 + $0x68] sm:$0xf]
      %v253 = vld [vmem:[%s219 + $0x6c] sm:$0xf]
      %v254 = vld [vmem:[%s219 + $0x70] sm:$0xf]
      %v255 = vld [vmem:[%s219 + $0x74] sm:$0xf]
      %v256 = vld [vmem:[%s219 + $0x78] sm:$0xf]
      %v257 = vld [vmem:[%s219 + $0x7c] sm:$0xf]
      %v258 = vld [vmem:[%s1] sm:$0xf]
      %v259 = vld [vmem:[%s1 + $0x4] sm:$0xf]
      %v260 = vld [vmem:[%s1 + $0x8] sm:$0xf]
      %v261 = vld [vmem:[%s1 + $0xc] sm:$0xf]
      %v262 = vld [vmem:[%s1 + $0x10] sm:$0xf]
      %v263 = vld [vmem:[%s1 + $0x14] sm:$0xf]
      %v264 = vld [vmem:[%s2] sm:$0x1]
      %v266 = vlaneseq
      %v267 = vshrl.u32 %v266, 7
      %v268 = vsub.s32 0, %v267
      %v269 = vrot.slane %v264, %v268
      %v303 = vunpack.c.l.b16 %v226
      %v304 = vunpack.c.l.b16 %v227
      %v305 = vunpack.c.l.b16 %v228
      %v306 = vunpack.c.l.b16 %v229
      %v307 = vunpack.c.l.b16 %v230
      %v308 = vunpack.c.l.b16 %v231
      %v309 = vunpack.c.l.b16 %v232
      %v310 = vunpack.c.l.b16 %v233
      %v311 = vunpack.c.l.b16 %v234
      %v312 = vunpack.c.l.b16 %v235
      %v313 = vunpack.c.l.b16 %v236
      %v314 = vunpack.c.l.b16 %v237
      %v315 = vunpack.c.l.b16 %v238
      %v316 = vunpack.c.l.b16 %v239
      %v317 = vunpack.c.l.b16 %v240
      %v318 = vunpack.c.l.b16 %v241
      %v319 = vunpack.c.l.b16 %v242
      %v320 = vunpack.c.l.b16 %v243
      %v321 = vunpack.c.l.b16 %v244
      %v322 = vunpack.c.l.b16 %v245
      %v323 = vunpack.c.l.b16 %v246
      %v324 = vunpack.c.l.b16 %v247
      %v325 = vunpack.c.l.b16 %v248
      %v326 = vunpack.c.l.b16 %v249
      %v327 = vunpack.c.l.b16 %v250
      %v328 = vunpack.c.l.b16 %v251
      %v329 = vunpack.c.l.b16 %v252
      %v330 = vunpack.c.l.b16 %v253
      %v331 = vunpack.c.l.b16 %v254
      %v332 = vunpack.c.l.b16 %v255
      %v333 = vunpack.c.l.b16 %v256
      %v334 = vunpack.c.l.b16 %v257
      %v335 = vpack.c.b16 %v304, %v303
      %v336 = vpack.c.b16 %v306, %v305
      %v337 = vpack.c.b16 %v308, %v307
      %v338 = vpack.c.b16 %v310, %v309
      %v339 = vpack.c.b16 %v312, %v311
      %v340 = vpack.c.b16 %v314, %v313
      %v341 = vpack.c.b16 %v316, %v315
      %v342 = vpack.c.b16 %v318, %v317
      %v343 = vpack.c.b16 %v320, %v319
      %v344 = vpack.c.b16 %v322, %v321
      %v345 = vpack.c.b16 %v324, %v323
      %v346 = vpack.c.b16 %v326, %v325
      %v347 = vpack.c.b16 %v328, %v327
      %v348 = vpack.c.b16 %v330, %v329
      %v349 = vpack.c.b16 %v332, %v331
      %v350 = vpack.c.b16 %v334, %v333
      %v357 = vunpack.c.l.b16 %v258
      %v358 = vunpack.c.l.b16 %v259
      %v359 = vunpack.c.l.b16 %v260
      %v360 = vunpack.c.l.b16 %v261
      %v361 = vunpack.c.l.b16 %v262
      %v362 = vunpack.c.l.b16 %v263
      %v363 = vpack.c.b16 %v358, %v357
      %v364 = vpack.c.b16 %v360, %v359
      %v365 = vpack.c.b16 %v362, %v361
      %vm369 = vcmask 392192
      %v371 = vsel %vm369, %v335, 0
      %v374 = vsel %vm369, %v336, 0
      %v377 = vsel %vm369, %v337, 0
      %v380 = vsel %vm369, %v338, 0
      %v383 = vsel %vm369, %v339, 0
      %v386 = vsel %vm369, %v340, 0
      %v389 = vsel %vm369, %v341, 0
      %v392 = vsel %vm369, %v342, 0
      %v395 = vsel %vm369, %v343, 0
      %v398 = vsel %vm369, %v344, 0
      %v401 = vsel %vm369, %v345, 0
      %v404 = vsel %vm369, %v346, 0
      %v407 = vsel %vm369, %v347, 0
      %v410 = vsel %vm369, %v348, 0
      %v413 = vsel %vm369, %v349, 0
      %v416 = vsel %vm369, %v350, 0
      %418 = vmatprep.subr.bf16.mxu0 0
      %419 = vmatpush1.bf16.msra.mxu0 0
      %420 = vmatprep.subr.bf16.mxu0 0
      %421 = vmatpush1.bf16.msra.mxu0 0
      %422 = vmatprep.subr.bf16.mxu0 0
      %423 = vmatpush1.bf16.msra.mxu0 0
      %424 = vmatprep.subr.bf16.mxu0 0
      %425 = vmatpush1.bf16.msra.mxu0 0
      %426 = vmatprep.subr.bf16.mxu0 0
      %427 = vmatpush1.bf16.msra.mxu0 0
      %428 = vmatprep.subr.bf16.mxu0 0
      %429 = vmatpush1.bf16.msra.mxu0 %v365
      %430 = vmatprep.subr.bf16.mxu0 0
      %431 = vmatpush1.bf16.msra.mxu0 %v364
      %432 = vmatprep.subr.bf16.mxu0 0
      %433 = vmatpush1.bf16.msra.mxu0 %v363
      %434 = vmatprep.subr.bf16.mxu0 0
      %435 = vmatpush2.bf16.msra.mxu0 0
      %436 = vmatprep.subr.bf16.mxu0 0
      %437 = vmatpush2.bf16.msra.mxu0 0
      %438 = vmatprep.subr.bf16.mxu0 0
      %439 = vmatpush2.bf16.msra.mxu0 0
      %440 = vmatprep.subr.bf16.mxu0 0
      %441 = vmatpush2.bf16.msra.mxu0 0
      %442 = vmatprep.subr.bf16.mxu0 0
      %443 = vmatpush2.bf16.msra.mxu0 0
      %444 = vmatprep.subr.bf16.mxu0 0
      %445 = vmatpush2.bf16.msra.mxu0 0
      %446 = vmatprep.subr.bf16.mxu0 0
      %447 = vmatpush2.bf16.msra.mxu0 0
      %448 = vmatprep.subr.bf16.mxu0 0
      %449 = vmatpush2.bf16.msra.mxu0 0
      %450 = vmatprep.mubr.bf16.mxu0 0
      %451 = vmatmul.mubr.bf16.gmra.mxu0 %v371
      %v452 = vpop.f32.mrf.mxu0
      %v453 = vadd.f32 %v269, %v452
      %v454 = vpop.f32.mrf.mxu0
      %v455 = vpop.f32.mrf.mxu0
      %v456 = vadd.f32 %v269, %v455
      %v457 = vpop.f32.mrf.mxu0
      %458 = vmatprep.mubr.bf16.mxu0 0
      %459 = vmatmul.mubr.bf16.gmra.mxu0 %v374
      %v460 = vpop.f32.mrf.mxu0
      %v461 = vadd.f32 %v269, %v460
      %v462 = vpop.f32.mrf.mxu0
      %v463 = vpop.f32.mrf.mxu0
      %v464 = vadd.f32 %v269, %v463
      %v465 = vpop.f32.mrf.mxu0
      %466 = vmatprep.mubr.bf16.mxu0 0
      %467 = vmatmul.mubr.bf16.gmra.mxu0 %v377
      %v468 = vpop.f32.mrf.mxu0
      %v469 = vadd.f32 %v269, %v468
      %v470 = vpop.f32.mrf.mxu0
      %v471 = vpop.f32.mrf.mxu0
      %v472 = vadd.f32 %v269, %v471
      %v473 = vpop.f32.mrf.mxu0
      %474 = vmatprep.mubr.bf16.mxu0 0
      %475 = vmatmul.mubr.bf16.gmra.mxu0 %v380
      %v476 = vpop.f32.mrf.mxu0
      %v477 = vadd.f32 %v269, %v476
      %v478 = vpop.f32.mrf.mxu0
      %v479 = vpop.f32.mrf.mxu0
      %v480 = vadd.f32 %v269, %v479
      %v481 = vpop.f32.mrf.mxu0
      %482 = vmatprep.mubr.bf16.mxu0 0
      %483 = vmatmul.mubr.bf16.gmra.mxu0 %v383
      %v484 = vpop.f32.mrf.mxu0
      %v485 = vadd.f32 %v269, %v484
      %v486 = vpop.f32.mrf.mxu0
      %v487 = vpop.f32.mrf.mxu0
      %v488 = vadd.f32 %v269, %v487
      %v489 = vpop.f32.mrf.mxu0
      %490 = vmatprep.mubr.bf16.mxu0 0
      %491 = vmatmul.mubr.bf16.gmra.mxu0 %v386
      %v492 = vpop.f32.mrf.mxu0
      %v493 = vadd.f32 %v269, %v492
      %v494 = vpop.f32.mrf.mxu0
      %v495 = vpop.f32.mrf.mxu0
      %v496 = vadd.f32 %v269, %v495
      %v497 = vpop.f32.mrf.mxu0
      %498 = vmatprep.mubr.bf16.mxu0 0
      %499 = vmatmul.mubr.bf16.gmra.mxu0 %v389
      %v500 = vpop.f32.mrf.mxu0
      %v501 = vadd.f32 %v269, %v500
      %v502 = vpop.f32.mrf.mxu0
      %v503 = vpop.f32.mrf.mxu0
      %v504 = vadd.f32 %v269, %v503
      %v505 = vpop.f32.mrf.mxu0
      %506 = vmatprep.mubr.bf16.mxu0 0
      %507 = vmatmul.mubr.bf16.gmra.mxu0 %v392
      %v508 = vpop.f32.mrf.mxu0
      %v509 = vadd.f32 %v269, %v508
      %v510 = vpop.f32.mrf.mxu0
      %v511 = vpop.f32.mrf.mxu0
      %v512 = vadd.f32 %v269, %v511
      %v513 = vpop.f32.mrf.mxu0
      %514 = vmatprep.mubr.bf16.mxu0 0
      %515 = vmatmul.mubr.bf16.gmra.mxu0 %v395
      %v516 = vpop.f32.mrf.mxu0
      %v517 = vadd.f32 %v269, %v516
      %v518 = vpop.f32.mrf.mxu0
      %v519 = vpop.f32.mrf.mxu0
      %v520 = vadd.f32 %v269, %v519
      %v521 = vpop.f32.mrf.mxu0
      %522 = vmatprep.mubr.bf16.mxu0 0
      %523 = vmatmul.mubr.bf16.gmra.mxu0 %v398
      %v524 = vpop.f32.mrf.mxu0
      %v525 = vadd.f32 %v269, %v524
      %v526 = vpop.f32.mrf.mxu0
      %v527 = vpop.f32.mrf.mxu0
      %v528 = vadd.f32 %v269, %v527
      %v529 = vpop.f32.mrf.mxu0
      %530 = vmatprep.mubr.bf16.mxu0 0
      %531 = vmatmul.mubr.bf16.gmra.mxu0 %v401
      %v532 = vpop.f32.mrf.mxu0
      %v533 = vadd.f32 %v269, %v532
      %v534 = vpop.f32.mrf.mxu0
      %v535 = vpop.f32.mrf.mxu0
      %v536 = vadd.f32 %v269, %v535
      %v537 = vpop.f32.mrf.mxu0
      %538 = vmatprep.mubr.bf16.mxu0 0
      %539 = vmatmul.mubr.bf16.gmra.mxu0 %v404
      %v540 = vpop.f32.mrf.mxu0
      %v541 = vadd.f32 %v269, %v540
      %v542 = vpop.f32.mrf.mxu0
      %v543 = vpop.f32.mrf.mxu0
      %v544 = vadd.f32 %v269, %v543
      %v545 = vpop.f32.mrf.mxu0
      %546 = vmatprep.mubr.bf16.mxu0 0
      %547 = vmatmul.mubr.bf16.gmra.mxu0 %v407
      %v548 = vpop.f32.mrf.mxu0
      %v549 = vadd.f32 %v269, %v548
      %v550 = vpop.f32.mrf.mxu0
      %v551 = vpop.f32.mrf.mxu0
      %v552 = vadd.f32 %v269, %v551
      %v553 = vpop.f32.mrf.mxu0
      %554 = vmatprep.mubr.bf16.mxu0 0
      %555 = vmatmul.mubr.bf16.gmra.mxu0 %v410
      %v556 = vpop.f32.mrf.mxu0
      %v557 = vadd.f32 %v269, %v556
      %v558 = vpop.f32.mrf.mxu0
      %v559 = vpop.f32.mrf.mxu0
      %v560 = vadd.f32 %v269, %v559
      %v561 = vpop.f32.mrf.mxu0
      %562 = vmatprep.mubr.bf16.mxu0 0
      %563 = vmatmul.mubr.bf16.gmra.mxu0 %v413
      %v564 = vpop.f32.mrf.mxu0
      %v565 = vadd.f32 %v269, %v564
      %v566 = vpop.f32.mrf.mxu0
      %v567 = vpop.f32.mrf.mxu0
      %v568 = vadd.f32 %v269, %v567
      %v569 = vpop.f32.mrf.mxu0
      %570 = vmatprep.mubr.bf16.mxu0 0
      %571 = vmatmul.mubr.bf16.gmra.mxu0 %v416
      %v572 = vpop.f32.mrf.mxu0
      %v573 = vadd.f32 %v269, %v572
      %v574 = vpop.f32.mrf.mxu0
      %v575 = vpop.f32.mrf.mxu0
      %v576 = vadd.f32 %v269, %v575
      %v577 = vpop.f32.mrf.mxu0
      %578 = vdwg.mxu0
      %v579 = vmax.f32 %v453, 0.0
      %v580 = vmax.f32 %v456, 0.0
      %v581 = vmax.f32 %v461, 0.0
      %v582 = vmax.f32 %v464, 0.0
      %v583 = vmax.f32 %v469, 0.0
      %v584 = vmax.f32 %v472, 0.0
      %v585 = vmax.f32 %v477, 0.0
      %v586 = vmax.f32 %v480, 0.0
      %v587 = vmax.f32 %v485, 0.0
      %v588 = vmax.f32 %v488, 0.0
      %v589 = vmax.f32 %v493, 0.0
      %v590 = vmax.f32 %v496, 0.0
      %v591 = vmax.f32 %v501, 0.0
      %v592 = vmax.f32 %v504, 0.0
      %v593 = vmax.f32 %v509, 0.0
      %v594 = vmax.f32 %v512, 0.0
      %v595 = vmax.f32 %v517, 0.0
      %v596 = vmax.f32 %v520, 0.0
      %v597 = vmax.f32 %v525, 0.0
      %v598 = vmax.f32 %v528, 0.0
      %v599 = vmax.f32 %v533, 0.0
      %v600 = vmax.f32 %v536, 0.0
      %v601 = vmax.f32 %v541, 0.0
      %v602 = vmax.f32 %v544, 0.0
      %v603 = vmax.f32 %v549, 0.0
      %v604 = vmax.f32 %v552, 0.0
      %v605 = vmax.f32 %v557, 0.0
      %v606 = vmax.f32 %v560, 0.0
      %v607 = vmax.f32 %v565, 0.0
      %v608 = vmax.f32 %v568, 0.0
      %v609 = vmax.f32 %v573, 0.0
      %v610 = vmax.f32 %v576, 0.0
      %v611 = vpack.c.bf16 %v580, %v579
      %v612 = vpack.c.bf16 %v582, %v581
      %v613 = vpack.c.bf16 %v584, %v583
      %v614 = vpack.c.bf16 %v586, %v585
      %v615 = vpack.c.bf16 %v588, %v587
      %v616 = vpack.c.bf16 %v590, %v589
      %v617 = vpack.c.bf16 %v592, %v591
      %v618 = vpack.c.bf16 %v594, %v593
      %v619 = vpack.c.bf16 %v596, %v595
      %v620 = vpack.c.bf16 %v598, %v597
      %v621 = vpack.c.bf16 %v600, %v599
      %v622 = vpack.c.bf16 %v602, %v601
      %v623 = vpack.c.bf16 %v604, %v603
      %v624 = vpack.c.bf16 %v606, %v605
      %v625 = vpack.c.bf16 %v608, %v607
      %v626 = vpack.c.bf16 %v610, %v609
      %vm627 = vcmask 257024
      %628 = vst.msk [vmem:[#allocation2] sm:$0xf] %vm627, 0
      %629 = vst.msk [vmem:[#allocation2 + $0x4] sm:$0xf] %vm627, 0
      %vm630 = vcmask 253952
      %vm631 = vsmask.f32 256
      %vm632 = vmand %vm630, %vm631
      %v633 = vld [vmem:[#allocation2 + $0x8] sm:$0x1]
      %v634 = vsel %vm632, 0, %v633
      %635 = vst [vmem:[#allocation2 + $0x8] sm:$0x1] %v634
      %636 = vst.msk [vmem:[#allocation2 + $0xc] sm:$0xf] %vm627, 0
      %637 = vst.msk [vmem:[#allocation2 + $0x10] sm:$0xf] %vm627, 0
      %v638 = vld [vmem:[#allocation2 + $0x14] sm:$0x1]
      %v639 = vsel %vm632, 0, %v638
      %640 = vst [vmem:[#allocation2 + $0x14] sm:$0x1] %v639
      %641 = vst.msk [vmem:[#allocation2 + $0x18] sm:$0xf] %vm627, 0
      %642 = vst.msk [vmem:[#allocation2 + $0x1c] sm:$0xf] %vm627, 0
      %v643 = vld [vmem:[#allocation2 + $0x20] sm:$0x1]
      %v644 = vsel %vm632, 0, %v643
      %645 = vst [vmem:[#allocation2 + $0x20] sm:$0x1] %v644
      %646 = vst.msk [vmem:[#allocation2 + $0x24] sm:$0xf] %vm627, 0
      %647 = vst.msk [vmem:[#allocation2 + $0x28] sm:$0xf] %vm627, 0
      %v648 = vld [vmem:[#allocation2 + $0x2c] sm:$0x1]
      %v649 = vsel %vm632, 0, %v648
      %650 = vst [vmem:[#allocation2 + $0x2c] sm:$0x1] %v649
      %651 = vst.msk [vmem:[#allocation2 + $0x30] sm:$0xf] %vm627, 0
      %652 = vst.msk [vmem:[#allocation2 + $0x34] sm:$0xf] %vm627, 0
      %v653 = vld [vmem:[#allocation2 + $0x38] sm:$0x1]
      %v654 = vsel %vm632, 0, %v653
      %655 = vst [vmem:[#allocation2 + $0x38] sm:$0x1] %v654
      %656 = vst.msk [vmem:[#allocation2 + $0x3c] sm:$0xf] %vm627, 0
      %657 = vst.msk [vmem:[#allocation2 + $0x40] sm:$0xf] %vm627, 0
      %v658 = vld [vmem:[#allocation2 + $0x44] sm:$0x1]
      %v659 = vsel %vm632, 0, %v658
      %660 = vst [vmem:[#allocation2 + $0x44] sm:$0x1] %v659
      %661 = vst.msk [vmem:[#allocation2 + $0x48] sm:$0xf] %vm627, 0
      %662 = vst.msk [vmem:[#allocation2 + $0x4c] sm:$0xf] %vm627, 0
      %v663 = vld [vmem:[#allocation2 + $0x50] sm:$0x1]
      %v664 = vsel %vm632, 0, %v663
      %665 = vst [vmem:[#allocation2 + $0x50] sm:$0x1] %v664
      %666 = vst.msk [vmem:[#allocation2 + $0x54] sm:$0xf] %vm627, 0
      %667 = vst.msk [vmem:[#allocation2 + $0x58] sm:$0xf] %vm627, 0
      %v668 = vld [vmem:[#allocation2 + $0x5c] sm:$0x1]
      %v669 = vsel %vm632, 0, %v668
      %670 = vst [vmem:[#allocation2 + $0x5c] sm:$0x1] %v669
      %671 = vst.msk [vmem:[#allocation2 + $0x60] sm:$0xf] %vm627, 0
      %672 = vst.msk [vmem:[#allocation2 + $0x64] sm:$0xf] %vm627, 0
      %v673 = vld [vmem:[#allocation2 + $0x68] sm:$0x1]
      %v674 = vsel %vm632, 0, %v673
      %675 = vst [vmem:[#allocation2 + $0x68] sm:$0x1] %v674
      %676 = vst.msk [vmem:[#allocation2 + $0x6c] sm:$0xf] %vm627, 0
      %677 = vst.msk [vmem:[#allocation2 + $0x70] sm:$0xf] %vm627, 0
      %v678 = vld [vmem:[#allocation2 + $0x74] sm:$0x1]
      %v679 = vsel %vm632, 0, %v678
      %680 = vst [vmem:[#allocation2 + $0x74] sm:$0x1] %v679
      %681 = vst.msk [vmem:[#allocation2 + $0x78] sm:$0xf] %vm627, 0
      %682 = vst.msk [vmem:[#allocation2 + $0x7c] sm:$0xf] %vm627, 0
      %v683 = vld [vmem:[#allocation2 + $0x80] sm:$0x1]
      %v684 = vsel %vm632, 0, %v683
      %685 = vst [vmem:[#allocation2 + $0x80] sm:$0x1] %v684
      %686 = vst.msk [vmem:[#allocation2 + $0x84] sm:$0xf] %vm627, 0
      %687 = vst.msk [vmem:[#allocation2 + $0x88] sm:$0xf] %vm627, 0
      %v688 = vld [vmem:[#allocation2 + $0x8c] sm:$0x1]
      %v689 = vsel %vm632, 0, %v688
      %690 = vst [vmem:[#allocation2 + $0x8c] sm:$0x1] %v689
      %691 = vst.msk [vmem:[#allocation2 + $0x90] sm:$0xf] %vm627, 0
      %692 = vst.msk [vmem:[#allocation2 + $0x94] sm:$0xf] %vm627, 0
      %v693 = vld [vmem:[#allocation2 + $0x98] sm:$0x1]
      %v694 = vsel %vm632, 0, %v693
      %695 = vst [vmem:[#allocation2 + $0x98] sm:$0x1] %v694
      %696 = vst.msk [vmem:[#allocation2 + $0x9c] sm:$0xf] %vm627, 0
      %697 = vst.msk [vmem:[#allocation2 + $0xa0] sm:$0xf] %vm627, 0
      %v698 = vld [vmem:[#allocation2 + $0xa4] sm:$0x1]
      %v699 = vsel %vm632, 0, %v698
      %700 = vst [vmem:[#allocation2 + $0xa4] sm:$0x1] %v699
      %701 = vst.msk [vmem:[#allocation2 + $0xa8] sm:$0xf] %vm627, 0
      %702 = vst.msk [vmem:[#allocation2 + $0xac] sm:$0xf] %vm627, 0
      %v703 = vld [vmem:[#allocation2 + $0xb0] sm:$0x1]
      %v704 = vsel %vm632, 0, %v703
      %705 = vst [vmem:[#allocation2 + $0xb0] sm:$0x1] %v704
      %706 = vst.msk [vmem:[#allocation2 + $0xb4] sm:$0xf] %vm627, 0
      %707 = vst.msk [vmem:[#allocation2 + $0xb8] sm:$0xf] %vm627, 0
      %v708 = vld [vmem:[#allocation2 + $0xbc] sm:$0x1]
      %v709 = vsel %vm632, 0, %v708
      %710 = vst [vmem:[#allocation2 + $0xbc] sm:$0x1] %v709
      %711 = vst.msk [vmem:[#allocation2 + $0xc0] sm:$0xf] %vm627, 0
      %712 = vst.msk [vmem:[#allocation2 + $0xc4] sm:$0xf] %vm627, 0
      %v713 = vld [vmem:[#allocation2 + $0xc8] sm:$0x1]
      %v714 = vsel %vm632, 0, %v713
      %715 = vst [vmem:[#allocation2 + $0xc8] sm:$0x1] %v714
      %716 = vst.msk [vmem:[#allocation2 + $0xcc] sm:$0xf] %vm627, 0
      %717 = vst.msk [vmem:[#allocation2 + $0xd0] sm:$0xf] %vm627, 0
      %v718 = vld [vmem:[#allocation2 + $0xd4] sm:$0x1]
      %v719 = vsel %vm632, 0, %v718
      %720 = vst [vmem:[#allocation2 + $0xd4] sm:$0x1] %v719
      %721 = vst.msk [vmem:[#allocation2 + $0xd8] sm:$0xf] %vm627, 0
      %722 = vst.msk [vmem:[#allocation2 + $0xdc] sm:$0xf] %vm627, 0
      %v723 = vld [vmem:[#allocation2 + $0xe0] sm:$0x1]
      %v724 = vsel %vm632, 0, %v723
      %725 = vst [vmem:[#allocation2 + $0xe0] sm:$0x1] %v724
      %726 = vst.msk [vmem:[#allocation2 + $0xe4] sm:$0xf] %vm627, 0
      %727 = vst.msk [vmem:[#allocation2 + $0xe8] sm:$0xf] %vm627, 0
      %v728 = vld [vmem:[#allocation2 + $0xec] sm:$0x1]
      %v729 = vsel %vm632, 0, %v728
      %730 = vst [vmem:[#allocation2 + $0xec] sm:$0x1] %v729
      %731 = vst.msk [vmem:[#allocation2 + $0xf0] sm:$0xf] %vm627, 0
      %732 = vst.msk [vmem:[#allocation2 + $0xf4] sm:$0xf] %vm627, 0
      %v733 = vld [vmem:[#allocation2 + $0xf8] sm:$0x1]
      %v734 = vsel %vm632, 0, %v733
      %735 = vst [vmem:[#allocation2 + $0xf8] sm:$0x1] %v734
      %736 = vst.msk [vmem:[#allocation2 + $0xfc] sm:$0xf] %vm627, 0
      %737 = vst.msk [vmem:[#allocation2 + $0x100] sm:$0xf] %vm627, 0
      %v738 = vld [vmem:[#allocation2 + $0x104] sm:$0x1]
      %v739 = vsel %vm632, 0, %v738
      %740 = vst [vmem:[#allocation2 + $0x104] sm:$0x1] %v739
      %741 = vst.msk [vmem:[#allocation2 + $0x108] sm:$0xf] %vm627, 0
      %742 = vst.msk [vmem:[#allocation2 + $0x10c] sm:$0xf] %vm627, 0
      %v743 = vld [vmem:[#allocation2 + $0x110] sm:$0x1]
      %v744 = vsel %vm632, 0, %v743
      %745 = vst [vmem:[#allocation2 + $0x110] sm:$0x1] %v744
      %746 = vst.msk [vmem:[#allocation2 + $0x114] sm:$0xf] %vm627, 0
      %747 = vst.msk [vmem:[#allocation2 + $0x118] sm:$0xf] %vm627, 0
      %v748 = vld [vmem:[#allocation2 + $0x11c] sm:$0x1]
      %v749 = vsel %vm632, 0, %v748
      %750 = vst [vmem:[#allocation2 + $0x11c] sm:$0x1] %v749
      %751 = vst.msk [vmem:[#allocation2 + $0x120] sm:$0xf] %vm627, 0
      %752 = vst.msk [vmem:[#allocation2 + $0x124] sm:$0xf] %vm627, 0
      %v753 = vld [vmem:[#allocation2 + $0x128] sm:$0x1]
      %v754 = vsel %vm632, 0, %v753
      %755 = vst [vmem:[#allocation2 + $0x128] sm:$0x1] %v754
      %756 = vst.msk [vmem:[#allocation2 + $0x12c] sm:$0xf] %vm627, 0
      %757 = vst.msk [vmem:[#allocation2 + $0x130] sm:$0xf] %vm627, 0
      %v758 = vld [vmem:[#allocation2 + $0x134] sm:$0x1]
      %v759 = vsel %vm632, 0, %v758
      %760 = vst [vmem:[#allocation2 + $0x134] sm:$0x1] %v759
      %761 = vst.msk [vmem:[#allocation2 + $0x138] sm:$0xf] %vm627, 0
      %762 = vst.msk [vmem:[#allocation2 + $0x13c] sm:$0xf] %vm627, 0
      %v763 = vld [vmem:[#allocation2 + $0x140] sm:$0x1]
      %v764 = vsel %vm632, 0, %v763
      %765 = vst [vmem:[#allocation2 + $0x140] sm:$0x1] %v764
      %766 = vst.msk [vmem:[#allocation2 + $0x144] sm:$0xf] %vm627, 0
      %767 = vst.msk [vmem:[#allocation2 + $0x148] sm:$0xf] %vm627, 0
      %v768 = vld [vmem:[#allocation2 + $0x14c] sm:$0x1]
      %v769 = vsel %vm632, 0, %v768
      %770 = vst [vmem:[#allocation2 + $0x14c] sm:$0x1] %v769
      %771 = vst.msk [vmem:[#allocation2 + $0x150] sm:$0xf] %vm627, 0
      %772 = vst.msk [vmem:[#allocation2 + $0x154] sm:$0xf] %vm627, 0
      %v773 = vld [vmem:[#allocation2 + $0x158] sm:$0x1]
      %v774 = vsel %vm632, 0, %v773
      %775 = vst [vmem:[#allocation2 + $0x158] sm:$0x1] %v774
      %776 = vst.msk [vmem:[#allocation2 + $0x15c] sm:$0xf] %vm627, 0
      %777 = vst.msk [vmem:[#allocation2 + $0x160] sm:$0xf] %vm627, 0
      %v778 = vld [vmem:[#allocation2 + $0x164] sm:$0x1]
      %v779 = vsel %vm632, 0, %v778
      %780 = vst [vmem:[#allocation2 + $0x164] sm:$0x1] %v779
      %781 = vst.msk [vmem:[#allocation2 + $0x168] sm:$0xf] %vm627, 0
      %782 = vst.msk [vmem:[#allocation2 + $0x16c] sm:$0xf] %vm627, 0
      %v783 = vld [vmem:[#allocation2 + $0x170] sm:$0x1]
      %v784 = vsel %vm632, 0, %v783
      %785 = vst [vmem:[#allocation2 + $0x170] sm:$0x1] %v784
      %786 = vst.msk [vmem:[#allocation2 + $0x174] sm:$0xf] %vm627, 0
      %787 = vst.msk [vmem:[#allocation2 + $0x178] sm:$0xf] %vm627, 0
      %v788 = vld [vmem:[#allocation2 + $0x17c] sm:$0x1]
      %v789 = vsel %vm632, 0, %v788
      %790 = vst [vmem:[#allocation2 + $0x17c] sm:$0x1] %v789
      %791 = vst.msk [vmem:[#allocation2 + $0x180] sm:$0xf] %vm627, 0
      %792 = vst.msk [vmem:[#allocation2 + $0x184] sm:$0xf] %vm627, 0
      %v793 = vld [vmem:[#allocation2 + $0x188] sm:$0x1]
      %v794 = vsel %vm632, 0, %v793
      %795 = vst [vmem:[#allocation2 + $0x188] sm:$0x1] %v794
      %796 = vst.msk [vmem:[#allocation2 + $0x18c] sm:$0xf] %vm627, 0
      %797 = vst.msk [vmem:[#allocation2 + $0x190] sm:$0xf] %vm627, 0
      %v798 = vld [vmem:[#allocation2 + $0x194] sm:$0x1]
      %v799 = vsel %vm632, 0, %v798
      %800 = vst [vmem:[#allocation2 + $0x194] sm:$0x1] %v799
      %801 = vst.msk [vmem:[#allocation2 + $0x198] sm:$0xf] %vm627, 0
      %802 = vst.msk [vmem:[#allocation2 + $0x19c] sm:$0xf] %vm627, 0
      %v803 = vld [vmem:[#allocation2 + $0x1a0] sm:$0x1]
      %v804 = vsel %vm632, 0, %v803
      %805 = vst [vmem:[#allocation2 + $0x1a0] sm:$0x1] %v804
      %806 = vst.msk [vmem:[#allocation2 + $0x1a4] sm:$0xf] %vm627, 0
      %807 = vst.msk [vmem:[#allocation2 + $0x1a8] sm:$0xf] %vm627, 0
      %v808 = vld [vmem:[#allocation2 + $0x1ac] sm:$0x1]
      %v809 = vsel %vm632, 0, %v808
      %810 = vst [vmem:[#allocation2 + $0x1ac] sm:$0x1] %v809
      %v815 = vunpack.c.l.b16 %v611
      %v816 = vunpack.c.h.b16 %v611
      %v817 = vunpack.c.l.b16 %v612
      %v818 = vunpack.c.h.b16 %v612
      %v819 = vunpack.c.l.b16 %v613
      %v820 = vunpack.c.h.b16 %v613
      %v821 = vunpack.c.l.b16 %v614
      %v822 = vunpack.c.h.b16 %v614
      %v823 = vpack.c.b16 %v815, %v815
      %v824 = vpack.c.b16 %v816, %v816
      %v825 = vpack.c.b16 %v817, %v817
      %v826 = vpack.c.b16 %v818, %v818
      %v827 = vpack.c.b16 %v819, %v819
      %v828 = vpack.c.b16 %v820, %v820
      %v829 = vpack.c.b16 %v821, %v821
      %v830 = vpack.c.b16 %v822, %v822
      %s839 = scalar_lea.vmem [#allocation2], 12
      %840 = vst.msk [vmem:[%s839 + $0x4] sm:$0xf] %vm627, %v823
      %841 = vst.msk [vmem:[%s839 + $0x10] sm:$0xf] %vm627, %v824
      %842 = vst.msk [vmem:[%s839 + $0x1c] sm:$0xf] %vm627, %v825
      %843 = vst.msk [vmem:[%s839 + $0x28] sm:$0xf] %vm627, %v826
      %844 = vst.msk [vmem:[%s839 + $0x34] sm:$0xf] %vm627, %v827
      %845 = vst.msk [vmem:[%s839 + $0x40] sm:$0xf] %vm627, %v828
      %846 = vst.msk [vmem:[%s839 + $0x4c] sm:$0xf] %vm627, %v829
      %847 = vst.msk [vmem:[%s839 + $0x58] sm:$0xf] %vm627, %v830
      %v852 = vunpack.c.l.b16 %v615
      %v853 = vunpack.c.h.b16 %v615
      %v854 = vunpack.c.l.b16 %v616
      %v855 = vunpack.c.h.b16 %v616
      %v856 = vunpack.c.l.b16 %v617
      %v857 = vunpack.c.h.b16 %v617
      %v858 = vunpack.c.l.b16 %v618
      %v859 = vunpack.c.h.b16 %v618
      %v860 = vpack.c.b16 %v852, %v852
      %v861 = vpack.c.b16 %v853, %v853
      %v862 = vpack.c.b16 %v854, %v854
      %v863 = vpack.c.b16 %v855, %v855
      %v864 = vpack.c.b16 %v856, %v856
      %v865 = vpack.c.b16 %v857, %v857
      %v866 = vpack.c.b16 %v858, %v858
      %v867 = vpack.c.b16 %v859, %v859
      %s876 = scalar_lea.vmem [#allocation2], 120
      %877 = vst.msk [vmem:[%s876 + $0x4] sm:$0xf] %vm627, %v860
      %878 = vst.msk [vmem:[%s876 + $0x10] sm:$0xf] %vm627, %v861
      %879 = vst.msk [vmem:[%s876 + $0x1c] sm:$0xf] %vm627, %v862
      %880 = vst.msk [vmem:[%s876 + $0x28] sm:$0xf] %vm627, %v863
      %881 = vst.msk [vmem:[%s876 + $0x34] sm:$0xf] %vm627, %v864
      %882 = vst.msk [vmem:[%s876 + $0x40] sm:$0xf] %vm627, %v865
      %883 = vst.msk [vmem:[%s876 + $0x4c] sm:$0xf] %vm627, %v866
      %884 = vst.msk [vmem:[%s876 + $0x58] sm:$0xf] %vm627, %v867
      %v889 = vunpack.c.l.b16 %v619
      %v890 = vunpack.c.h.b16 %v619
      %v891 = vunpack.c.l.b16 %v620
      %v892 = vunpack.c.h.b16 %v620
      %v893 = vunpack.c.l.b16 %v621
      %v894 = vunpack.c.h.b16 %v621
      %v895 = vunpack.c.l.b16 %v622
      %v896 = vunpack.c.h.b16 %v622
      %v897 = vpack.c.b16 %v889, %v889
      %v898 = vpack.c.b16 %v890, %v890
      %v899 = vpack.c.b16 %v891, %v891
      %v900 = vpack.c.b16 %v892, %v892
      %v901 = vpack.c.b16 %v893, %v893
      %v902 = vpack.c.b16 %v894, %v894
      %v903 = vpack.c.b16 %v895, %v895
      %v904 = vpack.c.b16 %v896, %v896
      %s913 = scalar_lea.vmem [#allocation2], 216
      %914 = vst.msk [vmem:[%s913 + $0x4] sm:$0xf] %vm627, %v897
      %915 = vst.msk [vmem:[%s913 + $0x10] sm:$0xf] %vm627, %v898
      %916 = vst.msk [vmem:[%s913 + $0x1c] sm:$0xf] %vm627, %v899
      %917 = vst.msk [vmem:[%s913 + $0x28] sm:$0xf] %vm627, %v900
      %918 = vst.msk [vmem:[%s913 + $0x34] sm:$0xf] %vm627, %v901
      %919 = vst.msk [vmem:[%s913 + $0x40] sm:$0xf] %vm627, %v902
      %920 = vst.msk [vmem:[%s913 + $0x4c] sm:$0xf] %vm627, %v903
      %921 = vst.msk [vmem:[%s913 + $0x58] sm:$0xf] %vm627, %v904
      %v926 = vunpack.c.l.b16 %v623
      %v927 = vunpack.c.h.b16 %v623
      %v928 = vunpack.c.l.b16 %v624
      %v929 = vunpack.c.h.b16 %v624
      %v930 = vunpack.c.l.b16 %v625
      %v931 = vunpack.c.h.b16 %v625
      %v932 = vunpack.c.l.b16 %v626
      %v933 = vunpack.c.h.b16 %v626
      %v934 = vpack.c.b16 %v926, %v926
      %v935 = vpack.c.b16 %v927, %v927
      %v936 = vpack.c.b16 %v928, %v928
      %v937 = vpack.c.b16 %v929, %v929
      %v938 = vpack.c.b16 %v930, %v930
      %v939 = vpack.c.b16 %v931, %v931
      %v940 = vpack.c.b16 %v932, %v932
      %v941 = vpack.c.b16 %v933, %v933
      %s950 = scalar_lea.vmem [#allocation2], 324
      %951 = vst.msk [vmem:[%s950 + $0x4] sm:$0xf] %vm627, %v934
      %952 = vst.msk [vmem:[%s950 + $0x10] sm:$0xf] %vm627, %v935
      %953 = vst.msk [vmem:[%s950 + $0x1c] sm:$0xf] %vm627, %v936
      %954 = vst.msk [vmem:[%s950 + $0x28] sm:$0xf] %vm627, %v937
      %955 = vst.msk [vmem:[%s950 + $0x34] sm:$0xf] %vm627, %v938
      %956 = vst.msk [vmem:[%s950 + $0x40] sm:$0xf] %vm627, %v939
      %957 = vst.msk [vmem:[%s950 + $0x4c] sm:$0xf] %vm627, %v940
      %958 = vst.msk [vmem:[%s950 + $0x58] sm:$0xf] %vm627, %v941
      %v959 = vld [vmem:[#allocation2] sm:$0x8]
      %v960 = vld [vmem:[#allocation2 + $0x4] sm:$0xf]
      %v961 = vld [vmem:[#allocation2 + $0xc] sm:$0x8]
      %v962 = vld [vmem:[#allocation2 + $0x10] sm:$0xf]
      %v963 = vld [vmem:[#allocation2 + $0x18] sm:$0x8]
      %v964 = vld [vmem:[#allocation2 + $0x1c] sm:$0xf]
      %v965 = vld [vmem:[#allocation2 + $0x24] sm:$0x8]
      %v966 = vld [vmem:[#allocation2 + $0x28] sm:$0xf]
      %v967 = vld [vmem:[#allocation2 + $0x30] sm:$0x8]
      %v968 = vld [vmem:[#allocation2 + $0x34] sm:$0xf]
      %v969 = vld [vmem:[#allocation2 + $0x3c] sm:$0x8]
      %v970 = vld [vmem:[#allocation2 + $0x40] sm:$0xf]
      %v971 = vld [vmem:[#allocation2 + $0x48] sm:$0x8]
      %v972 = vld [vmem:[#allocation2 + $0x4c] sm:$0xf]
      %v973 = vld [vmem:[#allocation2 + $0x54] sm:$0x8]
      %v974 = vld [vmem:[#allocation2 + $0x58] sm:$0xf]
      %vm975 = vsmask.f32 4368
      %vm976 = vmor %vm631, %vm975
      %v978 = vshrl.u32 %v959, 16
      %v980 = vrot.slane %v978, 7
      %v981 = vrot.slane %v980, 4
      %v983 = vshrl.u32 %v960, 16
      %v985 = vrot.slane %v983, 7
      %v986 = vshll.u32 %v960, 16
      %v988 = vor.u32 %v985, %v986
      %v989 = vsel %vm976, %v981, %v988
      %v991 = vshrl.u32 %v961, 16
      %v993 = vrot.slane %v991, 7
      %v994 = vrot.slane %v993, 4
      %v996 = vshrl.u32 %v962, 16
      %v998 = vrot.slane %v996, 7
      %v999 = vshll.u32 %v962, 16
      %v1001 = vor.u32 %v998, %v999
      %v1002 = vsel %vm976, %v994, %v1001
      %v1004 = vshrl.u32 %v963, 16
      %v1006 = vrot.slane %v1004, 7
      %v1007 = vrot.slane %v1006, 4
      %v1009 = vshrl.u32 %v964, 16
      %v1011 = vrot.slane %v1009, 7
      %v1012 = vshll.u32 %v964, 16
      %v1014 = vor.u32 %v1011, %v1012
      %v1015 = vsel %vm976, %v1007, %v1014
      %v1017 = vshrl.u32 %v965, 16
      %v1019 = vrot.slane %v1017, 7
      %v1020 = vrot.slane %v1019, 4
      %v1022 = vshrl.u32 %v966, 16
      %v1024 = vrot.slane %v1022, 7
      %v1025 = vshll.u32 %v966, 16
      %v1027 = vor.u32 %v1024, %v1025
      %v1028 = vsel %vm976, %v1020, %v1027
      %v1030 = vshrl.u32 %v967, 16
      %v1032 = vrot.slane %v1030, 7
      %v1033 = vrot.slane %v1032, 4
      %v1035 = vshrl.u32 %v968, 16
      %v1037 = vrot.slane %v1035, 7
      %v1038 = vshll.u32 %v968, 16
      %v1040 = vor.u32 %v1037, %v1038
      %v1041 = vsel %vm976, %v1033, %v1040
      %v1043 = vshrl.u32 %v969, 16
      %v1045 = vrot.slane %v1043, 7
      %v1046 = vrot.slane %v1045, 4
      %v1048 = vshrl.u32 %v970, 16
      %v1050 = vrot.slane %v1048, 7
      %v1051 = vshll.u32 %v970, 16
      %v1053 = vor.u32 %v1050, %v1051
      %v1054 = vsel %vm976, %v1046, %v1053
      %v1056 = vshrl.u32 %v971, 16
      %v1058 = vrot.slane %v1056, 7
      %v1059 = vrot.slane %v1058, 4
      %v1061 = vshrl.u32 %v972, 16
      %v1063 = vrot.slane %v1061, 7
      %v1064 = vshll.u32 %v972, 16
      %v1066 = vor.u32 %v1063, %v1064
      %v1067 = vsel %vm976, %v1059, %v1066
      %v1069 = vshrl.u32 %v973, 16
      %v1071 = vrot.slane %v1069, 7
      %v1072 = vrot.slane %v1071, 4
      %v1074 = vshrl.u32 %v974, 16
      %v1076 = vrot.slane %v1074, 7
      %v1077 = vshll.u32 %v974, 16
      %v1079 = vor.u32 %v1076, %v1077
      %v1080 = vsel %vm976, %v1072, %v1079
      %s1081 = scalar_lea.vmem [#allocation2], 108
      %v1082 = vld [vmem:[%s1081 + $0x4] sm:$0xf]
      %v1083 = vld [vmem:[%s1081 + $0x10] sm:$0xf]
      %v1084 = vld [vmem:[%s1081 + $0x1c] sm:$0xf]
      %v1085 = vld [vmem:[%s1081 + $0x28] sm:$0xf]
      %v1086 = vld [vmem:[%s1081 + $0x34] sm:$0xf]
      %v1087 = vld [vmem:[%s1081 + $0x40] sm:$0xf]
      %v1088 = vld [vmem:[%s1081 + $0x4c] sm:$0xf]
      %v1089 = vld [vmem:[%s1081 + $0x58] sm:$0xf]
      %v1090 = vld [vmem:[%s913] sm:$0x8]
      %v1091 = vld [vmem:[%s913 + $0x4] sm:$0xf]
      %v1092 = vld [vmem:[%s913 + $0xc] sm:$0x8]
      %v1093 = vld [vmem:[%s913 + $0x10] sm:$0xf]
      %v1094 = vld [vmem:[%s913 + $0x18] sm:$0x8]
      %v1095 = vld [vmem:[%s913 + $0x1c] sm:$0xf]
      %v1096 = vld [vmem:[%s913 + $0x24] sm:$0x8]
      %v1097 = vld [vmem:[%s913 + $0x28] sm:$0xf]
      %v1098 = vld [vmem:[%s913 + $0x30] sm:$0x8]
      %v1099 = vld [vmem:[%s913 + $0x34] sm:$0xf]
      %v1100 = vld [vmem:[%s913 + $0x3c] sm:$0x8]
      %v1101 = vld [vmem:[%s913 + $0x40] sm:$0xf]
      %v1102 = vld [vmem:[%s913 + $0x48] sm:$0x8]
      %v1103 = vld [vmem:[%s913 + $0x4c] sm:$0xf]
      %v1104 = vld [vmem:[%s913 + $0x54] sm:$0x8]
      %v1105 = vld [vmem:[%s913 + $0x58] sm:$0xf]
      %v1107 = vshrl.u32 %v1090, 16
      %v1109 = vrot.slane %v1107, 7
      %v1110 = vrot.slane %v1109, 4
      %v1112 = vshrl.u32 %v1091, 16
      %v1114 = vrot.slane %v1112, 7
      %v1115 = vshll.u32 %v1091, 16
      %v1117 = vor.u32 %v1114, %v1115
      %v1118 = vsel %vm976, %v1110, %v1117
      %v1120 = vshrl.u32 %v1092, 16
      %v1122 = vrot.slane %v1120, 7
      %v1123 = vrot.slane %v1122, 4
      %v1125 = vshrl.u32 %v1093, 16
      %v1127 = vrot.slane %v1125, 7
      %v1128 = vshll.u32 %v1093, 16
      %v1130 = vor.u32 %v1127, %v1128
      %v1131 = vsel %vm976, %v1123, %v1130
      %v1133 = vshrl.u32 %v1094, 16
      %v1135 = vrot.slane %v1133, 7
      %v1136 = vrot.slane %v1135, 4
      %v1138 = vshrl.u32 %v1095, 16
      %v1140 = vrot.slane %v1138, 7
      %v1141 = vshll.u32 %v1095, 16
      %v1143 = vor.u32 %v1140, %v1141
      %v1144 = vsel %vm976, %v1136, %v1143
      %v1146 = vshrl.u32 %v1096, 16
      %v1148 = vrot.slane %v1146, 7
      %v1149 = vrot.slane %v1148, 4
      %v1151 = vshrl.u32 %v1097, 16
      %v1153 = vrot.slane %v1151, 7
      %v1154 = vshll.u32 %v1097, 16
      %v1156 = vor.u32 %v1153, %v1154
      %v1157 = vsel %vm976, %v1149, %v1156
      %v1159 = vshrl.u32 %v1098, 16
      %v1161 = vrot.slane %v1159, 7
      %v1162 = vrot.slane %v1161, 4
      %v1164 = vshrl.u32 %v1099, 16
      %v1166 = vrot.slane %v1164, 7
      %v1167 = vshll.u32 %v1099, 16
      %v1169 = vor.u32 %v1166, %v1167
      %v1170 = vsel %vm976, %v1162, %v1169
      %v1172 = vshrl.u32 %v1100, 16
      %v1174 = vrot.slane %v1172, 7
      %v1175 = vrot.slane %v1174, 4
      %v1177 = vshrl.u32 %v1101, 16
      %v1179 = vrot.slane %v1177, 7
      %v1180 = vshll.u32 %v1101, 16
      %v1182 = vor.u32 %v1179, %v1180
      %v1183 = vsel %vm976, %v1175, %v1182
      %v1185 = vshrl.u32 %v1102, 16
      %v1187 = vrot.slane %v1185, 7
      %v1188 = vrot.slane %v1187, 4
      %v1190 = vshrl.u32 %v1103, 16
      %v1192 = vrot.slane %v1190, 7
      %v1193 = vshll.u32 %v1103, 16
      %v1195 = vor.u32 %v1192, %v1193
      %v1196 = vsel %vm976, %v1188, %v1195
      %v1198 = vshrl.u32 %v1104, 16
      %v1200 = vrot.slane %v1198, 7
      %v1201 = vrot.slane %v1200, 4
      %v1203 = vshrl.u32 %v1105, 16
      %v1205 = vrot.slane %v1203, 7
      %v1206 = vshll.u32 %v1105, 16
      %v1208 = vor.u32 %v1205, %v1206
      %v1209 = vsel %vm976, %v1201, %v1208
      %v1210 = vld [vmem:[%s950 + $0x4] sm:$0xf]
      %v1211 = vld [vmem:[%s950 + $0x10] sm:$0xf]
      %v1212 = vld [vmem:[%s950 + $0x1c] sm:$0xf]
      %v1213 = vld [vmem:[%s950 + $0x28] sm:$0xf]
      %v1214 = vld [vmem:[%s950 + $0x34] sm:$0xf]
      %v1215 = vld [vmem:[%s950 + $0x40] sm:$0xf]
      %v1216 = vld [vmem:[%s950 + $0x4c] sm:$0xf]
      %v1217 = vld [vmem:[%s950 + $0x58] sm:$0xf]
      %v1218 = vld [vmem:[%s1081 + $0x8] sm:$0x1]
      %v1219 = vld [vmem:[%s1081 + $0x14] sm:$0x1]
      %v1220 = vld [vmem:[%s1081 + $0x20] sm:$0x1]
      %v1221 = vld [vmem:[%s1081 + $0x2c] sm:$0x1]
      %v1222 = vld [vmem:[%s1081 + $0x38] sm:$0x1]
      %v1223 = vld [vmem:[%s1081 + $0x44] sm:$0x1]
      %v1224 = vld [vmem:[%s1081 + $0x50] sm:$0x1]
      %v1225 = vld [vmem:[%s1081 + $0x5c] sm:$0x1]
      %vm1226 = vsmask.f32 3328
      %vm1227 = vsmask.f32 7440
      %vm1228 = vmor %vm1226, %vm1227
      %v1230 = vshrl.u32 %v1082, 16
      %v1232 = vrot.slane %v1230, 4
      %v1233 = vshll.u32 %v1082, 16
      %v1235 = vrot.slane %v1233, 5
      %v1236 = vor.u32 %v1232, %v1235
      %v1237 = vrot.slane %v1236, 4
      %v1239 = vshll.u32 %v1218, 16
      %v1241 = vrot.slane %v1239, 5
      %v1242 = vsel %vm1228, %v1237, %v1241
      %v1244 = vshrl.u32 %v1083, 16
      %v1246 = vrot.slane %v1244, 4
      %v1247 = vshll.u32 %v1083, 16
      %v1249 = vrot.slane %v1247, 5
      %v1250 = vor.u32 %v1246, %v1249
      %v1251 = vrot.slane %v1250, 4
      %v1253 = vshll.u32 %v1219, 16
      %v1255 = vrot.slane %v1253, 5
      %v1256 = vsel %vm1228, %v1251, %v1255
      %v1258 = vshrl.u32 %v1084, 16
      %v1260 = vrot.slane %v1258, 4
      %v1261 = vshll.u32 %v1084, 16
      %v1263 = vrot.slane %v1261, 5
      %v1264 = vor.u32 %v1260, %v1263
      %v1265 = vrot.slane %v1264, 4
      %v1267 = vshll.u32 %v1220, 16
      %v1269 = vrot.slane %v1267, 5
      %v1270 = vsel %vm1228, %v1265, %v1269
      %v1272 = vshrl.u32 %v1085, 16
      %v1274 = vrot.slane %v1272, 4
      %v1275 = vshll.u32 %v1085, 16
      %v1277 = vrot.slane %v1275, 5
      %v1278 = vor.u32 %v1274, %v1277
      %v1279 = vrot.slane %v1278, 4
      %v1281 = vshll.u32 %v1221, 16
      %v1283 = vrot.slane %v1281, 5
      %v1284 = vsel %vm1228, %v1279, %v1283
      %v1286 = vshrl.u32 %v1086, 16
      %v1288 = vrot.slane %v1286, 4
      %v1289 = vshll.u32 %v1086, 16
      %v1291 = vrot.slane %v1289, 5
      %v1292 = vor.u32 %v1288, %v1291
      %v1293 = vrot.slane %v1292, 4
      %v1295 = vshll.u32 %v1222, 16
      %v1297 = vrot.slane %v1295, 5
      %v1298 = vsel %vm1228, %v1293, %v1297
      %v1300 = vshrl.u32 %v1087, 16
      %v1302 = vrot.slane %v1300, 4
      %v1303 = vshll.u32 %v1087, 16
      %v1305 = vrot.slane %v1303, 5
      %v1306 = vor.u32 %v1302, %v1305
      %v1307 = vrot.slane %v1306, 4
      %v1309 = vshll.u32 %v1223, 16
      %v1311 = vrot.slane %v1309, 5
      %v1312 = vsel %vm1228, %v1307, %v1311
      %v1314 = vshrl.u32 %v1088, 16
      %v1316 = vrot.slane %v1314, 4
      %v1317 = vshll.u32 %v1088, 16
      %v1319 = vrot.slane %v1317, 5
      %v1320 = vor.u32 %v1316, %v1319
      %v1321 = vrot.slane %v1320, 4
      %v1323 = vshll.u32 %v1224, 16
      %v1325 = vrot.slane %v1323, 5
      %v1326 = vsel %vm1228, %v1321, %v1325
      %v1328 = vshrl.u32 %v1089, 16
      %v1330 = vrot.slane %v1328, 4
      %v1331 = vshll.u32 %v1089, 16
      %v1333 = vrot.slane %v1331, 5
      %v1334 = vor.u32 %v1330, %v1333
      %v1335 = vrot.slane %v1334, 4
      %v1337 = vshll.u32 %v1225, 16
      %v1339 = vrot.slane %v1337, 5
      %v1340 = vsel %vm1228, %v1335, %v1339
      %v1341 = vld [vmem:[%s950 + $0x8] sm:$0x1]
      %v1342 = vld [vmem:[%s950 + $0x14] sm:$0x1]
      %v1343 = vld [vmem:[%s950 + $0x20] sm:$0x1]
      %v1344 = vld [vmem:[%s950 + $0x2c] sm:$0x1]
      %v1345 = vld [vmem:[%s950 + $0x38] sm:$0x1]
      %v1346 = vld [vmem:[%s950 + $0x44] sm:$0x1]
      %v1347 = vld [vmem:[%s950 + $0x50] sm:$0x1]
      %v1348 = vld [vmem:[%s950 + $0x5c] sm:$0x1]
      %v1350 = vshrl.u32 %v1210, 16
      %v1352 = vrot.slane %v1350, 4
      %v1353 = vshll.u32 %v1210, 16
      %v1355 = vrot.slane %v1353, 5
      %v1356 = vor.u32 %v1352, %v1355
      %v1357 = vrot.slane %v1356, 4
      %v1359 = vshll.u32 %v1341, 16
      %v1361 = vrot.slane %v1359, 5
      %v1362 = vsel %vm1228, %v1357, %v1361
      %v1364 = vshrl.u32 %v1211, 16
      %v1366 = vrot.slane %v1364, 4
      %v1367 = vshll.u32 %v1211, 16
      %v1369 = vrot.slane %v1367, 5
      %v1370 = vor.u32 %v1366, %v1369
      %v1371 = vrot.slane %v1370, 4
      %v1373 = vshll.u32 %v1342, 16
      %v1375 = vrot.slane %v1373, 5
      %v1376 = vsel %vm1228, %v1371, %v1375
      %v1378 = vshrl.u32 %v1212, 16
      %v1380 = vrot.slane %v1378, 4
      %v1381 = vshll.u32 %v1212, 16
      %v1383 = vrot.slane %v1381, 5
      %v1384 = vor.u32 %v1380, %v1383
      %v1385 = vrot.slane %v1384, 4
      %v1387 = vshll.u32 %v1343, 16
      %v1389 = vrot.slane %v1387, 5
      %v1390 = vsel %vm1228, %v1385, %v1389
      %v1392 = vshrl.u32 %v1213, 16
      %v1394 = vrot.slane %v1392, 4
      %v1395 = vshll.u32 %v1213, 16
      %v1397 = vrot.slane %v1395, 5
      %v1398 = vor.u32 %v1394, %v1397
      %v1399 = vrot.slane %v1398, 4
      %v1401 = vshll.u32 %v1344, 16
      %v1403 = vrot.slane %v1401, 5
      %v1404 = vsel %vm1228, %v1399, %v1403
      %v1406 = vshrl.u32 %v1214, 16
      %v1408 = vrot.slane %v1406, 4
      %v1409 = vshll.u32 %v1214, 16
      %v1411 = vrot.slane %v1409, 5
      %v1412 = vor.u32 %v1408, %v1411
      %v1413 = vrot.slane %v1412, 4
      %v1415 = vshll.u32 %v1345, 16
      %v1417 = vrot.slane %v1415, 5
      %v1418 = vsel %vm1228, %v1413, %v1417
      %v1420 = vshrl.u32 %v1215, 16
      %v1422 = vrot.slane %v1420, 4
      %v1423 = vshll.u32 %v1215, 16
      %v1425 = vrot.slane %v1423, 5
      %v1426 = vor.u32 %v1422, %v1425
      %v1427 = vrot.slane %v1426, 4
      %v1429 = vshll.u32 %v1346, 16
      %v1431 = vrot.slane %v1429, 5
      %v1432 = vsel %vm1228, %v1427, %v1431
      %v1434 = vshrl.u32 %v1216, 16
      %v1436 = vrot.slane %v1434, 4
      %v1437 = vshll.u32 %v1216, 16
      %v1439 = vrot.slane %v1437, 5
      %v1440 = vor.u32 %v1436, %v1439
      %v1441 = vrot.slane %v1440, 4
      %v1443 = vshll.u32 %v1347, 16
      %v1445 = vrot.slane %v1443, 5
      %v1446 = vsel %vm1228, %v1441, %v1445
      %v1448 = vshrl.u32 %v1217, 16
      %v1450 = vrot.slane %v1448, 4
      %v1451 = vshll.u32 %v1217, 16
      %v1453 = vrot.slane %v1451, 5
      %v1454 = vor.u32 %v1450, %v1453
      %v1455 = vrot.slane %v1454, 4
      %v1457 = vshll.u32 %v1348, 16
      %v1459 = vrot.slane %v1457, 5
      %v1460 = vsel %vm1228, %v1455, %v1459
      %v1461 = vld [vmem:[%s839] sm:$0x8]
      %v1462 = vld [vmem:[%s839 + $0x4] sm:$0xf]
      %v1463 = vld [vmem:[%s839 + $0xc] sm:$0x8]
      %v1464 = vld [vmem:[%s839 + $0x10] sm:$0xf]
      %v1465 = vld [vmem:[%s839 + $0x18] sm:$0x8]
      %v1466 = vld [vmem:[%s839 + $0x1c] sm:$0xf]
      %v1467 = vld [vmem:[%s839 + $0x24] sm:$0x8]
      %v1468 = vld [vmem:[%s839 + $0x28] sm:$0xf]
      %v1469 = vld [vmem:[%s839 + $0x30] sm:$0x8]
      %v1470 = vld [vmem:[%s839 + $0x34] sm:$0xf]
      %v1471 = vld [vmem:[%s839 + $0x3c] sm:$0x8]
      %v1472 = vld [vmem:[%s839 + $0x40] sm:$0xf]
      %v1473 = vld [vmem:[%s839 + $0x48] sm:$0x8]
      %v1474 = vld [vmem:[%s839 + $0x4c] sm:$0xf]
      %v1475 = vld [vmem:[%s839 + $0x54] sm:$0x8]
      %v1476 = vld [vmem:[%s839 + $0x58] sm:$0xf]
      %v1478 = vshrl.u32 %v1461, 16
      %v1480 = vrot.slane %v1478, 7
      %v1481 = vrot.slane %v1480, 4
      %v1483 = vshrl.u32 %v1462, 16
      %v1485 = vrot.slane %v1483, 7
      %v1486 = vshll.u32 %v1462, 16
      %v1488 = vor.u32 %v1485, %v1486
      %v1489 = vsel %vm976, %v1481, %v1488
      %v1491 = vshrl.u32 %v1463, 16
      %v1493 = vrot.slane %v1491, 7
      %v1494 = vrot.slane %v1493, 4
      %v1496 = vshrl.u32 %v1464, 16
      %v1498 = vrot.slane %v1496, 7
      %v1499 = vshll.u32 %v1464, 16
      %v1501 = vor.u32 %v1498, %v1499
      %v1502 = vsel %vm976, %v1494, %v1501
      %v1504 = vshrl.u32 %v1465, 16
      %v1506 = vrot.slane %v1504, 7
      %v1507 = vrot.slane %v1506, 4
      %v1509 = vshrl.u32 %v1466, 16
      %v1511 = vrot.slane %v1509, 7
      %v1512 = vshll.u32 %v1466, 16
      %v1514 = vor.u32 %v1511, %v1512
      %v1515 = vsel %vm976, %v1507, %v1514
      %v1517 = vshrl.u32 %v1467, 16
      %v1519 = vrot.slane %v1517, 7
      %v1520 = vrot.slane %v1519, 4
      %v1522 = vshrl.u32 %v1468, 16
      %v1524 = vrot.slane %v1522, 7
      %v1525 = vshll.u32 %v1468, 16
      %v1527 = vor.u32 %v1524, %v1525
      %v1528 = vsel %vm976, %v1520, %v1527
      %v1530 = vshrl.u32 %v1469, 16
      %v1532 = vrot.slane %v1530, 7
      %v1533 = vrot.slane %v1532, 4
      %v1535 = vshrl.u32 %v1470, 16
      %v1537 = vrot.slane %v1535, 7
      %v1538 = vshll.u32 %v1470, 16
      %v1540 = vor.u32 %v1537, %v1538
      %v1541 = vsel %vm976, %v1533, %v1540
      %v1543 = vshrl.u32 %v1471, 16
      %v1545 = vrot.slane %v1543, 7
      %v1546 = vrot.slane %v1545, 4
      %v1548 = vshrl.u32 %v1472, 16
      %v1550 = vrot.slane %v1548, 7
      %v1551 = vshll.u32 %v1472, 16
      %v1553 = vor.u32 %v1550, %v1551
      %v1554 = vsel %vm976, %v1546, %v1553
      %v1556 = vshrl.u32 %v1473, 16
      %v1558 = vrot.slane %v1556, 7
      %v1559 = vrot.slane %v1558, 4
      %v1561 = vshrl.u32 %v1474, 16
      %v1563 = vrot.slane %v1561, 7
      %v1564 = vshll.u32 %v1474, 16
      %v1566 = vor.u32 %v1563, %v1564
      %v1567 = vsel %vm976, %v1559, %v1566
      %v1569 = vshrl.u32 %v1475, 16
      %v1571 = vrot.slane %v1569, 7
      %v1572 = vrot.slane %v1571, 4
      %v1574 = vshrl.u32 %v1476, 16
      %v1576 = vrot.slane %v1574, 7
      %v1577 = vshll.u32 %v1476, 16
      %v1579 = vor.u32 %v1576, %v1577
      %v1580 = vsel %vm976, %v1572, %v1579
      %v1581 = vld [vmem:[%s876 + $0x4] sm:$0xf]
      %v1582 = vld [vmem:[%s876 + $0x10] sm:$0xf]
      %v1583 = vld [vmem:[%s876 + $0x1c] sm:$0xf]
      %v1584 = vld [vmem:[%s876 + $0x28] sm:$0xf]
      %v1585 = vld [vmem:[%s876 + $0x34] sm:$0xf]
      %v1586 = vld [vmem:[%s876 + $0x40] sm:$0xf]
      %v1587 = vld [vmem:[%s876 + $0x4c] sm:$0xf]
      %v1588 = vld [vmem:[%s876 + $0x58] sm:$0xf]
      %s1589 = scalar_lea.vmem [#allocation2], 228
      %v1590 = vld [vmem:[%s1589] sm:$0x8]
      %v1591 = vld [vmem:[%s1589 + $0x4] sm:$0xf]
      %v1592 = vld [vmem:[%s1589 + $0xc] sm:$0x8]
      %v1593 = vld [vmem:[%s1589 + $0x10] sm:$0xf]
      %v1594 = vld [vmem:[%s1589 + $0x18] sm:$0x8]
      %v1595 = vld [vmem:[%s1589 + $0x1c] sm:$0xf]
      %v1596 = vld [vmem:[%s1589 + $0x24] sm:$0x8]
      %v1597 = vld [vmem:[%s1589 + $0x28] sm:$0xf]
      %v1598 = vld [vmem:[%s1589 + $0x30] sm:$0x8]
      %v1599 = vld [vmem:[%s1589 + $0x34] sm:$0xf]
      %v1600 = vld [vmem:[%s1589 + $0x3c] sm:$0x8]
      %v1601 = vld [vmem:[%s1589 + $0x40] sm:$0xf]
      %v1602 = vld [vmem:[%s1589 + $0x48] sm:$0x8]
      %v1603 = vld [vmem:[%s1589 + $0x4c] sm:$0xf]
      %v1604 = vld [vmem:[%s1589 + $0x54] sm:$0x8]
      %v1605 = vld [vmem:[%s1589 + $0x58] sm:$0xf]
      %v1607 = vshrl.u32 %v1590, 16
      %v1609 = vrot.slane %v1607, 7
      %v1610 = vrot.slane %v1609, 4
      %v1612 = vshrl.u32 %v1591, 16
      %v1614 = vrot.slane %v1612, 7
      %v1615 = vshll.u32 %v1591, 16
      %v1617 = vor.u32 %v1614, %v1615
      %v1618 = vsel %vm976, %v1610, %v1617
      %v1620 = vshrl.u32 %v1592, 16
      %v1622 = vrot.slane %v1620, 7
      %v1623 = vrot.slane %v1622, 4
      %v1625 = vshrl.u32 %v1593, 16
      %v1627 = vrot.slane %v1625, 7
      %v1628 = vshll.u32 %v1593, 16
      %v1630 = vor.u32 %v1627, %v1628
      %v1631 = vsel %vm976, %v1623, %v1630
      %v1633 = vshrl.u32 %v1594, 16
      %v1635 = vrot.slane %v1633, 7
      %v1636 = vrot.slane %v1635, 4
      %v1638 = vshrl.u32 %v1595, 16
      %v1640 = vrot.slane %v1638, 7
      %v1641 = vshll.u32 %v1595, 16
      %v1643 = vor.u32 %v1640, %v1641
      %v1644 = vsel %vm976, %v1636, %v1643
      %v1646 = vshrl.u32 %v1596, 16
      %v1648 = vrot.slane %v1646, 7
      %v1649 = vrot.slane %v1648, 4
      %v1651 = vshrl.u32 %v1597, 16
      %v1653 = vrot.slane %v1651, 7
      %v1654 = vshll.u32 %v1597, 16
      %v1656 = vor.u32 %v1653, %v1654
      %v1657 = vsel %vm976, %v1649, %v1656
      %v1659 = vshrl.u32 %v1598, 16
      %v1661 = vrot.slane %v1659, 7
      %v1662 = vrot.slane %v1661, 4
      %v1664 = vshrl.u32 %v1599, 16
      %v1666 = vrot.slane %v1664, 7
      %v1667 = vshll.u32 %v1599, 16
      %v1669 = vor.u32 %v1666, %v1667
      %v1670 = vsel %vm976, %v1662, %v1669
      %v1672 = vshrl.u32 %v1600, 16
      %v1674 = vrot.slane %v1672, 7
      %v1675 = vrot.slane %v1674, 4
      %v1677 = vshrl.u32 %v1601, 16
      %v1679 = vrot.slane %v1677, 7
      %v1680 = vshll.u32 %v1601, 16
      %v1682 = vor.u32 %v1679, %v1680
      %v1683 = vsel %vm976, %v1675, %v1682
      %v1685 = vshrl.u32 %v1602, 16
      %v1687 = vrot.slane %v1685, 7
      %v1688 = vrot.slane %v1687, 4
      %v1690 = vshrl.u32 %v1603, 16
      %v1692 = vrot.slane %v1690, 7
      %v1693 = vshll.u32 %v1603, 16
      %v1695 = vor.u32 %v1692, %v1693
      %v1696 = vsel %vm976, %v1688, %v1695
      %v1698 = vshrl.u32 %v1604, 16
      %v1700 = vrot.slane %v1698, 7
      %v1701 = vrot.slane %v1700, 4
      %v1703 = vshrl.u32 %v1605, 16
      %v1705 = vrot.slane %v1703, 7
      %v1706 = vshll.u32 %v1605, 16
      %v1708 = vor.u32 %v1705, %v1706
      %v1709 = vsel %vm976, %v1701, %v1708
      %s1710 = scalar_lea.vmem [#allocation2], 336
      %v1711 = vld [vmem:[%s1710 + $0x4] sm:$0xf]
      %v1712 = vld [vmem:[%s1710 + $0x10] sm:$0xf]
      %v1713 = vld [vmem:[%s1710 + $0x1c] sm:$0xf]
      %v1714 = vld [vmem:[%s1710 + $0x28] sm:$0xf]
      %v1715 = vld [vmem:[%s1710 + $0x34] sm:$0xf]
      %v1716 = vld [vmem:[%s1710 + $0x40] sm:$0xf]
      %v1717 = vld [vmem:[%s1710 + $0x4c] sm:$0xf]
      %v1718 = vld [vmem:[%s1710 + $0x58] sm:$0xf]
      %v1719 = vld [vmem:[%s876 + $0x8] sm:$0x1]
      %v1720 = vld [vmem:[%s876 + $0x14] sm:$0x1]
      %v1721 = vld [vmem:[%s876 + $0x20] sm:$0x1]
      %v1722 = vld [vmem:[%s876 + $0x2c] sm:$0x1]
      %v1723 = vld [vmem:[%s876 + $0x38] sm:$0x1]
      %v1724 = vld [vmem:[%s876 + $0x44] sm:$0x1]
      %v1725 = vld [vmem:[%s876 + $0x50] sm:$0x1]
      %v1726 = vld [vmem:[%s876 + $0x5c] sm:$0x1]
      %v1728 = vshrl.u32 %v1581, 16
      %v1730 = vrot.slane %v1728, 4
      %v1731 = vshll.u32 %v1581, 16
      %v1733 = vrot.slane %v1731, 5
      %v1734 = vor.u32 %v1730, %v1733
      %v1735 = vrot.slane %v1734, 4
      %v1737 = vshll.u32 %v1719, 16
      %v1739 = vrot.slane %v1737, 5
      %v1740 = vsel %vm1228, %v1735, %v1739
      %v1742 = vshrl.u32 %v1582, 16
      %v1744 = vrot.slane %v1742, 4
      %v1745 = vshll.u32 %v1582, 16
      %v1747 = vrot.slane %v1745, 5
      %v1748 = vor.u32 %v1744, %v1747
      %v1749 = vrot.slane %v1748, 4
      %v1751 = vshll.u32 %v1720, 16
      %v1753 = vrot.slane %v1751, 5
      %v1754 = vsel %vm1228, %v1749, %v1753
      %v1756 = vshrl.u32 %v1583, 16
      %v1758 = vrot.slane %v1756, 4
      %v1759 = vshll.u32 %v1583, 16
      %v1761 = vrot.slane %v1759, 5
      %v1762 = vor.u32 %v1758, %v1761
      %v1763 = vrot.slane %v1762, 4
      %v1765 = vshll.u32 %v1721, 16
      %v1767 = vrot.slane %v1765, 5
      %v1768 = vsel %vm1228, %v1763, %v1767
      %v1770 = vshrl.u32 %v1584, 16
      %v1772 = vrot.slane %v1770, 4
      %v1773 = vshll.u32 %v1584, 16
      %v1775 = vrot.slane %v1773, 5
      %v1776 = vor.u32 %v1772, %v1775
      %v1777 = vrot.slane %v1776, 4
      %v1779 = vshll.u32 %v1722, 16
      %v1781 = vrot.slane %v1779, 5
      %v1782 = vsel %vm1228, %v1777, %v1781
      %v1784 = vshrl.u32 %v1585, 16
      %v1786 = vrot.slane %v1784, 4
      %v1787 = vshll.u32 %v1585, 16
      %v1789 = vrot.slane %v1787, 5
      %v1790 = vor.u32 %v1786, %v1789
      %v1791 = vrot.slane %v1790, 4
      %v1793 = vshll.u32 %v1723, 16
      %v1795 = vrot.slane %v1793, 5
      %v1796 = vsel %vm1228, %v1791, %v1795
      %v1798 = vshrl.u32 %v1586, 16
      %v1800 = vrot.slane %v1798, 4
      %v1801 = vshll.u32 %v1586, 16
      %v1803 = vrot.slane %v1801, 5
      %v1804 = vor.u32 %v1800, %v1803
      %v1805 = vrot.slane %v1804, 4
      %v1807 = vshll.u32 %v1724, 16
      %v1809 = vrot.slane %v1807, 5
      %v1810 = vsel %vm1228, %v1805, %v1809
      %v1812 = vshrl.u32 %v1587, 16
      %v1814 = vrot.slane %v1812, 4
      %v1815 = vshll.u32 %v1587, 16
      %v1817 = vrot.slane %v1815, 5
      %v1818 = vor.u32 %v1814, %v1817
      %v1819 = vrot.slane %v1818, 4
      %v1821 = vshll.u32 %v1725, 16
      %v1823 = vrot.slane %v1821, 5
      %v1824 = vsel %vm1228, %v1819, %v1823
      %v1826 = vshrl.u32 %v1588, 16
      %v1828 = vrot.slane %v1826, 4
      %v1829 = vshll.u32 %v1588, 16
      %v1831 = vrot.slane %v1829, 5
      %v1832 = vor.u32 %v1828, %v1831
      %v1833 = vrot.slane %v1832, 4
      %v1835 = vshll.u32 %v1726, 16
      %v1837 = vrot.slane %v1835, 5
      %v1838 = vsel %vm1228, %v1833, %v1837
      %v1839 = vld [vmem:[%s1710 + $0x8] sm:$0x1]
      %v1840 = vld [vmem:[%s1710 + $0x14] sm:$0x1]
      %v1841 = vld [vmem:[%s1710 + $0x20] sm:$0x1]
      %v1842 = vld [vmem:[%s1710 + $0x2c] sm:$0x1]
      %v1843 = vld [vmem:[%s1710 + $0x38] sm:$0x1]
      %v1844 = vld [vmem:[%s1710 + $0x44] sm:$0x1]
      %v1845 = vld [vmem:[%s1710 + $0x50] sm:$0x1]
      %v1846 = vld [vmem:[%s1710 + $0x5c] sm:$0x1]
      %v1848 = vshrl.u32 %v1711, 16
      %v1850 = vrot.slane %v1848, 4
      %v1851 = vshll.u32 %v1711, 16
      %v1853 = vrot.slane %v1851, 5
      %v1854 = vor.u32 %v1850, %v1853
      %v1855 = vrot.slane %v1854, 4
      %v1857 = vshll.u32 %v1839, 16
      %v1859 = vrot.slane %v1857, 5
      %v1860 = vsel %vm1228, %v1855, %v1859
      %v1862 = vshrl.u32 %v1712, 16
      %v1864 = vrot.slane %v1862, 4
      %v1865 = vshll.u32 %v1712, 16
      %v1867 = vrot.slane %v1865, 5
      %v1868 = vor.u32 %v1864, %v1867
      %v1869 = vrot.slane %v1868, 4
      %v1871 = vshll.u32 %v1840, 16
      %v1873 = vrot.slane %v1871, 5
      %v1874 = vsel %vm1228, %v1869, %v1873
      %v1876 = vshrl.u32 %v1713, 16
      %v1878 = vrot.slane %v1876, 4
      %v1879 = vshll.u32 %v1713, 16
      %v1881 = vrot.slane %v1879, 5
      %v1882 = vor.u32 %v1878, %v1881
      %v1883 = vrot.slane %v1882, 4
      %v1885 = vshll.u32 %v1841, 16
      %v1887 = vrot.slane %v1885, 5
      %v1888 = vsel %vm1228, %v1883, %v1887
      %v1890 = vshrl.u32 %v1714, 16
      %v1892 = vrot.slane %v1890, 4
      %v1893 = vshll.u32 %v1714, 16
      %v1895 = vrot.slane %v1893, 5
      %v1896 = vor.u32 %v1892, %v1895
      %v1897 = vrot.slane %v1896, 4
      %v1899 = vshll.u32 %v1842, 16
      %v1901 = vrot.slane %v1899, 5
      %v1902 = vsel %vm1228, %v1897, %v1901
      %v1904 = vshrl.u32 %v1715, 16
      %v1906 = vrot.slane %v1904, 4
      %v1907 = vshll.u32 %v1715, 16
      %v1909 = vrot.slane %v1907, 5
      %v1910 = vor.u32 %v1906, %v1909
      %v1911 = vrot.slane %v1910, 4
      %v1913 = vshll.u32 %v1843, 16
      %v1915 = vrot.slane %v1913, 5
      %v1916 = vsel %vm1228, %v1911, %v1915
      %v1918 = vshrl.u32 %v1716, 16
      %v1920 = vrot.slane %v1918, 4
      %v1921 = vshll.u32 %v1716, 16
      %v1923 = vrot.slane %v1921, 5
      %v1924 = vor.u32 %v1920, %v1923
      %v1925 = vrot.slane %v1924, 4
      %v1927 = vshll.u32 %v1844, 16
      %v1929 = vrot.slane %v1927, 5
      %v1930 = vsel %vm1228, %v1925, %v1929
      %v1932 = vshrl.u32 %v1717, 16
      %v1934 = vrot.slane %v1932, 4
      %v1935 = vshll.u32 %v1717, 16
      %v1937 = vrot.slane %v1935, 5
      %v1938 = vor.u32 %v1934, %v1937
      %v1939 = vrot.slane %v1938, 4
      %v1941 = vshll.u32 %v1845, 16
      %v1943 = vrot.slane %v1941, 5
      %v1944 = vsel %vm1228, %v1939, %v1943
      %v1946 = vshrl.u32 %v1718, 16
      %v1948 = vrot.slane %v1946, 4
      %v1949 = vshll.u32 %v1718, 16
      %v1951 = vrot.slane %v1949, 5
      %v1952 = vor.u32 %v1948, %v1951
      %v1953 = vrot.slane %v1952, 4
      %v1955 = vshll.u32 %v1846, 16
      %v1957 = vrot.slane %v1955, 5
      %v1958 = vsel %vm1228, %v1953, %v1957
      %v1959 = vunpack.c.l.b16 %v989
      %v1960 = vunpack.c.l.b16 %v1002
      %v1961 = vunpack.c.l.b16 %v1015
      %v1962 = vunpack.c.l.b16 %v1028
      %v1963 = vunpack.c.l.b16 %v1041
      %v1964 = vunpack.c.l.b16 %v1054
      %v1965 = vunpack.c.l.b16 %v1067
      %v1966 = vunpack.c.l.b16 %v1080
      %v1967 = vpack.c.b16 %v1960, %v1959
      %v1968 = vpack.c.b16 %v1962, %v1961
      %v1969 = vpack.c.b16 %v1964, %v1963
      %v1970 = vpack.c.b16 %v1966, %v1965
      %v1979 = vunpack.c.l.b16 %v1082
      %v1980 = vunpack.c.l.b16 %v1083
      %v1981 = vunpack.c.l.b16 %v1084
      %v1982 = vunpack.c.l.b16 %v1085
      %v1983 = vunpack.c.l.b16 %v1086
      %v1984 = vunpack.c.l.b16 %v1087
      %v1985 = vunpack.c.l.b16 %v1088
      %v1986 = vunpack.c.l.b16 %v1089
      %v1987 = vpack.c.b16 %v1980, %v1979
      %v1988 = vpack.c.b16 %v1982, %v1981
      %v1989 = vpack.c.b16 %v1984, %v1983
      %v1990 = vpack.c.b16 %v1986, %v1985
      %1991 = vrot.lane.b32.xlu0 %v1987, 32
      %v1992 = vpop.permute.xlu0 %1991
      %1993 = vrot.lane.b32.xlu0 %v1988, 32
      %v1994 = vpop.permute.xlu0 %1993
      %1995 = vrot.lane.b32.xlu0 %v1989, 32
      %v1996 = vpop.permute.xlu0 %1995
      %1997 = vrot.lane.b32.xlu0 %v1990, 32
      %v1998 = vpop.permute.xlu0 %1997
      %v1999 = vunpack.c.l.b16 %v1118
      %v2000 = vunpack.c.l.b16 %v1131
      %v2001 = vunpack.c.l.b16 %v1144
      %v2002 = vunpack.c.l.b16 %v1157
      %v2003 = vunpack.c.l.b16 %v1170
      %v2004 = vunpack.c.l.b16 %v1183
      %v2005 = vunpack.c.l.b16 %v1196
      %v2006 = vunpack.c.l.b16 %v1209
      %v2007 = vpack.c.b16 %v2000, %v1999
      %v2008 = vpack.c.b16 %v2002, %v2001
      %v2009 = vpack.c.b16 %v2004, %v2003
      %v2010 = vpack.c.b16 %v2006, %v2005
      %2011 = vrot.lane.b32.xlu0 %v2007, 64
      %v2012 = vpop.permute.xlu0 %2011
      %2013 = vrot.lane.b32.xlu0 %v2008, 64
      %v2014 = vpop.permute.xlu0 %2013
      %2015 = vrot.lane.b32.xlu0 %v2009, 64
      %v2016 = vpop.permute.xlu0 %2015
      %2017 = vrot.lane.b32.xlu0 %v2010, 64
      %v2018 = vpop.permute.xlu0 %2017
      %v2027 = vunpack.c.l.b16 %v1210
      %v2028 = vunpack.c.l.b16 %v1211
      %v2029 = vunpack.c.l.b16 %v1212
      %v2030 = vunpack.c.l.b16 %v1213
      %v2031 = vunpack.c.l.b16 %v1214
      %v2032 = vunpack.c.l.b16 %v1215
      %v2033 = vunpack.c.l.b16 %v1216
      %v2034 = vunpack.c.l.b16 %v1217
      %v2035 = vpack.c.b16 %v2028, %v2027
      %v2036 = vpack.c.b16 %v2030, %v2029
      %v2037 = vpack.c.b16 %v2032, %v2031
      %v2038 = vpack.c.b16 %v2034, %v2033
      %2039 = vrot.lane.b32.xlu0 %v2035, 96
      %v2040 = vpop.permute.xlu0 %2039
      %2041 = vrot.lane.b32.xlu0 %v2036, 96
      %v2042 = vpop.permute.xlu0 %2041
      %2043 = vrot.lane.b32.xlu0 %v2037, 96
      %v2044 = vpop.permute.xlu0 %2043
      %2045 = vrot.lane.b32.xlu0 %v2038, 96
      %v2046 = vpop.permute.xlu0 %2045
      %v2055 = vunpack.c.l.b16 %v960
      %v2056 = vunpack.c.l.b16 %v962
      %v2057 = vunpack.c.l.b16 %v964
      %v2058 = vunpack.c.l.b16 %v966
      %v2059 = vunpack.c.l.b16 %v968
      %v2060 = vunpack.c.l.b16 %v970
      %v2061 = vunpack.c.l.b16 %v972
      %v2062 = vunpack.c.l.b16 %v974
      %v2063 = vpack.c.b16 %v2056, %v2055
      %v2064 = vpack.c.b16 %v2058, %v2057
      %v2065 = vpack.c.b16 %v2060, %v2059
      %v2066 = vpack.c.b16 %v2062, %v2061
      %v2067 = vunpack.c.l.b16 %v1242
      %v2068 = vunpack.c.l.b16 %v1256
      %v2069 = vunpack.c.l.b16 %v1270
      %v2070 = vunpack.c.l.b16 %v1284
      %v2071 = vunpack.c.l.b16 %v1298
      %v2072 = vunpack.c.l.b16 %v1312
      %v2073 = vunpack.c.l.b16 %v1326
      %v2074 = vunpack.c.l.b16 %v1340
      %v2075 = vpack.c.b16 %v2068, %v2067
      %v2076 = vpack.c.b16 %v2070, %v2069
      %v2077 = vpack.c.b16 %v2072, %v2071
      %v2078 = vpack.c.b16 %v2074, %v2073
      %2079 = vrot.lane.b32.xlu0 %v2075, 32
      %v2080 = vpop.permute.xlu0 %2079
      %2081 = vrot.lane.b32.xlu0 %v2076, 32
      %v2082 = vpop.permute.xlu0 %2081
      %2083 = vrot.lane.b32.xlu0 %v2077, 32
      %v2084 = vpop.permute.xlu0 %2083
      %2085 = vrot.lane.b32.xlu0 %v2078, 32
      %v2086 = vpop.permute.xlu0 %2085
      %v2095 = vunpack.c.l.b16 %v1091
      %v2096 = vunpack.c.l.b16 %v1093
      %v2097 = vunpack.c.l.b16 %v1095
      %v2098 = vunpack.c.l.b16 %v1097
      %v2099 = vunpack.c.l.b16 %v1099
      %v2100 = vunpack.c.l.b16 %v1101
      %v2101 = vunpack.c.l.b16 %v1103
      %v2102 = vunpack.c.l.b16 %v1105
      %v2103 = vpack.c.b16 %v2096, %v2095
      %v2104 = vpack.c.b16 %v2098, %v2097
      %v2105 = vpack.c.b16 %v2100, %v2099
      %v2106 = vpack.c.b16 %v2102, %v2101
      %2107 = vrot.lane.b32.xlu0 %v2103, 64
      %v2108 = vpop.permute.xlu0 %2107
      %2109 = vrot.lane.b32.xlu0 %v2104, 64
      %v2110 = vpop.permute.xlu0 %2109
      %2111 = vrot.lane.b32.xlu0 %v2105, 64
      %v2112 = vpop.permute.xlu0 %2111
      %2113 = vrot.lane.b32.xlu0 %v2106, 64
      %v2114 = vpop.permute.xlu0 %2113
      %v2115 = vunpack.c.l.b16 %v1362
      %v2116 = vunpack.c.l.b16 %v1376
      %v2117 = vunpack.c.l.b16 %v1390
      %v2118 = vunpack.c.l.b16 %v1404
      %v2119 = vunpack.c.l.b16 %v1418
      %v2120 = vunpack.c.l.b16 %v1432
      %v2121 = vunpack.c.l.b16 %v1446
      %v2122 = vunpack.c.l.b16 %v1460
      %v2123 = vpack.c.b16 %v2116, %v2115
      %v2124 = vpack.c.b16 %v2118, %v2117
      %v2125 = vpack.c.b16 %v2120, %v2119
      %v2126 = vpack.c.b16 %v2122, %v2121
      %2127 = vrot.lane.b32.xlu0 %v2123, 96
      %v2128 = vpop.permute.xlu0 %2127
      %2129 = vrot.lane.b32.xlu0 %v2124, 96
      %v2130 = vpop.permute.xlu0 %2129
      %2131 = vrot.lane.b32.xlu0 %v2125, 96
      %v2132 = vpop.permute.xlu0 %2131
      %2133 = vrot.lane.b32.xlu0 %v2126, 96
      %v2134 = vpop.permute.xlu0 %2133
      %v2135 = vunpack.c.l.b16 %v1489
      %v2136 = vunpack.c.l.b16 %v1502
      %v2137 = vunpack.c.l.b16 %v1515
      %v2138 = vunpack.c.l.b16 %v1528
      %v2139 = vunpack.c.l.b16 %v1541
      %v2140 = vunpack.c.l.b16 %v1554
      %v2141 = vunpack.c.l.b16 %v1567
      %v2142 = vunpack.c.l.b16 %v1580
      %v2143 = vpack.c.b16 %v2136, %v2135
      %v2144 = vpack.c.b16 %v2138, %v2137
      %v2145 = vpack.c.b16 %v2140, %v2139
      %v2146 = vpack.c.b16 %v2142, %v2141
      %v2155 = vunpack.c.l.b16 %v1581
      %v2156 = vunpack.c.l.b16 %v1582
      %v2157 = vunpack.c.l.b16 %v1583
      %v2158 = vunpack.c.l.b16 %v1584
      %v2159 = vunpack.c.l.b16 %v1585
      %v2160 = vunpack.c.l.b16 %v1586
      %v2161 = vunpack.c.l.b16 %v1587
      %v2162 = vunpack.c.l.b16 %v1588
      %v2163 = vpack.c.b16 %v2156, %v2155
      %v2164 = vpack.c.b16 %v2158, %v2157
      %v2165 = vpack.c.b16 %v2160, %v2159
      %v2166 = vpack.c.b16 %v2162, %v2161
      %2167 = vrot.lane.b32.xlu0 %v2163, 32
      %v2168 = vpop.permute.xlu0 %2167
      %2169 = vrot.lane.b32.xlu0 %v2164, 32
      %v2170 = vpop.permute.xlu0 %2169
      %2171 = vrot.lane.b32.xlu0 %v2165, 32
      %v2172 = vpop.permute.xlu0 %2171
      %2173 = vrot.lane.b32.xlu0 %v2166, 32
      %v2174 = vpop.permute.xlu0 %2173
      %v2175 = vunpack.c.l.b16 %v1618
      %v2176 = vunpack.c.l.b16 %v1631
      %v2177 = vunpack.c.l.b16 %v1644
      %v2178 = vunpack.c.l.b16 %v1657
      %v2179 = vunpack.c.l.b16 %v1670
      %v2180 = vunpack.c.l.b16 %v1683
      %v2181 = vunpack.c.l.b16 %v1696
      %v2182 = vunpack.c.l.b16 %v1709
      %v2183 = vpack.c.b16 %v2176, %v2175
      %v2184 = vpack.c.b16 %v2178, %v2177
      %v2185 = vpack.c.b16 %v2180, %v2179
      %v2186 = vpack.c.b16 %v2182, %v2181
      %2187 = vrot.lane.b32.xlu0 %v2183, 64
      %v2188 = vpop.permute.xlu0 %2187
      %2189 = vrot.lane.b32.xlu0 %v2184, 64
      %v2190 = vpop.permute.xlu0 %2189
      %2191 = vrot.lane.b32.xlu0 %v2185, 64
      %v2192 = vpop.permute.xlu0 %2191
      %2193 = vrot.lane.b32.xlu0 %v2186, 64
      %v2194 = vpop.permute.xlu0 %2193
      %v2203 = vunpack.c.l.b16 %v1711
      %v2204 = vunpack.c.l.b16 %v1712
      %v2205 = vunpack.c.l.b16 %v1713
      %v2206 = vunpack.c.l.b16 %v1714
      %v2207 = vunpack.c.l.b16 %v1715
      %v2208 = vunpack.c.l.b16 %v1716
      %v2209 = vunpack.c.l.b16 %v1717
      %v2210 = vunpack.c.l.b16 %v1718
      %v2211 = vpack.c.b16 %v2204, %v2203
      %v2212 = vpack.c.b16 %v2206, %v2205
      %v2213 = vpack.c.b16 %v2208, %v2207
      %v2214 = vpack.c.b16 %v2210, %v2209
      %2215 = vrot.lane.b32.xlu0 %v2211, 96
      %v2216 = vpop.permute.xlu0 %2215
      %2217 = vrot.lane.b32.xlu0 %v2212, 96
      %v2218 = vpop.permute.xlu0 %2217
      %2219 = vrot.lane.b32.xlu0 %v2213, 96
      %v2220 = vpop.permute.xlu0 %2219
      %2221 = vrot.lane.b32.xlu0 %v2214, 96
      %v2222 = vpop.permute.xlu0 %2221
      %v2231 = vunpack.c.l.b16 %v1462
      %v2232 = vunpack.c.l.b16 %v1464
      %v2233 = vunpack.c.l.b16 %v1466
      %v2234 = vunpack.c.l.b16 %v1468
      %v2235 = vunpack.c.l.b16 %v1470
      %v2236 = vunpack.c.l.b16 %v1472
      %v2237 = vunpack.c.l.b16 %v1474
      %v2238 = vunpack.c.l.b16 %v1476
      %v2239 = vpack.c.b16 %v2232, %v2231
      %v2240 = vpack.c.b16 %v2234, %v2233
      %v2241 = vpack.c.b16 %v2236, %v2235
      %v2242 = vpack.c.b16 %v2238, %v2237
      %v2243 = vunpack.c.l.b16 %v1740
      %v2244 = vunpack.c.l.b16 %v1754
      %v2245 = vunpack.c.l.b16 %v1768
      %v2246 = vunpack.c.l.b16 %v1782
      %v2247 = vunpack.c.l.b16 %v1796
      %v2248 = vunpack.c.l.b16 %v1810
      %v2249 = vunpack.c.l.b16 %v1824
      %v2250 = vunpack.c.l.b16 %v1838
      %v2251 = vpack.c.b16 %v2244, %v2243
      %v2252 = vpack.c.b16 %v2246, %v2245
      %v2253 = vpack.c.b16 %v2248, %v2247
      %v2254 = vpack.c.b16 %v2250, %v2249
      %2255 = vrot.lane.b32.xlu0 %v2251, 32
      %v2256 = vpop.permute.xlu0 %2255
      %2257 = vrot.lane.b32.xlu0 %v2252, 32
      %v2258 = vpop.permute.xlu0 %2257
      %2259 = vrot.lane.b32.xlu0 %v2253, 32
      %v2260 = vpop.permute.xlu0 %2259
      %2261 = vrot.lane.b32.xlu0 %v2254, 32
      %v2262 = vpop.permute.xlu0 %2261
      %v2271 = vunpack.c.l.b16 %v1591
      %v2272 = vunpack.c.l.b16 %v1593
      %v2273 = vunpack.c.l.b16 %v1595
      %v2274 = vunpack.c.l.b16 %v1597
      %v2275 = vunpack.c.l.b16 %v1599
      %v2276 = vunpack.c.l.b16 %v1601
      %v2277 = vunpack.c.l.b16 %v1603
      %v2278 = vunpack.c.l.b16 %v1605
      %v2279 = vpack.c.b16 %v2272, %v2271
      %v2280 = vpack.c.b16 %v2274, %v2273
      %v2281 = vpack.c.b16 %v2276, %v2275
      %v2282 = vpack.c.b16 %v2278, %v2277
      %2283 = vrot.lane.b32.xlu0 %v2279, 64
      %v2284 = vpop.permute.xlu0 %2283
      %2285 = vrot.lane.b32.xlu0 %v2280, 64
      %v2286 = vpop.permute.xlu0 %2285
      %2287 = vrot.lane.b32.xlu0 %v2281, 64
      %v2288 = vpop.permute.xlu0 %2287
      %2289 = vrot.lane.b32.xlu0 %v2282, 64
      %v2290 = vpop.permute.xlu0 %2289
      %v2291 = vunpack.c.l.b16 %v1860
      %v2292 = vunpack.c.l.b16 %v1874
      %v2293 = vunpack.c.l.b16 %v1888
      %v2294 = vunpack.c.l.b16 %v1902
      %v2295 = vunpack.c.l.b16 %v1916
      %v2296 = vunpack.c.l.b16 %v1930
      %v2297 = vunpack.c.l.b16 %v1944
      %v2298 = vunpack.c.l.b16 %v1958
      %v2299 = vpack.c.b16 %v2292, %v2291
      %v2300 = vpack.c.b16 %v2294, %v2293
      %v2301 = vpack.c.b16 %v2296, %v2295
      %v2302 = vpack.c.b16 %v2298, %v2297
      %2303 = vrot.lane.b32.xlu0 %v2299, 96
      %v2304 = vpop.permute.xlu0 %2303
      %2305 = vrot.lane.b32.xlu0 %v2300, 96
      %v2306 = vpop.permute.xlu0 %2305
      %2307 = vrot.lane.b32.xlu0 %v2301, 96
      %v2308 = vpop.permute.xlu0 %2307
      %2309 = vrot.lane.b32.xlu0 %v2302, 96
      %v2310 = vpop.permute.xlu0 %2309
      %vm2311 = vcmask 261120
      %v2314 = vsel %vm2311, %v1967, %v1992
      %v2317 = vsel %vm2311, %v1968, %v1994
      %v2320 = vsel %vm2311, %v1969, %v1996
      %v2323 = vsel %vm2311, %v1970, %v1998
      %vm2324 = vcmask 523264
      %v2326 = vsel %vm2324, %v2314, %v2012
      %v2328 = vsel %vm2324, %v2317, %v2014
      %v2330 = vsel %vm2324, %v2320, %v2016
      %v2332 = vsel %vm2324, %v2323, %v2018
      %vm2333 = vcmask 785408
      %v2335 = vsel %vm2333, %v2326, %v2040
      %v2338 = vsel %vm2333, %v2328, %v2042
      %v2341 = vsel %vm2333, %v2330, %v2044
      %v2344 = vsel %vm2333, %v2332, %v2046
      %v2348 = vsel %vm2311, %v2063, %v2080
      %v2351 = vsel %vm2311, %v2064, %v2082
      %v2354 = vsel %vm2311, %v2065, %v2084
      %v2357 = vsel %vm2311, %v2066, %v2086
      %v2359 = vsel %vm2324, %v2348, %v2108
      %v2361 = vsel %vm2324, %v2351, %v2110
      %v2363 = vsel %vm2324, %v2354, %v2112
      %v2365 = vsel %vm2324, %v2357, %v2114
      %v2367 = vsel %vm2333, %v2359, %v2128
      %v2370 = vsel %vm2333, %v2361, %v2130
      %v2373 = vsel %vm2333, %v2363, %v2132
      %v2376 = vsel %vm2333, %v2365, %v2134
      %v2380 = vsel %vm2311, %v2143, %v2168
      %v2383 = vsel %vm2311, %v2144, %v2170
      %v2386 = vsel %vm2311, %v2145, %v2172
      %v2389 = vsel %vm2311, %v2146, %v2174
      %v2391 = vsel %vm2324, %v2380, %v2188
      %v2393 = vsel %vm2324, %v2383, %v2190
      %v2395 = vsel %vm2324, %v2386, %v2192
      %v2397 = vsel %vm2324, %v2389, %v2194
      %v2399 = vsel %vm2333, %v2391, %v2216
      %v2402 = vsel %vm2333, %v2393, %v2218
      %v2405 = vsel %vm2333, %v2395, %v2220
      %v2408 = vsel %vm2333, %v2397, %v2222
      %v2412 = vsel %vm2311, %v2239, %v2256
      %v2415 = vsel %vm2311, %v2240, %v2258
      %v2418 = vsel %vm2311, %v2241, %v2260
      %v2421 = vsel %vm2311, %v2242, %v2262
      %v2423 = vsel %vm2324, %v2412, %v2284
      %v2425 = vsel %vm2324, %v2415, %v2286
      %v2427 = vsel %vm2324, %v2418, %v2288
      %v2429 = vsel %vm2324, %v2421, %v2290
      %v2431 = vsel %vm2333, %v2423, %v2304
      %v2434 = vsel %vm2333, %v2425, %v2306
      %v2437 = vsel %vm2333, %v2427, %v2308
      %v2440 = vsel %vm2333, %v2429, %v2310
      %v2442 = vld [vmem:[%s3] sm:$0xf]
      %v2443 = vld [vmem:[%s3 + $0x4] sm:$0xf]
      %v2444 = vld [vmem:[%s3 + $0x8] sm:$0xf]
      %v2445 = vld [vmem:[%s3 + $0xc] sm:$0xf]
      %v2446 = vld [vmem:[%s3 + $0x10] sm:$0xf]
      %v2447 = vld [vmem:[%s3 + $0x14] sm:$0xf]
      %v2448 = vld [vmem:[%s3 + $0x18] sm:$0xf]
      %v2449 = vld [vmem:[%s3 + $0x1c] sm:$0xf]
      %v2450 = vld [vmem:[%s3 + $0x20] sm:$0xf]
      %v2451 = vld [vmem:[%s3 + $0x24] sm:$0xf]
      %v2452 = vld [vmem:[%s3 + $0x28] sm:$0xf]
      %v2453 = vld [vmem:[%s3 + $0x2c] sm:$0xf]
      %v2454 = vld [vmem:[%s3 + $0x30] sm:$0xf]
      %v2455 = vld [vmem:[%s3 + $0x34] sm:$0xf]
      %v2456 = vld [vmem:[%s3 + $0x38] sm:$0xf]
      %v2457 = vld [vmem:[%s3 + $0x3c] sm:$0xf]
      %v2458 = vld [vmem:[%s3 + $0x40] sm:$0xf]
      %v2459 = vld [vmem:[%s3 + $0x44] sm:$0xf]
      %v2460 = vld [vmem:[%s3 + $0x48] sm:$0xf]
      %v2461 = vld [vmem:[%s3 + $0x4c] sm:$0xf]
      %v2462 = vld [vmem:[%s3 + $0x50] sm:$0xf]
      %v2463 = vld [vmem:[%s3 + $0x54] sm:$0xf]
      %v2464 = vld [vmem:[%s3 + $0x58] sm:$0xf]
      %v2465 = vld [vmem:[%s3 + $0x5c] sm:$0xf]
      %v2466 = vld [vmem:[%s3 + $0x60] sm:$0xf]
      %v2467 = vld [vmem:[%s3 + $0x64] sm:$0xf]
      %v2468 = vld [vmem:[%s3 + $0x68] sm:$0xf]
      %v2469 = vld [vmem:[%s3 + $0x6c] sm:$0xf]
      %v2470 = vld [vmem:[%s3 + $0x70] sm:$0xf]
      %v2471 = vld [vmem:[%s3 + $0x74] sm:$0xf]
      %v2472 = vld [vmem:[%s3 + $0x78] sm:$0xf]
      %v2473 = vld [vmem:[%s3 + $0x7c] sm:$0xf]
      %v2474 = vld [vmem:[%s3 + $0x80] sm:$0xf]
      %v2475 = vld [vmem:[%s3 + $0x84] sm:$0xf]
      %v2476 = vld [vmem:[%s3 + $0x88] sm:$0xf]
      %v2477 = vld [vmem:[%s3 + $0x8c] sm:$0xf]
      %v2478 = vld [vmem:[%s3 + $0x90] sm:$0xf]
      %v2479 = vld [vmem:[%s3 + $0x94] sm:$0xf]
      %v2480 = vld [vmem:[%s3 + $0x98] sm:$0xf]
      %v2481 = vld [vmem:[%s3 + $0x9c] sm:$0xf]
      %v2482 = vld [vmem:[%s3 + $0xa0] sm:$0xf]
      %v2483 = vld [vmem:[%s3 + $0xa4] sm:$0xf]
      %v2484 = vld [vmem:[%s3 + $0xa8] sm:$0xf]
      %v2485 = vld [vmem:[%s3 + $0xac] sm:$0xf]
      %v2486 = vld [vmem:[%s3 + $0xb0] sm:$0xf]
      %v2487 = vld [vmem:[%s3 + $0xb4] sm:$0xf]
      %v2488 = vld [vmem:[%s3 + $0xb8] sm:$0xf]
      %v2489 = vld [vmem:[%s3 + $0xbc] sm:$0xf]
      %v2490 = vld [vmem:[%s3 + $0xc0] sm:$0xf]
      %v2491 = vld [vmem:[%s3 + $0xc4] sm:$0xf]
      %v2492 = vld [vmem:[%s3 + $0xc8] sm:$0xf]
      %v2493 = vld [vmem:[%s3 + $0xcc] sm:$0xf]
      %v2494 = vld [vmem:[%s3 + $0xd0] sm:$0xf]
      %v2495 = vld [vmem:[%s3 + $0xd4] sm:$0xf]
      %v2496 = vld [vmem:[%s3 + $0xd8] sm:$0xf]
      %v2497 = vld [vmem:[%s3 + $0xdc] sm:$0xf]
      %v2498 = vld [vmem:[%s3 + $0xe0] sm:$0xf]
      %v2499 = vld [vmem:[%s3 + $0xe4] sm:$0xf]
      %v2500 = vld [vmem:[%s3 + $0xe8] sm:$0xf]
      %v2501 = vld [vmem:[%s3 + $0xec] sm:$0xf]
      %v2502 = vld [vmem:[%s3 + $0xf0] sm:$0xf]
      %v2503 = vld [vmem:[%s3 + $0xf4] sm:$0xf]
      %v2504 = vld [vmem:[%s3 + $0xf8] sm:$0xf]
      %v2505 = vld [vmem:[%s3 + $0xfc] sm:$0xf]
      %v2506 = vld [vmem:[%s4] sm:$0x1]
      %v2508 = vlaneseq
      %v2509 = vshrl.u32 %v2508, 7
      %v2510 = vsub.s32 0, %v2509
      %v2511 = vrot.slane %v2506, %v2510
      %v2577 = vunpack.c.l.b16 %v2442
      %v2578 = vunpack.c.l.b16 %v2443
      %v2579 = vunpack.c.l.b16 %v2444
      %v2580 = vunpack.c.l.b16 %v2445
      %v2581 = vunpack.c.l.b16 %v2446
      %v2582 = vunpack.c.l.b16 %v2447
      %v2583 = vunpack.c.l.b16 %v2448
      %v2584 = vunpack.c.l.b16 %v2449
      %v2585 = vunpack.c.l.b16 %v2450
      %v2586 = vunpack.c.l.b16 %v2451
      %v2587 = vunpack.c.l.b16 %v2452
      %v2588 = vunpack.c.l.b16 %v2453
      %v2589 = vunpack.c.l.b16 %v2454
      %v2590 = vunpack.c.l.b16 %v2455
      %v2591 = vunpack.c.l.b16 %v2456
      %v2592 = vunpack.c.l.b16 %v2457
      %v2593 = vunpack.c.l.b16 %v2458
      %v2594 = vunpack.c.l.b16 %v2459
      %v2595 = vunpack.c.l.b16 %v2460
      %v2596 = vunpack.c.l.b16 %v2461
      %v2597 = vunpack.c.l.b16 %v2462
      %v2598 = vunpack.c.l.b16 %v2463
      %v2599 = vunpack.c.l.b16 %v2464
      %v2600 = vunpack.c.l.b16 %v2465
      %v2601 = vunpack.c.l.b16 %v2466
      %v2602 = vunpack.c.l.b16 %v2467
      %v2603 = vunpack.c.l.b16 %v2468
      %v2604 = vunpack.c.l.b16 %v2469
      %v2605 = vunpack.c.l.b16 %v2470
      %v2606 = vunpack.c.l.b16 %v2471
      %v2607 = vunpack.c.l.b16 %v2472
      %v2608 = vunpack.c.l.b16 %v2473
      %v2609 = vunpack.c.l.b16 %v2474
      %v2610 = vunpack.c.l.b16 %v2475
      %v2611 = vunpack.c.l.b16 %v2476
      %v2612 = vunpack.c.l.b16 %v2477
      %v2613 = vunpack.c.l.b16 %v2478
      %v2614 = vunpack.c.l.b16 %v2479
      %v2615 = vunpack.c.l.b16 %v2480
      %v2616 = vunpack.c.l.b16 %v2481
      %v2617 = vunpack.c.l.b16 %v2482
      %v2618 = vunpack.c.l.b16 %v2483
      %v2619 = vunpack.c.l.b16 %v2484
      %v2620 = vunpack.c.l.b16 %v2485
      %v2621 = vunpack.c.l.b16 %v2486
      %v2622 = vunpack.c.l.b16 %v2487
      %v2623 = vunpack.c.l.b16 %v2488
      %v2624 = vunpack.c.l.b16 %v2489
      %v2625 = vunpack.c.l.b16 %v2490
      %v2626 = vunpack.c.l.b16 %v2491
      %v2627 = vunpack.c.l.b16 %v2492
      %v2628 = vunpack.c.l.b16 %v2493
      %v2629 = vunpack.c.l.b16 %v2494
      %v2630 = vunpack.c.l.b16 %v2495
      %v2631 = vunpack.c.l.b16 %v2496
      %v2632 = vunpack.c.l.b16 %v2497
      %v2633 = vunpack.c.l.b16 %v2498
      %v2634 = vunpack.c.l.b16 %v2499
      %v2635 = vunpack.c.l.b16 %v2500
      %v2636 = vunpack.c.l.b16 %v2501
      %v2637 = vunpack.c.l.b16 %v2502
      %v2638 = vunpack.c.l.b16 %v2503
      %v2639 = vunpack.c.l.b16 %v2504
      %v2640 = vunpack.c.l.b16 %v2505
      %v2641 = vpack.c.b16 %v2578, %v2577
      %v2642 = vpack.c.b16 %v2580, %v2579
      %v2643 = vpack.c.b16 %v2582, %v2581
      %v2644 = vpack.c.b16 %v2584, %v2583
      %v2645 = vpack.c.b16 %v2586, %v2585
      %v2646 = vpack.c.b16 %v2588, %v2587
      %v2647 = vpack.c.b16 %v2590, %v2589
      %v2648 = vpack.c.b16 %v2592, %v2591
      %v2649 = vpack.c.b16 %v2594, %v2593
      %v2650 = vpack.c.b16 %v2596, %v2595
      %v2651 = vpack.c.b16 %v2598, %v2597
      %v2652 = vpack.c.b16 %v2600, %v2599
      %v2653 = vpack.c.b16 %v2602, %v2601
      %v2654 = vpack.c.b16 %v2604, %v2603
      %v2655 = vpack.c.b16 %v2606, %v2605
      %v2656 = vpack.c.b16 %v2608, %v2607
      %v2657 = vpack.c.b16 %v2610, %v2609
      %v2658 = vpack.c.b16 %v2612, %v2611
      %v2659 = vpack.c.b16 %v2614, %v2613
      %v2660 = vpack.c.b16 %v2616, %v2615
      %v2661 = vpack.c.b16 %v2618, %v2617
      %v2662 = vpack.c.b16 %v2620, %v2619
      %v2663 = vpack.c.b16 %v2622, %v2621
      %v2664 = vpack.c.b16 %v2624, %v2623
      %v2665 = vpack.c.b16 %v2626, %v2625
      %v2666 = vpack.c.b16 %v2628, %v2627
      %v2667 = vpack.c.b16 %v2630, %v2629
      %v2668 = vpack.c.b16 %v2632, %v2631
      %v2669 = vpack.c.b16 %v2634, %v2633
      %v2670 = vpack.c.b16 %v2636, %v2635
      %v2671 = vpack.c.b16 %v2638, %v2637
      %v2672 = vpack.c.b16 %v2640, %v2639
      %2705 = vmatprep.subr.bf16.mxu0 0
      %2706 = vmatpush1.bf16.msra.mxu0 %v2648
      %2707 = vmatprep.subr.bf16.mxu0 0
      %2708 = vmatpush1.bf16.msra.mxu0 %v2647
      %2709 = vmatprep.subr.bf16.mxu0 0
      %2710 = vmatpush1.bf16.msra.mxu0 %v2646
      %2711 = vmatprep.subr.bf16.mxu0 0
      %2712 = vmatpush1.bf16.msra.mxu0 %v2645
      %2713 = vmatprep.subr.bf16.mxu0 0
      %2714 = vmatpush1.bf16.msra.mxu0 %v2644
      %2715 = vmatprep.subr.bf16.mxu0 0
      %2716 = vmatpush1.bf16.msra.mxu0 %v2643
      %2717 = vmatprep.subr.bf16.mxu0 0
      %2718 = vmatpush1.bf16.msra.mxu0 %v2642
      %2719 = vmatprep.subr.bf16.mxu0 0
      %2720 = vmatpush1.bf16.msra.mxu0 %v2641
      %2721 = vmatprep.subr.bf16.mxu0 0
      %2722 = vmatpush2.bf16.msra.mxu0 %v2656
      %2723 = vmatprep.subr.bf16.mxu0 0
      %2724 = vmatpush2.bf16.msra.mxu0 %v2655
      %2725 = vmatprep.subr.bf16.mxu0 0
      %2726 = vmatpush2.bf16.msra.mxu0 %v2654
      %2727 = vmatprep.subr.bf16.mxu0 0
      %2728 = vmatpush2.bf16.msra.mxu0 %v2653
      %2729 = vmatprep.subr.bf16.mxu0 0
      %2730 = vmatpush2.bf16.msra.mxu0 %v2652
      %2731 = vmatprep.subr.bf16.mxu0 0
      %2732 = vmatpush2.bf16.msra.mxu0 %v2651
      %2733 = vmatprep.subr.bf16.mxu0 0
      %2734 = vmatpush2.bf16.msra.mxu0 %v2650
      %2735 = vmatprep.subr.bf16.mxu0 0
      %2736 = vmatpush2.bf16.msra.mxu0 %v2649
      %2737 = vmatprep.mubr.bf16.mxu0 %v2367
      %2738 = vmatmul.mubr.bf16.gmra.mxu0 %v2335
      %v2739 = vpop.f32.mrf.mxu0
      %v2740 = vadd.f32 %v2511, %v2739
      %v2741 = vpop.f32.mrf.mxu0
      %v2742 = vpop.f32.mrf.mxu0
      %v2743 = vadd.f32 %v2511, %v2742
      %v2744 = vpop.f32.mrf.mxu0
      %2745 = vmatprep.mubr.bf16.mxu0 %v2370
      %2746 = vmatmul.mubr.bf16.gmra.mxu0 %v2338
      %v2747 = vpop.f32.mrf.mxu0
      %v2748 = vadd.f32 %v2511, %v2747
      %v2749 = vpop.f32.mrf.mxu0
      %v2750 = vpop.f32.mrf.mxu0
      %v2751 = vadd.f32 %v2511, %v2750
      %v2752 = vpop.f32.mrf.mxu0
      %2753 = vmatprep.mubr.bf16.mxu0 %v2373
      %2754 = vmatmul.mubr.bf16.gmra.mxu0 %v2341
      %v2755 = vpop.f32.mrf.mxu0
      %v2756 = vadd.f32 %v2511, %v2755
      %v2757 = vpop.f32.mrf.mxu0
      %v2758 = vpop.f32.mrf.mxu0
      %v2759 = vadd.f32 %v2511, %v2758
      %v2760 = vpop.f32.mrf.mxu0
      %2761 = vmatprep.mubr.bf16.mxu0 %v2376
      %2762 = vmatmul.mubr.bf16.gmra.mxu0 %v2344
      %v2763 = vpop.f32.mrf.mxu0
      %v2764 = vadd.f32 %v2511, %v2763
      %v2765 = vpop.f32.mrf.mxu0
      %v2766 = vpop.f32.mrf.mxu0
      %v2767 = vadd.f32 %v2511, %v2766
      %v2768 = vpop.f32.mrf.mxu0
      %2769 = vdwg.mxu0
      %2770 = vmatprep.subr.bf16.mxu0 0
      %2771 = vmatpush1.bf16.msra.mxu0 %v2664
      %2772 = vmatprep.subr.bf16.mxu0 0
      %2773 = vmatpush1.bf16.msra.mxu0 %v2663
      %2774 = vmatprep.subr.bf16.mxu0 0
      %2775 = vmatpush1.bf16.msra.mxu0 %v2662
      %2776 = vmatprep.subr.bf16.mxu0 0
      %2777 = vmatpush1.bf16.msra.mxu0 %v2661
      %2778 = vmatprep.subr.bf16.mxu0 0
      %2779 = vmatpush1.bf16.msra.mxu0 %v2660
      %2780 = vmatprep.subr.bf16.mxu0 0
      %2781 = vmatpush1.bf16.msra.mxu0 %v2659
      %2782 = vmatprep.subr.bf16.mxu0 0
      %2783 = vmatpush1.bf16.msra.mxu0 %v2658
      %2784 = vmatprep.subr.bf16.mxu0 0
      %2785 = vmatpush1.bf16.msra.mxu0 %v2657
      %2786 = vmatprep.subr.bf16.mxu0 0
      %2787 = vmatpush2.bf16.msra.mxu0 %v2672
      %2788 = vmatprep.subr.bf16.mxu0 0
      %2789 = vmatpush2.bf16.msra.mxu0 %v2671
      %2790 = vmatprep.subr.bf16.mxu0 0
      %2791 = vmatpush2.bf16.msra.mxu0 %v2670
      %2792 = vmatprep.subr.bf16.mxu0 0
      %2793 = vmatpush2.bf16.msra.mxu0 %v2669
      %2794 = vmatprep.subr.bf16.mxu0 0
      %2795 = vmatpush2.bf16.msra.mxu0 %v2668
      %2796 = vmatprep.subr.bf16.mxu0 0
      %2797 = vmatpush2.bf16.msra.mxu0 %v2667
      %2798 = vmatprep.subr.bf16.mxu0 0
      %2799 = vmatpush2.bf16.msra.mxu0 %v2666
      %2800 = vmatprep.subr.bf16.mxu0 0
      %2801 = vmatpush2.bf16.msra.mxu0 %v2665
      %2802 = vmatprep.mubr.bf16.mxu0 %v2431
      %2803 = vmatmul.mubr.bf16.gmra.mxu0 %v2399
      %v2804 = vpop.f32.mrf.mxu0
      %v2805 = vadd.f32 %v2740, %v2804
      %v2806 = vpop.f32.mrf.mxu0
      %v2807 = vpop.f32.mrf.mxu0
      %v2808 = vadd.f32 %v2743, %v2807
      %v2809 = vpop.f32.mrf.mxu0
      %2810 = vmatprep.mubr.bf16.mxu0 %v2434
      %2811 = vmatmul.mubr.bf16.gmra.mxu0 %v2402
      %v2812 = vpop.f32.mrf.mxu0
      %v2813 = vadd.f32 %v2748, %v2812
      %v2814 = vpop.f32.mrf.mxu0
      %v2815 = vpop.f32.mrf.mxu0
      %v2816 = vadd.f32 %v2751, %v2815
      %v2817 = vpop.f32.mrf.mxu0
      %2818 = vmatprep.mubr.bf16.mxu0 %v2437
      %2819 = vmatmul.mubr.bf16.gmra.mxu0 %v2405
      %v2820 = vpop.f32.mrf.mxu0
      %v2821 = vadd.f32 %v2756, %v2820
      %v2822 = vpop.f32.mrf.mxu0
      %v2823 = vpop.f32.mrf.mxu0
      %v2824 = vadd.f32 %v2759, %v2823
      %v2825 = vpop.f32.mrf.mxu0
      %2826 = vmatprep.mubr.bf16.mxu0 %v2440
      %2827 = vmatmul.mubr.bf16.gmra.mxu0 %v2408
      %v2828 = vpop.f32.mrf.mxu0
      %v2829 = vadd.f32 %v2764, %v2828
      %v2830 = vpop.f32.mrf.mxu0
      %v2831 = vpop.f32.mrf.mxu0
      %v2832 = vadd.f32 %v2767, %v2831
      %v2833 = vpop.f32.mrf.mxu0
      %2834 = vdwg.mxu0
      %v2835 = vmax.f32 %v2805, 0.0
      %v2836 = vmax.f32 %v2808, 0.0
      %v2837 = vmax.f32 %v2813, 0.0
      %v2838 = vmax.f32 %v2816, 0.0
      %v2839 = vmax.f32 %v2821, 0.0
      %v2840 = vmax.f32 %v2824, 0.0
      %v2841 = vmax.f32 %v2829, 0.0
      %v2842 = vmax.f32 %v2832, 0.0
      %v2843 = vpack.c.bf16 %v2836, %v2835
      %v2844 = vpack.c.bf16 %v2838, %v2837
      %v2845 = vpack.c.bf16 %v2840, %v2839
      %v2846 = vpack.c.bf16 %v2842, %v2841
      %v2851 = vunpack.c.l.b16 %v2843
      %v2852 = vunpack.c.h.b16 %v2843
      %v2853 = vunpack.c.l.b16 %v2844
      %v2854 = vunpack.c.h.b16 %v2844
      %v2855 = vunpack.c.l.b16 %v2845
      %v2856 = vunpack.c.h.b16 %v2845
      %v2857 = vunpack.c.l.b16 %v2846
      %v2858 = vunpack.c.h.b16 %v2846
      %v2859 = vpack.c.b16 %v2851, %v2851
      %v2860 = vpack.c.b16 %v2852, %v2852
      %v2861 = vpack.c.b16 %v2853, %v2853
      %v2862 = vpack.c.b16 %v2854, %v2854
      %v2863 = vpack.c.b16 %v2855, %v2855
      %v2864 = vpack.c.b16 %v2856, %v2856
      %v2865 = vpack.c.b16 %v2857, %v2857
      %v2866 = vpack.c.b16 %v2858, %v2858
      %vm2875 = vcmask 519168
      %2876 = vst.msk [vmem:[%s224] sm:$0xf] %vm2875, %v2859
      %2877 = vst.msk [vmem:[%s224 + $0x4] sm:$0xf] %vm2875, %v2860
      %2878 = vst.msk [vmem:[%s224 + $0x8] sm:$0xf] %vm2875, %v2861
      %2879 = vst.msk [vmem:[%s224 + $0xc] sm:$0xf] %vm2875, %v2862
      %2880 = vst.msk [vmem:[%s224 + $0x10] sm:$0xf] %vm2875, %v2863
      %2881 = vst.msk [vmem:[%s224 + $0x14] sm:$0xf] %vm2875, %v2864
      %2882 = vst.msk [vmem:[%s224 + $0x18] sm:$0xf] %vm2875, %v2865
      %2883 = vst.msk [vmem:[%s224 + $0x1c] sm:$0xf] %vm2875, %v2866
      %p2884 = scmp.lt.s32.totalorder %s16, 1
      %s2885 = scalar_select %p2884, %s16, 1
      %s2886 = smul.addr %s2885, 8
      %s2887 = smul.addr %s2886, 4
      %s2888 = scalar_lea.vmem %s5, %s2887
      // Predicated region
      $region41: #{encoder_forward.2} parent=39 // pred_check
        %p2889 = pneg %p144
      $region42: #{encoder_forward.2} parent=39 // pred_check_branch
        %2891 = sbr.rel (%p2889) target = $region44
      $region43: #{encoder_forward.2} parent=39 // pred_region
        _
      $region44: #{encoder_forward.2} parent=39 // pred_fallthru
        _
    $region40: #{encoder_forward.2} parent=5 // pred_fallthru
      _
    %p2892 = scmp.le.s32.totalorder 2, %s11
    // Predicated region
    $region45: #{encoder_forward.2} parent=5 // pred_check
      %p2893 = pneg %p2892
    $region46: #{encoder_forward.2} parent=5 // pred_check_branch
      %2895 = sbr.rel (%p2893) target = $region48
    $region47: #{encoder_forward.2} parent=5 // pred_region
      %s2896 = ssub.s32 %s11, 2
      // Predicated region
      $region49: #{encoder_forward.2} parent=47 // pred_check
        %p2897 = pneg %p150
      $region50: #{encoder_forward.2} parent=47 // pred_check_branch
        %2899 = sbr.rel (%p2897) target = $region52
      $region51: #{encoder_forward.2} parent=47 // pred_region
        %p2900 = scmp.lt.s32.totalorder %s17, 1
        %s2901 = scalar_select %p2900, %s17, 1
        %s2902 = smul.addr %s2901, 8
        %s2903 = smul.addr %s2902, 4
        %s2904 = scalar_lea.vmem %s5, %s2903
      $region52: #{encoder_forward.2} parent=47 // pred_fallthru
        _
    $region48: #{encoder_forward.2} parent=5 // pred_fallthru
      _
  $region6: #{encoder_forward.2} parent=0 // loop_footer
    %s15 = sadd.s32 1, %s11
  $region7: #{encoder_forward.2} parent=0 // loop_footer_branch
    %10 = sbr.rel target = $region3
  $region8: #{encoder_forward.2} parent=0 // loop_exit
    _

// kernel: encoder_forward.3
$region0: #{encoder_forward.3}
  #allocation0 [shape = 'u32[]', space=smem, size = 0x4, offset = 0x4, fixed_abs, tag = 'smem constant byte address 0x4 - core index']
  #allocation1 [shape = 'u32[144,128]{1,0:T(1,128)}', space=vmem, size = 0x12000, scoped, tag = 'internal scratch']
  #allocation2 [shape = 'bf16[1,2048]{1,0:T(2,128)(2,1)}', space=vmem, size = 0x2000, scoped, tag = 'scratch operand']
  %s0 = inlined_call_operand.vmem [shape: bf16[2,16,1024], index: 0, kind: input, shape index: {}]
  %s1 = inlined_call_operand.vmem [shape: bf16[1024,128], index: 1, kind: input, shape index: {}]
  %s2 = inlined_call_operand.vmem [shape: f32[1,128], index: 2, kind: input, shape index: {}]
  %s3 = inlined_call_operand.vmem [shape: bf16[2048,128], index: 3, kind: input, shape index: {}]
  %s4 = inlined_call_operand.vmem [shape: f32[1,128], index: 4, kind: input, shape index: {}]
  %s5 = inlined_call_operand.vmem [shape: f32[2,1,128], index: 5, kind: output, shape index: {}]
  %s6 = sld [smem:[#allocation0]]
  $region53: #{encoder_forward.3} parent=0
    _
  %s8 = ssub.s32 1, %s6
  %s9 = scalar_select 0, %s8, %s6
  loop: start=0, step=1, limit=4
  $region2: #{encoder_forward.3} parent=0 // loop_pre_header
    _
  $region3: #{encoder_forward.3} parent=0 // loop_header
    %s11 = sphi 0, %s15
    %p12 = scmp.ge.s32.totalorder %s11, 4
    %s21 = sphi 0, %s23
    %s24 = sphi 0, %s21
    %s25 = sphi 0, %s24
    %s41 = sphi 0, %s25
    %s45 = sphi 0, %s45
    %s47 = sphi 0, %s45
    %s48 = sphi 0, %s47
    %s62 = sphi 0, %s48
    %s66 = sphi 0, %s66
    %s68 = sphi 0, %s66
    %s69 = sphi 0, %s68
    %s83 = sphi 0, %s69
    %s87 = sphi 0, %s87
    %s89 = sphi 0, %s87
    %s90 = sphi 0, %s89
    %s104 = sphi 0, %s90
    %s108 = sphi 0, %s108
    %s110 = sphi 0, %s108
    %s111 = sphi 0, %s110
    %s125 = sphi 0, %s111
    %s131 = sphi 0, %s133
    %s134 = sphi 0, %s131
    %s135 = sphi 0, %s134
    %s151 = sphi 0, %s135
  $region4: #{encoder_forward.3} parent=0 // loop_header_branch
    %14 = sbr.rel (%p12) target = $region8
  $region5: #{encoder_forward.3} parent=0 // loop_body
    %s16 = ssub.s32 %s11, 1
    %s17 = ssub.s32 %s11, 2
    %s18 = sadd.s32 %s11, 1
    %s19 = ssub.s32 %s11, %s18
    %p20 = scmp.eq.s32.totalorder %s19, 0
    %s22 = sadd.s32 %s21, 1
    %s23 = scalar_select %p20, %s21, %s22
    %p26 = pneg %p20
    %p27 = scmp.eq.s32.totalorder %s11, 1
    %p28 = por %p26, %p27
    %p29 = scmp.ne.s32.totalorder %s21, %s24
    %p30 = scmp.eq.s32.totalorder %s11, 0
    %p31 = por %p29, %p30
    %p32 = scmp.ne.s32.totalorder %s21, %s24
    %p33 = scmp.eq.s32.totalorder %s16, 1
    %p34 = por %p32, %p33
    %p35 = scmp.ne.s32.totalorder %s24, %s25
    %p36 = scmp.eq.s32.totalorder %s16, 0
    %p37 = por %p35, %p36
    %p38 = scmp.ne.s32.totalorder %s24, %s25
    %p39 = scmp.eq.s32.totalorder %s17, 1
    %p40 = por %p38, %p39
    %p42 = scmp.ne.s32.totalorder %s25, %s41
    %p43 = scmp.eq.s32.totalorder %s17, 0
    %p44 = por %p42, %p43
    %s46 = sadd.s32 %s45, 1
    %p49 = scmp.eq.s32.totalorder %s11, 1
    %p50 = scmp.ne.s32.totalorder %s45, %s47
    %p51 = scmp.eq.s32.totalorder %s11, 0
    %p52 = por %p50, %p51
    %p53 = scmp.ne.s32.totalorder %s45, %s47
    %p54 = scmp.eq.s32.totalorder %s16, 1
    %p55 = por %p53, %p54
    %p56 = scmp.ne.s32.totalorder %s47, %s48
    %p57 = scmp.eq.s32.totalorder %s16, 0
    %p58 = por %p56, %p57
    %p59 = scmp.ne.s32.totalorder %s47, %s48
    %p60 = scmp.eq.s32.totalorder %s17, 1
    %p61 = por %p59, %p60
    %p63 = scmp.ne.s32.totalorder %s48, %s62
    %p64 = scmp.eq.s32.totalorder %s17, 0
    %p65 = por %p63, %p64
    %s67 = sadd.s32 %s66, 1
    %p70 = scmp.eq.s32.totalorder %s11, 1
    %p71 = scmp.ne.s32.totalorder %s66, %s68
    %p72 = scmp.eq.s32.totalorder %s11, 0
    %p73 = por %p71, %p72
    %p74 = scmp.ne.s32.totalorder %s66, %s68
    %p75 = scmp.eq.s32.totalorder %s16, 1
    %p76 = por %p74, %p75
    %p77 = scmp.ne.s32.totalorder %s68, %s69
    %p78 = scmp.eq.s32.totalorder %s16, 0
    %p79 = por %p77, %p78
    %p80 = scmp.ne.s32.totalorder %s68, %s69
    %p81 = scmp.eq.s32.totalorder %s17, 1
    %p82 = por %p80, %p81
    %p84 = scmp.ne.s32.totalorder %s69, %s83
    %p85 = scmp.eq.s32.totalorder %s17, 0
    %p86 = por %p84, %p85
    %s88 = sadd.s32 %s87, 1
    %p91 = scmp.eq.s32.totalorder %s11, 1
    %p92 = scmp.ne.s32.totalorder %s87, %s89
    %p93 = scmp.eq.s32.totalorder %s11, 0
    %p94 = por %p92, %p93
    %p95 = scmp.ne.s32.totalorder %s87, %s89
    %p96 = scmp.eq.s32.totalorder %s16, 1
    %p97 = por %p95, %p96
    %p98 = scmp.ne.s32.totalorder %s89, %s90
    %p99 = scmp.eq.s32.totalorder %s16, 0
    %p100 = por %p98, %p99
    %p101 = scmp.ne.s32.totalorder %s89, %s90
    %p102 = scmp.eq.s32.totalorder %s17, 1
    %p103 = por %p101, %p102
    %p105 = scmp.ne.s32.totalorder %s90, %s104
    %p106 = scmp.eq.s32.totalorder %s17, 0
    %p107 = por %p105, %p106
    %s109 = sadd.s32 %s108, 1
    %p112 = scmp.eq.s32.totalorder %s11, 1
    %p113 = scmp.ne.s32.totalorder %s108, %s110
    %p114 = scmp.eq.s32.totalorder %s11, 0
    %p115 = por %p113, %p114
    %p116 = scmp.ne.s32.totalorder %s108, %s110
    %p117 = scmp.eq.s32.totalorder %s16, 1
    %p118 = por %p116, %p117
    %p119 = scmp.ne.s32.totalorder %s110, %s111
    %p120 = scmp.eq.s32.totalorder %s16, 0
    %p121 = por %p119, %p120
    %p122 = scmp.ne.s32.totalorder %s110, %s111
    %p123 = scmp.eq.s32.totalorder %s17, 1
    %p124 = por %p122, %p123
    %p126 = scmp.ne.s32.totalorder %s111, %s125
    %p127 = scmp.eq.s32.totalorder %s17, 0
    %p128 = por %p126, %p127
    %s129 = ssub.s32 %s11, %s18
    %p130 = scmp.eq.s32.totalorder %s129, 0
    %s132 = sadd.s32 %s131, 1
    %s133 = scalar_select %p130, %s131, %s132
    %p136 = pneg %p130
    %p137 = scmp.eq.s32.totalorder %s11, 1
    %p138 = por %p136, %p137
    %p139 = scmp.ne.s32.totalorder %s131, %s134
    %p140 = scmp.eq.s32.totalorder %s11, 0
    %p141 = por %p139, %p140
    %p142 = scmp.ne.s32.totalorder %s131, %s134
    %p143 = scmp.eq.s32.totalorder %s16, 1
    %p144 = por %p142, %p143
    %p145 = scmp.ne.s32.totalorder %s134, %s135
    %p146 = scmp.eq.s32.totalorder %s16, 0
    %p147 = por %p145, %p146
    %p148 = scmp.ne.s32.totalorder %s134, %s135
    %p149 = scmp.eq.s32.totalorder %s17, 1
    %p150 = por %p148, %p149
    %p152 = scmp.ne.s32.totalorder %s135, %s151
    %p153 = scmp.eq.s32.totalorder %s17, 0
    %p154 = por %p152, %p153
    %p155 = scmp.le.s32.totalorder 1, %s11
    %p156 = scmp.lt.s32.totalorder %s11, 3
    %p157 = pnand %p155, %p156
    %p158 = pneg %p157
    // Predicated region
    $region9: #{encoder_forward.3} parent=5 // pred_check
      _
    $region10: #{encoder_forward.3} parent=5 // pred_check_branch
      %160 = sbr.rel (%p157) target = $region12
    $region11: #{encoder_forward.3} parent=5 // pred_region
      %s161 = ssub.s32 %s11, 1
      // Predicated region
      $region13: #{encoder_forward.3} parent=11 // pred_check
        %p162 = pneg %p58
      $region14: #{encoder_forward.3} parent=11 // pred_check_branch
        %164 = sbr.rel (%p162) target = $region16
      $region15: #{encoder_forward.3} parent=11 // pred_region
        _
      $region16: #{encoder_forward.3} parent=11 // pred_fallthru
        _
      // Predicated region
      $region17: #{encoder_forward.3} parent=11 // pred_check
        %p165 = pneg %p79
      $region18: #{encoder_forward.3} parent=11 // pred_check_branch
        %167 = sbr.rel (%p165) target = $region20
      $region19: #{encoder_forward.3} parent=11 // pred_region
        _
      $region20: #{encoder_forward.3} parent=11 // pred_fallthru
        _
      // Predicated region
      $region21: #{encoder_forward.3} parent=11 // pred_check
        %p168 = pneg %p100
      $region22: #{encoder_forward.3} parent=11 // pred_check_branch
        %170 = sbr.rel (%p168) target = $region24
      $region23: #{encoder_forward.3} parent=11 // pred_region
        _
      $region24: #{encoder_forward.3} parent=11 // pred_fallthru
        _
      // Predicated region
      $region25: #{encoder_forward.3} parent=11 // pred_check
        %p171 = pneg %p121
      $region26: #{encoder_forward.3} parent=11 // pred_check_branch
        %173 = sbr.rel (%p171) target = $region28
      $region27: #{encoder_forward.3} parent=11 // pred_region
        _
      $region28: #{encoder_forward.3} parent=11 // pred_fallthru
        _
    $region12: #{encoder_forward.3} parent=5 // pred_fallthru
      _
    %p174 = scmp.lt.s32.totalorder %s11, 2
    // Predicated region
    $region29: #{encoder_forward.3} parent=5 // pred_check
      %p175 = pneg %p174
    $region30: #{encoder_forward.3} parent=5 // pred_check_branch
      %177 = sbr.rel (%p175) target = $region32
    $region31: #{encoder_forward.3} parent=5 // pred_region
      // Predicated region
      $region33: #{encoder_forward.3} parent=31 // pred_check
        %p178 = pneg %p31
      $region34: #{encoder_forward.3} parent=31 // pred_check_branch
        %180 = sbr.rel (%p178) target = $region36
      $region35: #{encoder_forward.3} parent=31 // pred_region
        %p181 = scmp.lt.s32.totalorder %s11, 1
        %s182 = scalar_select %p181, %s11, 1
        %s183 = smul.addr %s182, 16
        %s184 = smul.addr %s183, 4
        %s185 = scalar_lea.vmem %s0, %s184
      $region36: #{encoder_forward.3} parent=31 // pred_fallthru
        _
    $region32: #{encoder_forward.3} parent=5 // pred_fallthru
      _
    %p186 = scmp.le.s32.totalorder 1, %s11
    %p187 = scmp.lt.s32.totalorder %s11, 3
    %p188 = pnand %p186, %p187
    %p189 = pneg %p188
    // Predicated region
    $region37: #{encoder_forward.3} parent=5 // pred_check
      _
    $region38: #{encoder_forward.3} parent=5 // pred_check_branch
      %191 = sbr.rel (%p188) target = $region40
    $region39: #{encoder_forward.3} parent=5 // pred_region
      %s192 = ssub.s32 %s11, 1
      %p193 = scmp.lt.s32.totalorder %s16, 1
      %s194 = scalar_select %p193, %s16, 1
      %s195 = smul.addr %s194, 16
      %s196 = smul.addr %s195, 4
      %s197 = scalar_lea.vmem %s0, %s196
      %p198 = pneg %p37
      %p199 = pneg %p34
      %p200 = pneg %p58
      %p201 = pneg %p55
      %p202 = pneg %p79
      %p203 = pneg %p76
      %p204 = pneg %p100
      %p205 = pneg %p97
      %p206 = pneg %p121
      %p207 = pneg %p118
      %p208 = pneg %p147
      %p209 = pneg %p144
      %p210 = scmp.lt.s32.totalorder %s16, 1
      %s211 = scalar_select %p210, %s16, 1
      %s212 = scalar_lea.vmem %s5, %s211
      %p213 = scmp.lt.s32.totalorder %s16, 1
      %s214 = scalar_select %p213, %s16, 1
      %s215 = smul.addr %s214, 16
      %s216 = smul.addr %s215, 4
      %s217 = scalar_lea.vmem %s0, %s216
      %p218 = scmp.lt.s32.totalorder %s16, 1
      %s219 = scalar_select %p218, %s16, 1
      %s220 = scalar_lea.vmem %s5, %s219
      %v222 = vld [vmem:[%s217] sm:$0xff]
      %v223 = vld [vmem:[%s217 + $0x8] sm:$0xff]
      %v224 = vld [vmem:[%s217 + $0x10] sm:$0xff]
      %v225 = vld [vmem:[%s217 + $0x18] sm:$0xff]
      %v226 = vld [vmem:[%s217 + $0x20] sm:$0xff]
      %v227 = vld [vmem:[%s217 + $0x28] sm:$0xff]
      %v228 = vld [vmem:[%s217 + $0x30] sm:$0xff]
      %v229 = vld [vmem:[%s217 + $0x38] sm:$0xff]
      %v230 = vld [vmem:[%s1] sm:$0xf]
      %v231 = vld [vmem:[%s1 + $0x4] sm:$0xf]
      %v232 = vld [vmem:[%s1 + $0x8] sm:$0xf]
      %v233 = vld [vmem:[%s1 + $0xc] sm:$0xf]
      %v234 = vld [vmem:[%s1 + $0x10] sm:$0xf]
      %v235 = vld [vmem:[%s1 + $0x14] sm:$0xf]
      %v236 = vld [vmem:[%s1 + $0x18] sm:$0xf]
      %v237 = vld [vmem:[%s1 + $0x1c] sm:$0xf]
      %v238 = vld [vmem:[%s1 + $0x20] sm:$0xf]
      %v239 = vld [vmem:[%s1 + $0x24] sm:$0xf]
      %v240 = vld [vmem:[%s1 + $0x28] sm:$0xf]
      %v241 = vld [vmem:[%s1 + $0x2c] sm:$0xf]
      %v242 = vld [vmem:[%s1 + $0x30] sm:$0xf]
      %v243 = vld [vmem:[%s1 + $0x34] sm:$0xf]
      %v244 = vld [vmem:[%s1 + $0x38] sm:$0xf]
      %v245 = vld [vmem:[%s1 + $0x3c] sm:$0xf]
      %v246 = vld [vmem:[%s1 + $0x40] sm:$0xf]
      %v247 = vld [vmem:[%s1 + $0x44] sm:$0xf]
      %v248 = vld [vmem:[%s1 + $0x48] sm:$0xf]
      %v249 = vld [vmem:[%s1 + $0x4c] sm:$0xf]
      %v250 = vld [vmem:[%s1 + $0x50] sm:$0xf]
      %v251 = vld [vmem:[%s1 + $0x54] sm:$0xf]
      %v252 = vld [vmem:[%s1 + $0x58] sm:$0xf]
      %v253 = vld [vmem:[%s1 + $0x5c] sm:$0xf]
      %v254 = vld [vmem:[%s1 + $0x60] sm:$0xf]
      %v255 = vld [vmem:[%s1 + $0x64] sm:$0xf]
      %v256 = vld [vmem:[%s1 + $0x68] sm:$0xf]
      %v257 = vld [vmem:[%s1 + $0x6c] sm:$0xf]
      %v258 = vld [vmem:[%s1 + $0x70] sm:$0xf]
      %v259 = vld [vmem:[%s1 + $0x74] sm:$0xf]
      %v260 = vld [vmem:[%s1 + $0x78] sm:$0xf]
      %v261 = vld [vmem:[%s1 + $0x7c] sm:$0xf]
      %v262 = vld [vmem:[%s1 + $0x80] sm:$0xf]
      %v263 = vld [vmem:[%s1 + $0x84] sm:$0xf]
      %v264 = vld [vmem:[%s1 + $0x88] sm:$0xf]
      %v265 = vld [vmem:[%s1 + $0x8c] sm:$0xf]
      %v266 = vld [vmem:[%s1 + $0x90] sm:$0xf]
      %v267 = vld [vmem:[%s1 + $0x94] sm:$0xf]
      %v268 = vld [vmem:[%s1 + $0x98] sm:$0xf]
      %v269 = vld [vmem:[%s1 + $0x9c] sm:$0xf]
      %v270 = vld [vmem:[%s1 + $0xa0] sm:$0xf]
      %v271 = vld [vmem:[%s1 + $0xa4] sm:$0xf]
      %v272 = vld [vmem:[%s1 + $0xa8] sm:$0xf]
      %v273 = vld [vmem:[%s1 + $0xac] sm:$0xf]
      %v274 = vld [vmem:[%s1 + $0xb0] sm:$0xf]
      %v275 = vld [vmem:[%s1 + $0xb4] sm:$0xf]
      %v276 = vld [vmem:[%s1 + $0xb8] sm:$0xf]
      %v277 = vld [vmem:[%s1 + $0xbc] sm:$0xf]
      %v278 = vld [vmem:[%s1 + $0xc0] sm:$0xf]
      %v279 = vld [vmem:[%s1 + $0xc4] sm:$0xf]
      %v280 = vld [vmem:[%s1 + $0xc8] sm:$0xf]
      %v281 = vld [vmem:[%s1 + $0xcc] sm:$0xf]
      %v282 = vld [vmem:[%s1 + $0xd0] sm:$0xf]
      %v283 = vld [vmem:[%s1 + $0xd4] sm:$0xf]
      %v284 = vld [vmem:[%s1 + $0xd8] sm:$0xf]
      %v285 = vld [vmem:[%s1 + $0xdc] sm:$0xf]
      %v286 = vld [vmem:[%s1 + $0xe0] sm:$0xf]
      %v287 = vld [vmem:[%s1 + $0xe4] sm:$0xf]
      %v288 = vld [vmem:[%s1 + $0xe8] sm:$0xf]
      %v289 = vld [vmem:[%s1 + $0xec] sm:$0xf]
      %v290 = vld [vmem:[%s1 + $0xf0] sm:$0xf]
      %v291 = vld [vmem:[%s1 + $0xf4] sm:$0xf]
      %v292 = vld [vmem:[%s1 + $0xf8] sm:$0xf]
      %v293 = vld [vmem:[%s1 + $0xfc] sm:$0xf]
      %v294 = vld [vmem:[%s1 + $0x100] sm:$0xf]
      %v295 = vld [vmem:[%s1 + $0x104] sm:$0xf]
      %v296 = vld [vmem:[%s1 + $0x108] sm:$0xf]
      %v297 = vld [vmem:[%s1 + $0x10c] sm:$0xf]
      %v298 = vld [vmem:[%s1 + $0x110] sm:$0xf]
      %v299 = vld [vmem:[%s1 + $0x114] sm:$0xf]
      %v300 = vld [vmem:[%s1 + $0x118] sm:$0xf]
      %v301 = vld [vmem:[%s1 + $0x11c] sm:$0xf]
      %v302 = vld [vmem:[%s1 + $0x120] sm:$0xf]
      %v303 = vld [vmem:[%s1 + $0x124] sm:$0xf]
      %v304 = vld [vmem:[%s1 + $0x128] sm:$0xf]
      %v305 = vld [vmem:[%s1 + $0x12c] sm:$0xf]
      %v306 = vld [vmem:[%s1 + $0x130] sm:$0xf]
      %v307 = vld [vmem:[%s1 + $0x134] sm:$0xf]
      %v308 = vld [vmem:[%s1 + $0x138] sm:$0xf]
      %v309 = vld [vmem:[%s1 + $0x13c] sm:$0xf]
      %v310 = vld [vmem:[%s1 + $0x140] sm:$0xf]
      %v311 = vld [vmem:[%s1 + $0x144] sm:$0xf]
      %v312 = vld [vmem:[%s1 + $0x148] sm:$0xf]
      %v313 = vld [vmem:[%s1 + $0x14c] sm:$0xf]
      %v314 = vld [vmem:[%s1 + $0x150] sm:$0xf]
      %v315 = vld [vmem:[%s1 + $0x154] sm:$0xf]
      %v316 = vld [vmem:[%s1 + $0x158] sm:$0xf]
      %v317 = vld [vmem:[%s1 + $0x15c] sm:$0xf]
      %v318 = vld [vmem:[%s1 + $0x160] sm:$0xf]
      %v319 = vld [vmem:[%s1 + $0x164] sm:$0xf]
      %v320 = vld [vmem:[%s1 + $0x168] sm:$0xf]
      %v321 = vld [vmem:[%s1 + $0x16c] sm:$0xf]
      %v322 = vld [vmem:[%s1 + $0x170] sm:$0xf]
      %v323 = vld [vmem:[%s1 + $0x174] sm:$0xf]
      %v324 = vld [vmem:[%s1 + $0x178] sm:$0xf]
      %v325 = vld [vmem:[%s1 + $0x17c] sm:$0xf]
      %v326 = vld [vmem:[%s1 + $0x180] sm:$0xf]
      %v327 = vld [vmem:[%s1 + $0x184] sm:$0xf]
      %v328 = vld [vmem:[%s1 + $0x188] sm:$0xf]
      %v329 = vld [vmem:[%s1 + $0x18c] sm:$0xf]
      %v330 = vld [vmem:[%s1 + $0x190] sm:$0xf]
      %v331 = vld [vmem:[%s1 + $0x194] sm:$0xf]
      %v332 = vld [vmem:[%s1 + $0x198] sm:$0xf]
      %v333 = vld [vmem:[%s1 + $0x19c] sm:$0xf]
      %v334 = vld [vmem:[%s1 + $0x1a0] sm:$0xf]
      %v335 = vld [vmem:[%s1 + $0x1a4] sm:$0xf]
      %v336 = vld [vmem:[%s1 + $0x1a8] sm:$0xf]
      %v337 = vld [vmem:[%s1 + $0x1ac] sm:$0xf]
      %v338 = vld [vmem:[%s1 + $0x1b0] sm:$0xf]
      %v339 = vld [vmem:[%s1 + $0x1b4] sm:$0xf]
      %v340 = vld [vmem:[%s1 + $0x1b8] sm:$0xf]
      %v341 = vld [vmem:[%s1 + $0x1bc] sm:$0xf]
      %v342 = vld [vmem:[%s1 + $0x1c0] sm:$0xf]
      %v343 = vld [vmem:[%s1 + $0x1c4] sm:$0xf]
      %v344 = vld [vmem:[%s1 + $0x1c8] sm:$0xf]
      %v345 = vld [vmem:[%s1 + $0x1cc] sm:$0xf]
      %v346 = vld [vmem:[%s1 + $0x1d0] sm:$0xf]
      %v347 = vld [vmem:[%s1 + $0x1d4] sm:$0xf]
      %v348 = vld [vmem:[%s1 + $0x1d8] sm:$0xf]
      %v349 = vld [vmem:[%s1 + $0x1dc] sm:$0xf]
      %v350 = vld [vmem:[%s1 + $0x1e0] sm:$0xf]
      %v351 = vld [vmem:[%s1 + $0x1e4] sm:$0xf]
      %v352 = vld [vmem:[%s1 + $0x1e8] sm:$0xf]
      %v353 = vld [vmem:[%s1 + $0x1ec] sm:$0xf]
      %v354 = vld [vmem:[%s1 + $0x1f0] sm:$0xf]
      %v355 = vld [vmem:[%s1 + $0x1f4] sm:$0xf]
      %v356 = vld [vmem:[%s1 + $0x1f8] sm:$0xf]
      %v357 = vld [vmem:[%s1 + $0x1fc] sm:$0xf]
      %v358 = vld [vmem:[%s2] sm:$0x1]
      %v360 = vlaneseq
      %v361 = vshrl.u32 %v360, 7
      %v362 = vsub.s32 0, %v361
      %v363 = vrot.slane %v358, %v362
      %v373 = vunpack.c.l.b16 %v222
      %v374 = vunpack.c.h.b16 %v222
      %v375 = vunpack.c.l.b16 %v223
      %v376 = vunpack.c.h.b16 %v223
      %v377 = vunpack.c.l.b16 %v224
      %v378 = vunpack.c.h.b16 %v224
      %v379 = vunpack.c.l.b16 %v225
      %v380 = vunpack.c.h.b16 %v225
      %v381 = vunpack.c.l.b16 %v226
      %v382 = vunpack.c.h.b16 %v226
      %v383 = vunpack.c.l.b16 %v227
      %v384 = vunpack.c.h.b16 %v227
      %v385 = vunpack.c.l.b16 %v228
      %v386 = vunpack.c.h.b16 %v228
      %v387 = vunpack.c.l.b16 %v229
      %v388 = vunpack.c.h.b16 %v229
      %v389 = vpack.c.b16 %v381, %v373
      %v390 = vpack.c.b16 %v382, %v374
      %v391 = vpack.c.b16 %v383, %v375
      %v392 = vpack.c.b16 %v384, %v376
      %v393 = vpack.c.b16 %v385, %v377
      %v394 = vpack.c.b16 %v386, %v378
      %v395 = vpack.c.b16 %v387, %v379
      %v396 = vpack.c.b16 %v388, %v380
      %v533 = vunpack.c.l.b16 %v230
      %v534 = vunpack.c.l.b16 %v231
      %v535 = vunpack.c.l.b16 %v232
      %v536 = vunpack.c.l.b16 %v233
      %v537 = vunpack.c.l.b16 %v234
      %v538 = vunpack.c.l.b16 %v235
      %v539 = vunpack.c.l.b16 %v236
      %v540 = vunpack.c.l.b16 %v237
      %v541 = vunpack.c.l.b16 %v238
      %v542 = vunpack.c.l.b16 %v239
      %v543 = vunpack.c.l.b16 %v240
      %v544 = vunpack.c.l.b16 %v241
      %v545 = vunpack.c.l.b16 %v242
      %v546 = vunpack.c.l.b16 %v243
      %v547 = vunpack.c.l.b16 %v244
      %v548 = vunpack.c.l.b16 %v245
      %v549 = vunpack.c.l.b16 %v246
      %v550 = vunpack.c.l.b16 %v247
      %v551 = vunpack.c.l.b16 %v248
      %v552 = vunpack.c.l.b16 %v249
      %v553 = vunpack.c.l.b16 %v250
      %v554 = vunpack.c.l.b16 %v251
      %v555 = vunpack.c.l.b16 %v252
      %v556 = vunpack.c.l.b16 %v253
      %v557 = vunpack.c.l.b16 %v254
      %v558 = vunpack.c.l.b16 %v255
      %v559 = vunpack.c.l.b16 %v256
      %v560 = vunpack.c.l.b16 %v257
      %v561 = vunpack.c.l.b16 %v258
      %v562 = vunpack.c.l.b16 %v259
      %v563 = vunpack.c.l.b16 %v260
      %v564 = vunpack.c.l.b16 %v261
      %v565 = vunpack.c.l.b16 %v262
      %v566 = vunpack.c.l.b16 %v263
      %v567 = vunpack.c.l.b16 %v264
      %v568 = vunpack.c.l.b16 %v265
      %v569 = vunpack.c.l.b16 %v266
      %v570 = vunpack.c.l.b16 %v267
      %v571 = vunpack.c.l.b16 %v268
      %v572 = vunpack.c.l.b16 %v269
      %v573 = vunpack.c.l.b16 %v270
      %v574 = vunpack.c.l.b16 %v271
      %v575 = vunpack.c.l.b16 %v272
      %v576 = vunpack.c.l.b16 %v273
      %v577 = vunpack.c.l.b16 %v274
      %v578 = vunpack.c.l.b16 %v275
      %v579 = vunpack.c.l.b16 %v276
      %v580 = vunpack.c.l.b16 %v277
      %v581 = vunpack.c.l.b16 %v278
      %v582 = vunpack.c.l.b16 %v279
      %v583 = vunpack.c.l.b16 %v280
      %v584 = vunpack.c.l.b16 %v281
      %v585 = vunpack.c.l.b16 %v282
      %v586 = vunpack.c.l.b16 %v283
      %v587 = vunpack.c.l.b16 %v284
      %v588 = vunpack.c.l.b16 %v285
      %v589 = vunpack.c.l.b16 %v286
      %v590 = vunpack.c.l.b16 %v287
      %v591 = vunpack.c.l.b16 %v288
      %v592 = vunpack.c.l.b16 %v289
      %v593 = vunpack.c.l.b16 %v290
      %v594 = vunpack.c.l.b16 %v291
      %v595 = vunpack.c.l.b16 %v292
      %v596 = vunpack.c.l.b16 %v293
      %v597 = vunpack.c.l.b16 %v294
      %v598 = vunpack.c.l.b16 %v295
      %v599 = vunpack.c.l.b16 %v296
      %v600 = vunpack.c.l.b16 %v297
      %v601 = vunpack.c.l.b16 %v298
      %v602 = vunpack.c.l.b16 %v299
      %v603 = vunpack.c.l.b16 %v300
      %v604 = vunpack.c.l.b16 %v301
      %v605 = vunpack.c.l.b16 %v302
      %v606 = vunpack.c.l.b16 %v303
      %v607 = vunpack.c.l.b16 %v304
      %v608 = vunpack.c.l.b16 %v305
      %v609 = vunpack.c.l.b16 %v306
      %v610 = vunpack.c.l.b16 %v307
      %v611 = vunpack.c.l.b16 %v308
      %v612 = vunpack.c.l.b16 %v309
      %v613 = vunpack.c.l.b16 %v310
      %v614 = vunpack.c.l.b16 %v311
      %v615 = vunpack.c.l.b16 %v312
      %v616 = vunpack.c.l.b16 %v313
      %v617 = vunpack.c.l.b16 %v314
      %v618 = vunpack.c.l.b16 %v315
      %v619 = vunpack.c.l.b16 %v316
      %v620 = vunpack.c.l.b16 %v317
      %v621 = vunpack.c.l.b16 %v318
      %v622 = vunpack.c.l.b16 %v319
      %v623 = vunpack.c.l.b16 %v320
      %v624 = vunpack.c.l.b16 %v321
      %v625 = vunpack.c.l.b16 %v322
      %v626 = vunpack.c.l.b16 %v323
      %v627 = vunpack.c.l.b16 %v324
      %v628 = vunpack.c.l.b16 %v325
      %v629 = vunpack.c.l.b16 %v326
      %v630 = vunpack.c.l.b16 %v327
      %v631 = vunpack.c.l.b16 %v328
      %v632 = vunpack.c.l.b16 %v329
      %v633 = vunpack.c.l.b16 %v330
      %v634 = vunpack.c.l.b16 %v331
      %v635 = vunpack.c.l.b16 %v332
      %v636 = vunpack.c.l.b16 %v333
      %v637 = vunpack.c.l.b16 %v334
      %v638 = vunpack.c.l.b16 %v335
      %v639 = vunpack.c.l.b16 %v336
      %v640 = vunpack.c.l.b16 %v337
      %v641 = vunpack.c.l.b16 %v338
      %v642 = vunpack.c.l.b16 %v339
      %v643 = vunpack.c.l.b16 %v340
      %v644 = vunpack.c.l.b16 %v341
      %v645 = vunpack.c.l.b16 %v342
      %v646 = vunpack.c.l.b16 %v343
      %v647 = vunpack.c.l.b16 %v344
      %v648 = vunpack.c.l.b16 %v345
      %v649 = vunpack.c.l.b16 %v346
      %v650 = vunpack.c.l.b16 %v347
      %v651 = vunpack.c.l.b16 %v348
      %v652 = vunpack.c.l.b16 %v349
      %v653 = vunpack.c.l.b16 %v350
      %v654 = vunpack.c.l.b16 %v351
      %v655 = vunpack.c.l.b16 %v352
      %v656 = vunpack.c.l.b16 %v353
      %v657 = vunpack.c.l.b16 %v354
      %v658 = vunpack.c.l.b16 %v355
      %v659 = vunpack.c.l.b16 %v356
      %v660 = vunpack.c.l.b16 %v357
      %v661 = vpack.c.b16 %v534, %v533
      %v662 = vpack.c.b16 %v536, %v535
      %v663 = vpack.c.b16 %v538, %v537
      %v664 = vpack.c.b16 %v540, %v539
      %v665 = vpack.c.b16 %v542, %v541
      %v666 = vpack.c.b16 %v544, %v543
      %v667 = vpack.c.b16 %v546, %v545
      %v668 = vpack.c.b16 %v548, %v547
      %v669 = vpack.c.b16 %v550, %v549
      %v670 = vpack.c.b16 %v552, %v551
      %v671 = vpack.c.b16 %v554, %v553
      %v672 = vpack.c.b16 %v556, %v555
      %v673 = vpack.c.b16 %v558, %v557
      %v674 = vpack.c.b16 %v560, %v559
      %v675 = vpack.c.b16 %v562, %v561
      %v676 = vpack.c.b16 %v564, %v563
      %v677 = vpack.c.b16 %v566, %v565
      %v678 = vpack.c.b16 %v568, %v567
      %v679 = vpack.c.b16 %v570, %v569
      %v680 = vpack.c.b16 %v572, %v571
      %v681 = vpack.c.b16 %v574, %v573
      %v682 = vpack.c.b16 %v576, %v575
      %v683 = vpack.c.b16 %v578, %v577
      %v684 = vpack.c.b16 %v580, %v579
      %v685 = vpack.c.b16 %v582, %v581
      %v686 = vpack.c.b16 %v584, %v583
      %v687 = vpack.c.b16 %v586, %v585
      %v688 = vpack.c.b16 %v588, %v587
      %v689 = vpack.c.b16 %v590, %v589
      %v690 = vpack.c.b16 %v592, %v591
      %v691 = vpack.c.b16 %v594, %v593
      %v692 = vpack.c.b16 %v596, %v595
      %v693 = vpack.c.b16 %v598, %v597
      %v694 = vpack.c.b16 %v600, %v599
      %v695 = vpack.c.b16 %v602, %v601
      %v696 = vpack.c.b16 %v604, %v603
      %v697 = vpack.c.b16 %v606, %v605
      %v698 = vpack.c.b16 %v608, %v607
      %v699 = vpack.c.b16 %v610, %v609
      %v700 = vpack.c.b16 %v612, %v611
      %v701 = vpack.c.b16 %v614, %v613
      %v702 = vpack.c.b16 %v616, %v615
      %v703 = vpack.c.b16 %v618, %v617
      %v704 = vpack.c.b16 %v620, %v619
      %v705 = vpack.c.b16 %v622, %v621
      %v706 = vpack.c.b16 %v624, %v623
      %v707 = vpack.c.b16 %v626, %v625
      %v708 = vpack.c.b16 %v628, %v627
      %v709 = vpack.c.b16 %v630, %v629
      %v710 = vpack.c.b16 %v632, %v631
      %v711 = vpack.c.b16 %v634, %v633
      %v712 = vpack.c.b16 %v636, %v635
      %v713 = vpack.c.b16 %v638, %v637
      %v714 = vpack.c.b16 %v640, %v639
      %v715 = vpack.c.b16 %v642, %v641
      %v716 = vpack.c.b16 %v644, %v643
      %v717 = vpack.c.b16 %v646, %v645
      %v718 = vpack.c.b16 %v648, %v647
      %v719 = vpack.c.b16 %v650, %v649
      %v720 = vpack.c.b16 %v652, %v651
      %v721 = vpack.c.b16 %v654, %v653
      %v722 = vpack.c.b16 %v656, %v655
      %v723 = vpack.c.b16 %v658, %v657
      %v724 = vpack.c.b16 %v660, %v659
      %789 = vmatprep.subr.bf16.mxu0 0
      %790 = vmatpush1.bf16.msra.mxu0 %v668
      %791 = vmatprep.subr.bf16.mxu0 0
      %792 = vmatpush1.bf16.msra.mxu0 %v667
      %793 = vmatprep.subr.bf16.mxu0 0
      %794 = vmatpush1.bf16.msra.mxu0 %v666
      %795 = vmatprep.subr.bf16.mxu0 0
      %796 = vmatpush1.bf16.msra.mxu0 %v665
      %797 = vmatprep.subr.bf16.mxu0 0
      %798 = vmatpush1.bf16.msra.mxu0 %v664
      %799 = vmatprep.subr.bf16.mxu0 0
      %800 = vmatpush1.bf16.msra.mxu0 %v663
      %801 = vmatprep.subr.bf16.mxu0 0
      %802 = vmatpush1.bf16.msra.mxu0 %v662
      %803 = vmatprep.subr.bf16.mxu0 0
      %804 = vmatpush1.bf16.msra.mxu0 %v661
      %805 = vmatprep.subr.bf16.mxu0 0
      %806 = vmatpush2.bf16.msra.mxu0 %v676
      %807 = vmatprep.subr.bf16.mxu0 0
      %808 = vmatpush2.bf16.msra.mxu0 %v675
      %809 = vmatprep.subr.bf16.mxu0 0
      %810 = vmatpush2.bf16.msra.mxu0 %v674
      %811 = vmatprep.subr.bf16.mxu0 0
      %812 = vmatpush2.bf16.msra.mxu0 %v673
      %813 = vmatprep.subr.bf16.mxu0 0
      %814 = vmatpush2.bf16.msra.mxu0 %v672
      %815 = vmatprep.subr.bf16.mxu0 0
      %816 = vmatpush2.bf16.msra.mxu0 %v671
      %817 = vmatprep.subr.bf16.mxu0 0
      %818 = vmatpush2.bf16.msra.mxu0 %v670
      %819 = vmatprep.subr.bf16.mxu0 0
      %820 = vmatpush2.bf16.msra.mxu0 %v669
      %821 = vmatprep.mubr.bf16.mxu0 %v390
      %822 = vmatmul.mubr.bf16.gmra.mxu0 %v389
      %v823 = vpop.f32.mrf.mxu0
      %v824 = vadd.f32 %v363, %v823
      %v825 = vpop.f32.mrf.mxu0
      %v826 = vpop.f32.mrf.mxu0
      %v827 = vadd.f32 %v363, %v826
      %v828 = vpop.f32.mrf.mxu0
      %829 = vdwg.mxu0
      %830 = vmatprep.subr.bf16.mxu0 0
      %831 = vmatpush1.bf16.msra.mxu0 %v684
      %832 = vmatprep.subr.bf16.mxu0 0
      %833 = vmatpush1.bf16.msra.mxu0 %v683
      %834 = vmatprep.subr.bf16.mxu0 0
      %835 = vmatpush1.bf16.msra.mxu0 %v682
      %836 = vmatprep.subr.bf16.mxu0 0
      %837 = vmatpush1.bf16.msra.mxu0 %v681
      %838 = vmatprep.subr.bf16.mxu0 0
      %839 = vmatpush1.bf16.msra.mxu0 %v680
      %840 = vmatprep.subr.bf16.mxu0 0
      %841 = vmatpush1.bf16.msra.mxu0 %v679
      %842 = vmatprep.subr.bf16.mxu0 0
      %843 = vmatpush1.bf16.msra.mxu0 %v678
      %844 = vmatprep.subr.bf16.mxu0 0
      %845 = vmatpush1.bf16.msra.mxu0 %v677
      %846 = vmatprep.subr.bf16.mxu0 0
      %847 = vmatpush2.bf16.msra.mxu0 %v692
      %848 = vmatprep.subr.bf16.mxu0 0
      %849 = vmatpush2.bf16.msra.mxu0 %v691
      %850 = vmatprep.subr.bf16.mxu0 0
      %851 = vmatpush2.bf16.msra.mxu0 %v690
      %852 = vmatprep.subr.bf16.mxu0 0
      %853 = vmatpush2.bf16.msra.mxu0 %v689
      %854 = vmatprep.subr.bf16.mxu0 0
      %855 = vmatpush2.bf16.msra.mxu0 %v688
      %856 = vmatprep.subr.bf16.mxu0 0
      %857 = vmatpush2.bf16.msra.mxu0 %v687
      %858 = vmatprep.subr.bf16.mxu0 0
      %859 = vmatpush2.bf16.msra.mxu0 %v686
      %860 = vmatprep.subr.bf16.mxu0 0
      %861 = vmatpush2.bf16.msra.mxu0 %v685
      %862 = vmatprep.mubr.bf16.mxu0 %v392
      %863 = vmatmul.mubr.bf16.gmra.mxu0 %v391
      %v864 = vpop.f32.mrf.mxu0
      %v865 = vadd.f32 %v824, %v864
      %v866 = vpop.f32.mrf.mxu0
      %v867 = vpop.f32.mrf.mxu0
      %v868 = vadd.f32 %v827, %v867
      %v869 = vpop.f32.mrf.mxu0
      %870 = vdwg.mxu0
      %871 = vmatprep.subr.bf16.mxu0 0
      %872 = vmatpush1.bf16.msra.mxu0 %v700
      %873 = vmatprep.subr.bf16.mxu0 0
      %874 = vmatpush1.bf16.msra.mxu0 %v699
      %875 = vmatprep.subr.bf16.mxu0 0
      %876 = vmatpush1.bf16.msra.mxu0 %v698
      %877 = vmatprep.subr.bf16.mxu0 0
      %878 = vmatpush1.bf16.msra.mxu0 %v697
      %879 = vmatprep.subr.bf16.mxu0 0
      %880 = vmatpush1.bf16.msra.mxu0 %v696
      %881 = vmatprep.subr.bf16.mxu0 0
      %882 = vmatpush1.bf16.msra.mxu0 %v695
      %883 = vmatprep.subr.bf16.mxu0 0
      %884 = vmatpush1.bf16.msra.mxu0 %v694
      %885 = vmatprep.subr.bf16.mxu0 0
      %886 = vmatpush1.bf16.msra.mxu0 %v693
      %887 = vmatprep.subr.bf16.mxu0 0
      %888 = vmatpush2.bf16.msra.mxu0 %v708
      %889 = vmatprep.subr.bf16.mxu0 0
      %890 = vmatpush2.bf16.msra.mxu0 %v707
      %891 = vmatprep.subr.bf16.mxu0 0
      %892 = vmatpush2.bf16.msra.mxu0 %v706
      %893 = vmatprep.subr.bf16.mxu0 0
      %894 = vmatpush2.bf16.msra.mxu0 %v705
      %895 = vmatprep.subr.bf16.mxu0 0
      %896 = vmatpush2.bf16.msra.mxu0 %v704
      %897 = vmatprep.subr.bf16.mxu0 0
      %898 = vmatpush2.bf16.msra.mxu0 %v703
      %899 = vmatprep.subr.bf16.mxu0 0
      %900 = vmatpush2.bf16.msra.mxu0 %v702
      %901 = vmatprep.subr.bf16.mxu0 0
      %902 = vmatpush2.bf16.msra.mxu0 %v701
      %903 = vmatprep.mubr.bf16.mxu0 %v394
      %904 = vmatmul.mubr.bf16.gmra.mxu0 %v393
      %v905 = vpop.f32.mrf.mxu0
      %v906 = vadd.f32 %v865, %v905
      %v907 = vpop.f32.mrf.mxu0
      %v908 = vpop.f32.mrf.mxu0
      %v909 = vadd.f32 %v868, %v908
      %v910 = vpop.f32.mrf.mxu0
      %911 = vdwg.mxu0
      %912 = vmatprep.subr.bf16.mxu0 0
      %913 = vmatpush1.bf16.msra.mxu0 %v716
      %914 = vmatprep.subr.bf16.mxu0 0
      %915 = vmatpush1.bf16.msra.mxu0 %v715
      %916 = vmatprep.subr.bf16.mxu0 0
      %917 = vmatpush1.bf16.msra.mxu0 %v714
      %918 = vmatprep.subr.bf16.mxu0 0
      %919 = vmatpush1.bf16.msra.mxu0 %v713
      %920 = vmatprep.subr.bf16.mxu0 0
      %921 = vmatpush1.bf16.msra.mxu0 %v712
      %922 = vmatprep.subr.bf16.mxu0 0
      %923 = vmatpush1.bf16.msra.mxu0 %v711
      %924 = vmatprep.subr.bf16.mxu0 0
      %925 = vmatpush1.bf16.msra.mxu0 %v710
      %926 = vmatprep.subr.bf16.mxu0 0
      %927 = vmatpush1.bf16.msra.mxu0 %v709
      %928 = vmatprep.subr.bf16.mxu0 0
      %929 = vmatpush2.bf16.msra.mxu0 %v724
      %930 = vmatprep.subr.bf16.mxu0 0
      %931 = vmatpush2.bf16.msra.mxu0 %v723
      %932 = vmatprep.subr.bf16.mxu0 0
      %933 = vmatpush2.bf16.msra.mxu0 %v722
      %934 = vmatprep.subr.bf16.mxu0 0
      %935 = vmatpush2.bf16.msra.mxu0 %v721
      %936 = vmatprep.subr.bf16.mxu0 0
      %937 = vmatpush2.bf16.msra.mxu0 %v720
      %938 = vmatprep.subr.bf16.mxu0 0
      %939 = vmatpush2.bf16.msra.mxu0 %v719
      %940 = vmatprep.subr.bf16.mxu0 0
      %941 = vmatpush2.bf16.msra.mxu0 %v718
      %942 = vmatprep.subr.bf16.mxu0 0
      %943 = vmatpush2.bf16.msra.mxu0 %v717
      %944 = vmatprep.mubr.bf16.mxu0 %v396
      %945 = vmatmul.mubr.bf16.gmra.mxu0 %v395
      %v946 = vpop.f32.mrf.mxu0
      %v947 = vadd.f32 %v906, %v946
      %v948 = vpop.f32.mrf.mxu0
      %v949 = vpop.f32.mrf.mxu0
      %v950 = vadd.f32 %v909, %v949
      %v951 = vpop.f32.mrf.mxu0
      %952 = vdwg.mxu0
      %v953 = vmax.f32 %v947, 0.0
      %v954 = vmax.f32 %v950, 0.0
      %v955 = vpack.c.bf16 %v954, %v953
      %vm956 = vcmask 1040384
      %vm957 = vsmask.f32 256
      %vm958 = vmand %vm956, %vm957
      %v959 = vld [vmem:[#allocation2] sm:$0x1]
      %v960 = vsel %vm958, %v955, %v959
      %961 = vst [vmem:[#allocation2] sm:$0x1] %v960
      %v964 = vunpack.c.l.s4 1966171168
      %v965 = vunpack.c.0.s8 %v964
      %v966 = vlaneseq
      %v967 = vshrl.u32 %v966, 7
      %v968 = vsub.s32 %v965, %v967
      %v969 = vrot.slane %v955, %v968
      %v971 = vunpack.c.l.s4 1966171168
      %v972 = vunpack.c.0.s8 %v971
      %v973 = vlaneseq
      %v974 = vshrl.u32 %v973, 7
      %v975 = vsub.s32 %v972, %v974
      %v976 = vrot.slane %v969, %v975
      %v978 = vshrl.u32 %v976, 16
      %v980 = vrot.slane %v978, 7
      %v981 = vrot.slane %v980, 1
      %v983 = vld [vmem:[#allocation2 + $0x1] sm:$0x1]
      %v984 = vsel %vm958, %v981, %v983
      %985 = vst [vmem:[#allocation2 + $0x1] sm:$0x1] %v984
      %v986 = vcombine.high %v969, %v969
      %v988 = vunpack.c.l.s4 1966171168
      %v989 = vunpack.c.0.s8 %v988
      %v990 = vlaneseq
      %v991 = vshrl.u32 %v990, 7
      %v992 = vsub.s32 %v989, %v991
      %v993 = vrot.slane %v986, %v992
      %v995 = vld [vmem:[#allocation2 + $0x2] sm:$0x1]
      %v996 = vsel %vm958, %v993, %v995
      %997 = vst [vmem:[#allocation2 + $0x2] sm:$0x1] %v996
      %v999 = vshrl.u32 %v993, 16
      %v1001 = vrot.slane %v999, 7
      %v1002 = vrot.slane %v1001, 1
      %v1004 = vld [vmem:[#allocation2 + $0x3] sm:$0x1]
      %v1005 = vsel %vm958, %v1002, %v1004
      %1006 = vst [vmem:[#allocation2 + $0x3] sm:$0x1] %v1005
      %v1007 = vcombine.high %v976, %v976
      %v1009 = vld [vmem:[#allocation2 + $0x4] sm:$0x1]
      %v1010 = vsel %vm958, %v1007, %v1009
      %1011 = vst [vmem:[#allocation2 + $0x4] sm:$0x1] %v1010
      %v1013 = vshrl.u32 %v1007, 16
      %v1015 = vrot.slane %v1013, 7
      %v1016 = vrot.slane %v1015, 1
      %v1018 = vld [vmem:[#allocation2 + $0x5] sm:$0x1]
      %v1019 = vsel %vm958, %v1016, %v1018
      %1020 = vst [vmem:[#allocation2 + $0x5] sm:$0x1] %v1019
      %v1021 = vcombine.high %v993, %v993
      %v1023 = vld [vmem:[#allocation2 + $0x6] sm:$0x1]
      %v1024 = vsel %vm958, %v1021, %v1023
      %1025 = vst [vmem:[#allocation2 + $0x6] sm:$0x1] %v1024
      %v1027 = vshrl.u32 %v1021, 16
      %v1029 = vrot.slane %v1027, 7
      %v1030 = vrot.slane %v1029, 1
      %v1032 = vld [vmem:[#allocation2 + $0x7] sm:$0x1]
      %v1033 = vsel %vm958, %v1030, %v1032
      %1034 = vst [vmem:[#allocation2 + $0x7] sm:$0x1] %v1033
      %v1035 = vcombine.high %v955, %v955
      %v1037 = vunpack.c.l.s4 1966171168
      %v1038 = vunpack.c.0.s8 %v1037
      %v1039 = vlaneseq
      %v1040 = vshrl.u32 %v1039, 7
      %v1041 = vsub.s32 %v1038, %v1040
      %v1042 = vrot.slane %v1035, %v1041
      %v1044 = vunpack.c.l.s4 1966171168
      %v1045 = vunpack.c.0.s8 %v1044
      %v1046 = vlaneseq
      %v1047 = vshrl.u32 %v1046, 7
      %v1048 = vsub.s32 %v1045, %v1047
      %v1049 = vrot.slane %v1042, %v1048
      %v1051 = vld [vmem:[#allocation2 + $0x8] sm:$0x1]
      %v1052 = vsel %vm958, %v1049, %v1051
      %1053 = vst [vmem:[#allocation2 + $0x8] sm:$0x1] %v1052
      %v1055 = vshrl.u32 %v1049, 16
      %v1057 = vrot.slane %v1055, 7
      %v1058 = vrot.slane %v1057, 1
      %v1060 = vld [vmem:[#allocation2 + $0x9] sm:$0x1]
      %v1061 = vsel %vm958, %v1058, %v1060
      %1062 = vst [vmem:[#allocation2 + $0x9] sm:$0x1] %v1061
      %v1063 = vcombine.high %v1042, %v1042
      %v1065 = vunpack.c.l.s4 1966171168
      %v1066 = vunpack.c.0.s8 %v1065
      %v1067 = vlaneseq
      %v1068 = vshrl.u32 %v1067, 7
      %v1069 = vsub.s32 %v1066, %v1068
      %v1070 = vrot.slane %v1063, %v1069
      %v1072 = vld [vmem:[#allocation2 + $0xa] sm:$0x1]
      %v1073 = vsel %vm958, %v1070, %v1072
      %1074 = vst [vmem:[#allocation2 + $0xa] sm:$0x1] %v1073
      %v1076 = vshrl.u32 %v1070, 16
      %v1078 = vrot.slane %v1076, 7
      %v1079 = vrot.slane %v1078, 1
      %v1081 = vld [vmem:[#allocation2 + $0xb] sm:$0x1]
      %v1082 = vsel %vm958, %v1079, %v1081
      %1083 = vst [vmem:[#allocation2 + $0xb] sm:$0x1] %v1082
      %v1084 = vcombine.high %v1049, %v1049
      %v1086 = vld [vmem:[#allocation2 + $0xc] sm:$0x1]
      %v1087 = vsel %vm958, %v1084, %v1086
      %1088 = vst [vmem:[#allocation2 + $0xc] sm:$0x1] %v1087
      %v1090 = vshrl.u32 %v1084, 16
      %v1092 = vrot.slane %v1090, 7
      %v1093 = vrot.slane %v1092, 1
      %v1095 = vld [vmem:[#allocation2 + $0xd] sm:$0x1]
      %v1096 = vsel %vm958, %v1093, %v1095
      %1097 = vst [vmem:[#allocation2 + $0xd] sm:$0x1] %v1096
      %v1098 = vcombine.high %v1070, %v1070
      %v1100 = vld [vmem:[#allocation2 + $0xe] sm:$0x1]
      %v1101 = vsel %vm958, %v1098, %v1100
      %1102 = vst [vmem:[#allocation2 + $0xe] sm:$0x1] %v1101
      %v1104 = vshrl.u32 %v1098, 16
      %v1106 = vrot.slane %v1104, 7
      %v1107 = vrot.slane %v1106, 1
      %v1109 = vld [vmem:[#allocation2 + $0xf] sm:$0x1]
      %v1110 = vsel %vm958, %v1107, %v1109
      %1111 = vst [vmem:[#allocation2 + $0xf] sm:$0x1] %v1110
      %v1112 = vld [vmem:[#allocation2] sm:$0xff]
      %v1113 = vld [vmem:[#allocation2 + $0x8] sm:$0xff]
      %v1114 = vld [vmem:[%s3] sm:$0xf]
      %v1115 = vld [vmem:[%s3 + $0x4] sm:$0xf]
      %v1116 = vld [vmem:[%s3 + $0x8] sm:$0xf]
      %v1117 = vld [vmem:[%s3 + $0xc] sm:$0xf]
      %v1118 = vld [vmem:[%s3 + $0x10] sm:$0xf]
      %v1119 = vld [vmem:[%s3 + $0x14] sm:$0xf]
      %v1120 = vld [vmem:[%s3 + $0x18] sm:$0xf]
      %v1121 = vld [vmem:[%s3 + $0x1c] sm:$0xf]
      %v1122 = vld [vmem:[%s3 + $0x20] sm:$0xf]
      %v1123 = vld [vmem:[%s3 + $0x24] sm:$0xf]
      %v1124 = vld [vmem:[%s3 + $0x28] sm:$0xf]
      %v1125 = vld [vmem:[%s3 + $0x2c] sm:$0xf]
      %v1126 = vld [vmem:[%s3 + $0x30] sm:$0xf]
      %v1127 = vld [vmem:[%s3 + $0x34] sm:$0xf]
      %v1128 = vld [vmem:[%s3 + $0x38] sm:$0xf]
      %v1129 = vld [vmem:[%s3 + $0x3c] sm:$0xf]
      %v1130 = vld [vmem:[%s3 + $0x40] sm:$0xf]
      %v1131 = vld [vmem:[%s3 + $0x44] sm:$0xf]
      %v1132 = vld [vmem:[%s3 + $0x48] sm:$0xf]
      %v1133 = vld [vmem:[%s3 + $0x4c] sm:$0xf]
      %v1134 = vld [vmem:[%s3 + $0x50] sm:$0xf]
      %v1135 = vld [vmem:[%s3 + $0x54] sm:$0xf]
      %v1136 = vld [vmem:[%s3 + $0x58] sm:$0xf]
      %v1137 = vld [vmem:[%s3 + $0x5c] sm:$0xf]
      %v1138 = vld [vmem:[%s3 + $0x60] sm:$0xf]
      %v1139 = vld [vmem:[%s3 + $0x64] sm:$0xf]
      %v1140 = vld [vmem:[%s3 + $0x68] sm:$0xf]
      %v1141 = vld [vmem:[%s3 + $0x6c] sm:$0xf]
      %v1142 = vld [vmem:[%s3 + $0x70] sm:$0xf]
      %v1143 = vld [vmem:[%s3 + $0x74] sm:$0xf]
      %v1144 = vld [vmem:[%s3 + $0x78] sm:$0xf]
      %v1145 = vld [vmem:[%s3 + $0x7c] sm:$0xf]
      %v1146 = vld [vmem:[%s3 + $0x80] sm:$0xf]
      %v1147 = vld [vmem:[%s3 + $0x84] sm:$0xf]
      %v1148 = vld [vmem:[%s3 + $0x88] sm:$0xf]
      %v1149 = vld [vmem:[%s3 + $0x8c] sm:$0xf]
      %v1150 = vld [vmem:[%s3 + $0x90] sm:$0xf]
      %v1151 = vld [vmem:[%s3 + $0x94] sm:$0xf]
      %v1152 = vld [vmem:[%s3 + $0x98] sm:$0xf]
      %v1153 = vld [vmem:[%s3 + $0x9c] sm:$0xf]
      %v1154 = vld [vmem:[%s3 + $0xa0] sm:$0xf]
      %v1155 = vld [vmem:[%s3 + $0xa4] sm:$0xf]
      %v1156 = vld [vmem:[%s3 + $0xa8] sm:$0xf]
      %v1157 = vld [vmem:[%s3 + $0xac] sm:$0xf]
      %v1158 = vld [vmem:[%s3 + $0xb0] sm:$0xf]
      %v1159 = vld [vmem:[%s3 + $0xb4] sm:$0xf]
      %v1160 = vld [vmem:[%s3 + $0xb8] sm:$0xf]
      %v1161 = vld [vmem:[%s3 + $0xbc] sm:$0xf]
      %v1162 = vld [vmem:[%s3 + $0xc0] sm:$0xf]
      %v1163 = vld [vmem:[%s3 + $0xc4] sm:$0xf]
      %v1164 = vld [vmem:[%s3 + $0xc8] sm:$0xf]
      %v1165 = vld [vmem:[%s3 + $0xcc] sm:$0xf]
      %v1166 = vld [vmem:[%s3 + $0xd0] sm:$0xf]
      %v1167 = vld [vmem:[%s3 + $0xd4] sm:$0xf]
      %v1168 = vld [vmem:[%s3 + $0xd8] sm:$0xf]
      %v1169 = vld [vmem:[%s3 + $0xdc] sm:$0xf]
      %v1170 = vld [vmem:[%s3 + $0xe0] sm:$0xf]
      %v1171 = vld [vmem:[%s3 + $0xe4] sm:$0xf]
      %v1172 = vld [vmem:[%s3 + $0xe8] sm:$0xf]
      %v1173 = vld [vmem:[%s3 + $0xec] sm:$0xf]
      %v1174 = vld [vmem:[%s3 + $0xf0] sm:$0xf]
      %v1175 = vld [vmem:[%s3 + $0xf4] sm:$0xf]
      %v1176 = vld [vmem:[%s3 + $0xf8] sm:$0xf]
      %v1177 = vld [vmem:[%s3 + $0xfc] sm:$0xf]
      %v1178 = vld [vmem:[%s3 + $0x100] sm:$0xf]
      %v1179 = vld [vmem:[%s3 + $0x104] sm:$0xf]
      %v1180 = vld [vmem:[%s3 + $0x108] sm:$0xf]
      %v1181 = vld [vmem:[%s3 + $0x10c] sm:$0xf]
      %v1182 = vld [vmem:[%s3 + $0x110] sm:$0xf]
      %v1183 = vld [vmem:[%s3 + $0x114] sm:$0xf]
      %v1184 = vld [vmem:[%s3 + $0x118] sm:$0xf]
      %v1185 = vld [vmem:[%s3 + $0x11c] sm:$0xf]
      %v1186 = vld [vmem:[%s3 + $0x120] sm:$0xf]
      %v1187 = vld [vmem:[%s3 + $0x124] sm:$0xf]
      %v1188 = vld [vmem:[%s3 + $0x128] sm:$0xf]
      %v1189 = vld [vmem:[%s3 + $0x12c] sm:$0xf]
      %v1190 = vld [vmem:[%s3 + $0x130] sm:$0xf]
      %v1191 = vld [vmem:[%s3 + $0x134] sm:$0xf]
      %v1192 = vld [vmem:[%s3 + $0x138] sm:$0xf]
      %v1193 = vld [vmem:[%s3 + $0x13c] sm:$0xf]
      %v1194 = vld [vmem:[%s3 + $0x140] sm:$0xf]
      %v1195 = vld [vmem:[%s3 + $0x144] sm:$0xf]
      %v1196 = vld [vmem:[%s3 + $0x148] sm:$0xf]
      %v1197 = vld [vmem:[%s3 + $0x14c] sm:$0xf]
      %v1198 = vld [vmem:[%s3 + $0x150] sm:$0xf]
      %v1199 = vld [vmem:[%s3 + $0x154] sm:$0xf]
      %v1200 = vld [vmem:[%s3 + $0x158] sm:$0xf]
      %v1201 = vld [vmem:[%s3 + $0x15c] sm:$0xf]
      %v1202 = vld [vmem:[%s3 + $0x160] sm:$0xf]
      %v1203 = vld [vmem:[%s3 + $0x164] sm:$0xf]
      %v1204 = vld [vmem:[%s3 + $0x168] sm:$0xf]
      %v1205 = vld [vmem:[%s3 + $0x16c] sm:$0xf]
      %v1206 = vld [vmem:[%s3 + $0x170] sm:$0xf]
      %v1207 = vld [vmem:[%s3 + $0x174] sm:$0xf]
      %v1208 = vld [vmem:[%s3 + $0x178] sm:$0xf]
      %v1209 = vld [vmem:[%s3 + $0x17c] sm:$0xf]
      %v1210 = vld [vmem:[%s3 + $0x180] sm:$0xf]
      %v1211 = vld [vmem:[%s3 + $0x184] sm:$0xf]
      %v1212 = vld [vmem:[%s3 + $0x188] sm:$0xf]
      %v1213 = vld [vmem:[%s3 + $0x18c] sm:$0xf]
      %v1214 = vld [vmem:[%s3 + $0x190] sm:$0xf]
      %v1215 = vld [vmem:[%s3 + $0x194] sm:$0xf]
      %v1216 = vld [vmem:[%s3 + $0x198] sm:$0xf]
      %v1217 = vld [vmem:[%s3 + $0x19c] sm:$0xf]
      %v1218 = vld [vmem:[%s3 + $0x1a0] sm:$0xf]
      %v1219 = vld [vmem:[%s3 + $0x1a4] sm:$0xf]
      %v1220 = vld [vmem:[%s3 + $0x1a8] sm:$0xf]
      %v1221 = vld [vmem:[%s3 + $0x1ac] sm:$0xf]
      %v1222 = vld [vmem:[%s3 + $0x1b0] sm:$0xf]
      %v1223 = vld [vmem:[%s3 + $0x1b4] sm:$0xf]
      %v1224 = vld [vmem:[%s3 + $0x1b8] sm:$0xf]
      %v1225 = vld [vmem:[%s3 + $0x1bc] sm:$0xf]
      %v1226 = vld [vmem:[%s3 + $0x1c0] sm:$0xf]
      %v1227 = vld [vmem:[%s3 + $0x1c4] sm:$0xf]
      %v1228 = vld [vmem:[%s3 + $0x1c8] sm:$0xf]
      %v1229 = vld [vmem:[%s3 + $0x1cc] sm:$0xf]
      %v1230 = vld [vmem:[%s3 + $0x1d0] sm:$0xf]
      %v1231 = vld [vmem:[%s3 + $0x1d4] sm:$0xf]
      %v1232 = vld [vmem:[%s3 + $0x1d8] sm:$0xf]
      %v1233 = vld [vmem:[%s3 + $0x1dc] sm:$0xf]
      %v1234 = vld [vmem:[%s3 + $0x1e0] sm:$0xf]
      %v1235 = vld [vmem:[%s3 + $0x1e4] sm:$0xf]
      %v1236 = vld [vmem:[%s3 + $0x1e8] sm:$0xf]
      %v1237 = vld [vmem:[%s3 + $0x1ec] sm:$0xf]
      %v1238 = vld [vmem:[%s3 + $0x1f0] sm:$0xf]
      %v1239 = vld [vmem:[%s3 + $0x1f4] sm:$0xf]
      %v1240 = vld [vmem:[%s3 + $0x1f8] sm:$0xf]
      %v1241 = vld [vmem:[%s3 + $0x1fc] sm:$0xf]
      %v1242 = vld [vmem:[%s3 + $0x200] sm:$0xf]
      %v1243 = vld [vmem:[%s3 + $0x204] sm:$0xf]
      %v1244 = vld [vmem:[%s3 + $0x208] sm:$0xf]
      %v1245 = vld [vmem:[%s3 + $0x20c] sm:$0xf]
      %v1246 = vld [vmem:[%s3 + $0x210] sm:$0xf]
      %v1247 = vld [vmem:[%s3 + $0x214] sm:$0xf]
      %v1248 = vld [vmem:[%s3 + $0x218] sm:$0xf]
      %v1249 = vld [vmem:[%s3 + $0x21c] sm:$0xf]
      %v1250 = vld [vmem:[%s3 + $0x220] sm:$0xf]
      %v1251 = vld [vmem:[%s3 + $0x224] sm:$0xf]
      %v1252 = vld [vmem:[%s3 + $0x228] sm:$0xf]
      %v1253 = vld [vmem:[%s3 + $0x22c] sm:$0xf]
      %v1254 = vld [vmem:[%s3 + $0x230] sm:$0xf]
      %v1255 = vld [vmem:[%s3 + $0x234] sm:$0xf]
      %v1256 = vld [vmem:[%s3 + $0x238] sm:$0xf]
      %v1257 = vld [vmem:[%s3 + $0x23c] sm:$0xf]
      %v1258 = vld [vmem:[%s3 + $0x240] sm:$0xf]
      %v1259 = vld [vmem:[%s3 + $0x244] sm:$0xf]
      %v1260 = vld [vmem:[%s3 + $0x248] sm:$0xf]
      %v1261 = vld [vmem:[%s3 + $0x24c] sm:$0xf]
      %v1262 = vld [vmem:[%s3 + $0x250] sm:$0xf]
      %v1263 = vld [vmem:[%s3 + $0x254] sm:$0xf]
      %v1264 = vld [vmem:[%s3 + $0x258] sm:$0xf]
      %v1265 = vld [vmem:[%s3 + $0x25c] sm:$0xf]
      %v1266 = vld [vmem:[%s3 + $0x260] sm:$0xf]
      %v1267 = vld [vmem:[%s3 + $0x264] sm:$0xf]
      %v1268 = vld [vmem:[%s3 + $0x268] sm:$0xf]
      %v1269 = vld [vmem:[%s3 + $0x26c] sm:$0xf]
      %v1270 = vld [vmem:[%s3 + $0x270] sm:$0xf]
      %v1271 = vld [vmem:[%s3 + $0x274] sm:$0xf]
      %v1272 = vld [vmem:[%s3 + $0x278] sm:$0xf]
      %v1273 = vld [vmem:[%s3 + $0x27c] sm:$0xf]
      %v1274 = vld [vmem:[%s3 + $0x280] sm:$0xf]
      %v1275 = vld [vmem:[%s3 + $0x284] sm:$0xf]
      %v1276 = vld [vmem:[%s3 + $0x288] sm:$0xf]
      %v1277 = vld [vmem:[%s3 + $0x28c] sm:$0xf]
      %v1278 = vld [vmem:[%s3 + $0x290] sm:$0xf]
      %v1279 = vld [vmem:[%s3 + $0x294] sm:$0xf]
      %v1280 = vld [vmem:[%s3 + $0x298] sm:$0xf]
      %v1281 = vld [vmem:[%s3 + $0x29c] sm:$0xf]
      %v1282 = vld [vmem:[%s3 + $0x2a0] sm:$0xf]
      %v1283 = vld [vmem:[%s3 + $0x2a4] sm:$0xf]
      %v1284 = vld [vmem:[%s3 + $0x2a8] sm:$0xf]
      %v1285 = vld [vmem:[%s3 + $0x2ac] sm:$0xf]
      %v1286 = vld [vmem:[%s3 + $0x2b0] sm:$0xf]
      %v1287 = vld [vmem:[%s3 + $0x2b4] sm:$0xf]
      %v1288 = vld [vmem:[%s3 + $0x2b8] sm:$0xf]
      %v1289 = vld [vmem:[%s3 + $0x2bc] sm:$0xf]
      %v1290 = vld [vmem:[%s3 + $0x2c0] sm:$0xf]
      %v1291 = vld [vmem:[%s3 + $0x2c4] sm:$0xf]
      %v1292 = vld [vmem:[%s3 + $0x2c8] sm:$0xf]
      %v1293 = vld [vmem:[%s3 + $0x2cc] sm:$0xf]
      %v1294 = vld [vmem:[%s3 + $0x2d0] sm:$0xf]
      %v1295 = vld [vmem:[%s3 + $0x2d4] sm:$0xf]
      %v1296 = vld [vmem:[%s3 + $0x2d8] sm:$0xf]
      %v1297 = vld [vmem:[%s3 + $0x2dc] sm:$0xf]
      %v1298 = vld [vmem:[%s3 + $0x2e0] sm:$0xf]
      %v1299 = vld [vmem:[%s3 + $0x2e4] sm:$0xf]
      %v1300 = vld [vmem:[%s3 + $0x2e8] sm:$0xf]
      %v1301 = vld [vmem:[%s3 + $0x2ec] sm:$0xf]
      %v1302 = vld [vmem:[%s3 + $0x2f0] sm:$0xf]
      %v1303 = vld [vmem:[%s3 + $0x2f4] sm:$0xf]
      %v1304 = vld [vmem:[%s3 + $0x2f8] sm:$0xf]
      %v1305 = vld [vmem:[%s3 + $0x2fc] sm:$0xf]
      %v1306 = vld [vmem:[%s3 + $0x300] sm:$0xf]
      %v1307 = vld [vmem:[%s3 + $0x304] sm:$0xf]
      %v1308 = vld [vmem:[%s3 + $0x308] sm:$0xf]
      %v1309 = vld [vmem:[%s3 + $0x30c] sm:$0xf]
      %v1310 = vld [vmem:[%s3 + $0x310] sm:$0xf]
      %v1311 = vld [vmem:[%s3 + $0x314] sm:$0xf]
      %v1312 = vld [vmem:[%s3 + $0x318] sm:$0xf]
      %v1313 = vld [vmem:[%s3 + $0x31c] sm:$0xf]
      %v1314 = vld [vmem:[%s3 + $0x320] sm:$0xf]
      %v1315 = vld [vmem:[%s3 + $0x324] sm:$0xf]
      %v1316 = vld [vmem:[%s3 + $0x328] sm:$0xf]
      %v1317 = vld [vmem:[%s3 + $0x32c] sm:$0xf]
      %v1318 = vld [vmem:[%s3 + $0x330] sm:$0xf]
      %v1319 = vld [vmem:[%s3 + $0x334] sm:$0xf]
      %v1320 = vld [vmem:[%s3 + $0x338] sm:$0xf]
      %v1321 = vld [vmem:[%s3 + $0x33c] sm:$0xf]
      %v1322 = vld [vmem:[%s3 + $0x340] sm:$0xf]
      %v1323 = vld [vmem:[%s3 + $0x344] sm:$0xf]
      %v1324 = vld [vmem:[%s3 + $0x348] sm:$0xf]
      %v1325 = vld [vmem:[%s3 + $0x34c] sm:$0xf]
      %v1326 = vld [vmem:[%s3 + $0x350] sm:$0xf]
      %v1327 = vld [vmem:[%s3 + $0x354] sm:$0xf]
      %v1328 = vld [vmem:[%s3 + $0x358] sm:$0xf]
      %v1329 = vld [vmem:[%s3 + $0x35c] sm:$0xf]
      %v1330 = vld [vmem:[%s3 + $0x360] sm:$0xf]
      %v1331 = vld [vmem:[%s3 + $0x364] sm:$0xf]
      %v1332 = vld [vmem:[%s3 + $0x368] sm:$0xf]
      %v1333 = vld [vmem:[%s3 + $0x36c] sm:$0xf]
      %v1334 = vld [vmem:[%s3 + $0x370] sm:$0xf]
      %v1335 = vld [vmem:[%s3 + $0x374] sm:$0xf]
      %v1336 = vld [vmem:[%s3 + $0x378] sm:$0xf]
      %v1337 = vld [vmem:[%s3 + $0x37c] sm:$0xf]
      %v1338 = vld [vmem:[%s3 + $0x380] sm:$0xf]
      %v1339 = vld [vmem:[%s3 + $0x384] sm:$0xf]
      %v1340 = vld [vmem:[%s3 + $0x388] sm:$0xf]
      %v1341 = vld [vmem:[%s3 + $0x38c] sm:$0xf]
      %v1342 = vld [vmem:[%s3 + $0x390] sm:$0xf]
      %v1343 = vld [vmem:[%s3 + $0x394] sm:$0xf]
      %v1344 = vld [vmem:[%s3 + $0x398] sm:$0xf]
      %v1345 = vld [vmem:[%s3 + $0x39c] sm:$0xf]
      %v1346 = vld [vmem:[%s3 + $0x3a0] sm:$0xf]
      %v1347 = vld [vmem:[%s3 + $0x3a4] sm:$0xf]
      %v1348 = vld [vmem:[%s3 + $0x3a8] sm:$0xf]
      %v1349 = vld [vmem:[%s3 + $0x3ac] sm:$0xf]
      %v1350 = vld [vmem:[%s3 + $0x3b0] sm:$0xf]
      %v1351 = vld [vmem:[%s3 + $0x3b4] sm:$0xf]
      %v1352 = vld [vmem:[%s3 + $0x3b8] sm:$0xf]
      %v1353 = vld [vmem:[%s3 + $0x3bc] sm:$0xf]
      %v1354 = vld [vmem:[%s3 + $0x3c0] sm:$0xf]
      %v1355 = vld [vmem:[%s3 + $0x3c4] sm:$0xf]
      %v1356 = vld [vmem:[%s3 + $0x3c8] sm:$0xf]
      %v1357 = vld [vmem:[%s3 + $0x3cc] sm:$0xf]
      %v1358 = vld [vmem:[%s3 + $0x3d0] sm:$0xf]
      %v1359 = vld [vmem:[%s3 + $0x3d4] sm:$0xf]
      %v1360 = vld [vmem:[%s3 + $0x3d8] sm:$0xf]
      %v1361 = vld [vmem:[%s3 + $0x3dc] sm:$0xf]
      %v1362 = vld [vmem:[%s3 + $0x3e0] sm:$0xf]
      %v1363 = vld [vmem:[%s3 + $0x3e4] sm:$0xf]
      %v1364 = vld [vmem:[%s3 + $0x3e8] sm:$0xf]
      %v1365 = vld [vmem:[%s3 + $0x3ec] sm:$0xf]
      %v1366 = vld [vmem:[%s3 + $0x3f0] sm:$0xf]
      %v1367 = vld [vmem:[%s3 + $0x3f4] sm:$0xf]
      %v1368 = vld [vmem:[%s3 + $0x3f8] sm:$0xf]
      %v1369 = vld [vmem:[%s3 + $0x3fc] sm:$0xf]
      %v1370 = vld [vmem:[%s4] sm:$0x1]
      %v1373 = vcombine.high %v1112, %v1112
      %v1375 = vunpack.c.l.s4 1966171168
      %v1376 = vunpack.c.0.s8 %v1375
      %v1377 = vlaneseq
      %v1378 = vshrl.u32 %v1377, 7
      %v1379 = vsub.s32 %v1376, %v1378
      %v1380 = vrot.slane %v1112, %v1379
      %v1382 = vunpack.c.l.s4 1966171168
      %v1383 = vunpack.c.0.s8 %v1382
      %v1384 = vlaneseq
      %v1385 = vshrl.u32 %v1384, 7
      %v1386 = vsub.s32 %v1383, %v1385
      %v1387 = vrot.slane %v1373, %v1386
      %v1388 = vcombine.high %v1380, %v1380
      %v1389 = vcombine.high %v1387, %v1387
      %v1391 = vunpack.c.l.s4 1966171168
      %v1392 = vunpack.c.0.s8 %v1391
      %v1393 = vlaneseq
      %v1394 = vshrl.u32 %v1393, 7
      %v1395 = vsub.s32 %v1392, %v1394
      %v1396 = vrot.slane %v1380, %v1395
      %v1398 = vunpack.c.l.s4 1966171168
      %v1399 = vunpack.c.0.s8 %v1398
      %v1400 = vlaneseq
      %v1401 = vshrl.u32 %v1400, 7
      %v1402 = vsub.s32 %v1399, %v1401
      %v1403 = vrot.slane %v1387, %v1402
      %v1405 = vunpack.c.l.s4 1966171168
      %v1406 = vunpack.c.0.s8 %v1405
      %v1407 = vlaneseq
      %v1408 = vshrl.u32 %v1407, 7
      %v1409 = vsub.s32 %v1406, %v1408
      %v1410 = vrot.slane %v1388, %v1409
      %v1412 = vunpack.c.l.s4 1966171168
      %v1413 = vunpack.c.0.s8 %v1412
      %v1414 = vlaneseq
      %v1415 = vshrl.u32 %v1414, 7
      %v1416 = vsub.s32 %v1413, %v1415
      %v1417 = vrot.slane %v1389, %v1416
      %v1418 = vcombine.high %v1396, %v1396
      %v1419 = vcombine.high %v1403, %v1403
      %v1420 = vcombine.high %v1410, %v1410
      %v1421 = vcombine.high %v1417, %v1417
      %v1422 = vcombine.high %v1113, %v1113
      %v1424 = vunpack.c.l.s4 1966171168
      %v1425 = vunpack.c.0.s8 %v1424
      %v1426 = vlaneseq
      %v1427 = vshrl.u32 %v1426, 7
      %v1428 = vsub.s32 %v1425, %v1427
      %v1429 = vrot.slane %v1113, %v1428
      %v1431 = vunpack.c.l.s4 1966171168
      %v1432 = vunpack.c.0.s8 %v1431
      %v1433 = vlaneseq
      %v1434 = vshrl.u32 %v1433, 7
      %v1435 = vsub.s32 %v1432, %v1434
      %v1436 = vrot.slane %v1422, %v1435
      %v1437 = vcombine.high %v1429, %v1429
      %v1438 = vcombine.high %v1436, %v1436
      %v1440 = vunpack.c.l.s4 1966171168
      %v1441 = vunpack.c.0.s8 %v1440
      %v1442 = vlaneseq
      %v1443 = vshrl.u32 %v1442, 7
      %v1444 = vsub.s32 %v1441, %v1443
      %v1445 = vrot.slane %v1429, %v1444
      %v1447 = vunpack.c.l.s4 1966171168
      %v1448 = vunpack.c.0.s8 %v1447
      %v1449 = vlaneseq
      %v1450 = vshrl.u32 %v1449, 7
      %v1451 = vsub.s32 %v1448, %v1450
      %v1452 = vrot.slane %v1436, %v1451
      %v1454 = vunpack.c.l.s4 1966171168
      %v1455 = vunpack.c.0.s8 %v1454
      %v1456 = vlaneseq
      %v1457 = vshrl.u32 %v1456, 7
      %v1458 = vsub.s32 %v1455, %v1457
      %v1459 = vrot.slane %v1437, %v1458
      %v1461 = vunpack.c.l.s4 1966171168
      %v1462 = vunpack.c.0.s8 %v1461
      %v1463 = vlaneseq
      %v1464 = vshrl.u32 %v1463, 7
      %v1465 = vsub.s32 %v1462, %v1464
      %v1466 = vrot.slane %v1438, %v1465
      %v1467 = vcombine.high %v1445, %v1445
      %v1468 = vcombine.high %v1452, %v1452
      %v1469 = vcombine.high %v1459, %v1459
      %v1470 = vcombine.high %v1466, %v1466
      %v1743 = vunpack.c.l.b16 %v1114
      %v1744 = vunpack.c.l.b16 %v1115
      %v1745 = vunpack.c.l.b16 %v1116
      %v1746 = vunpack.c.l.b16 %v1117
      %v1747 = vunpack.c.l.b16 %v1118
      %v1748 = vunpack.c.l.b16 %v1119
      %v1749 = vunpack.c.l.b16 %v1120
      %v1750 = vunpack.c.l.b16 %v1121
      %v1751 = vunpack.c.l.b16 %v1122
      %v1752 = vunpack.c.l.b16 %v1123
      %v1753 = vunpack.c.l.b16 %v1124
      %v1754 = vunpack.c.l.b16 %v1125
      %v1755 = vunpack.c.l.b16 %v1126
      %v1756 = vunpack.c.l.b16 %v1127
      %v1757 = vunpack.c.l.b16 %v1128
      %v1758 = vunpack.c.l.b16 %v1129
      %v1759 = vunpack.c.l.b16 %v1130
      %v1760 = vunpack.c.l.b16 %v1131
      %v1761 = vunpack.c.l.b16 %v1132
      %v1762 = vunpack.c.l.b16 %v1133
      %v1763 = vunpack.c.l.b16 %v1134
      %v1764 = vunpack.c.l.b16 %v1135
      %v1765 = vunpack.c.l.b16 %v1136
      %v1766 = vunpack.c.l.b16 %v1137
      %v1767 = vunpack.c.l.b16 %v1138
      %v1768 = vunpack.c.l.b16 %v1139
      %v1769 = vunpack.c.l.b16 %v1140
      %v1770 = vunpack.c.l.b16 %v1141
      %v1771 = vunpack.c.l.b16 %v1142
      %v1772 = vunpack.c.l.b16 %v1143
      %v1773 = vunpack.c.l.b16 %v1144
      %v1774 = vunpack.c.l.b16 %v1145
      %v1775 = vunpack.c.l.b16 %v1146
      %v1776 = vunpack.c.l.b16 %v1147
      %v1777 = vunpack.c.l.b16 %v1148
      %v1778 = vunpack.c.l.b16 %v1149
      %v1779 = vunpack.c.l.b16 %v1150
      %v1780 = vunpack.c.l.b16 %v1151
      %v1781 = vunpack.c.l.b16 %v1152
      %v1782 = vunpack.c.l.b16 %v1153
      %v1783 = vunpack.c.l.b16 %v1154
      %v1784 = vunpack.c.l.b16 %v1155
      %v1785 = vunpack.c.l.b16 %v1156
      %v1786 = vunpack.c.l.b16 %v1157
      %v1787 = vunpack.c.l.b16 %v1158
      %v1788 = vunpack.c.l.b16 %v1159
      %v1789 = vunpack.c.l.b16 %v1160
      %v1790 = vunpack.c.l.b16 %v1161
      %v1791 = vunpack.c.l.b16 %v1162
      %v1792 = vunpack.c.l.b16 %v1163
      %v1793 = vunpack.c.l.b16 %v1164
      %v1794 = vunpack.c.l.b16 %v1165
      %v1795 = vunpack.c.l.b16 %v1166
      %v1796 = vunpack.c.l.b16 %v1167
      %v1797 = vunpack.c.l.b16 %v1168
      %v1798 = vunpack.c.l.b16 %v1169
      %v1799 = vunpack.c.l.b16 %v1170
      %v1800 = vunpack.c.l.b16 %v1171
      %v1801 = vunpack.c.l.b16 %v1172
      %v1802 = vunpack.c.l.b16 %v1173
      %v1803 = vunpack.c.l.b16 %v1174
      %v1804 = vunpack.c.l.b16 %v1175
      %v1805 = vunpack.c.l.b16 %v1176
      %v1806 = vunpack.c.l.b16 %v1177
      %v1807 = vunpack.c.l.b16 %v1178
      %v1808 = vunpack.c.l.b16 %v1179
      %v1809 = vunpack.c.l.b16 %v1180
      %v1810 = vunpack.c.l.b16 %v1181
      %v1811 = vunpack.c.l.b16 %v1182
      %v1812 = vunpack.c.l.b16 %v1183
      %v1813 = vunpack.c.l.b16 %v1184
      %v1814 = vunpack.c.l.b16 %v1185
      %v1815 = vunpack.c.l.b16 %v1186
      %v1816 = vunpack.c.l.b16 %v1187
      %v1817 = vunpack.c.l.b16 %v1188
      %v1818 = vunpack.c.l.b16 %v1189
      %v1819 = vunpack.c.l.b16 %v1190
      %v1820 = vunpack.c.l.b16 %v1191
      %v1821 = vunpack.c.l.b16 %v1192
      %v1822 = vunpack.c.l.b16 %v1193
      %v1823 = vunpack.c.l.b16 %v1194
      %v1824 = vunpack.c.l.b16 %v1195
      %v1825 = vunpack.c.l.b16 %v1196
      %v1826 = vunpack.c.l.b16 %v1197
      %v1827 = vunpack.c.l.b16 %v1198
      %v1828 = vunpack.c.l.b16 %v1199
      %v1829 = vunpack.c.l.b16 %v1200
      %v1830 = vunpack.c.l.b16 %v1201
      %v1831 = vunpack.c.l.b16 %v1202
      %v1832 = vunpack.c.l.b16 %v1203
      %v1833 = vunpack.c.l.b16 %v1204
      %v1834 = vunpack.c.l.b16 %v1205
      %v1835 = vunpack.c.l.b16 %v1206
      %v1836 = vunpack.c.l.b16 %v1207
      %v1837 = vunpack.c.l.b16 %v1208
      %v1838 = vunpack.c.l.b16 %v1209
      %v1839 = vunpack.c.l.b16 %v1210
      %v1840 = vunpack.c.l.b16 %v1211
      %v1841 = vunpack.c.l.b16 %v1212
      %v1842 = vunpack.c.l.b16 %v1213
      %v1843 = vunpack.c.l.b16 %v1214
      %v1844 = vunpack.c.l.b16 %v1215
      %v1845 = vunpack.c.l.b16 %v1216
      %v1846 = vunpack.c.l.b16 %v1217
      %v1847 = vunpack.c.l.b16 %v1218
      %v1848 = vunpack.c.l.b16 %v1219
      %v1849 = vunpack.c.l.b16 %v1220
      %v1850 = vunpack.c.l.b16 %v1221
      %v1851 = vunpack.c.l.b16 %v1222
      %v1852 = vunpack.c.l.b16 %v1223
      %v1853 = vunpack.c.l.b16 %v1224
      %v1854 = vunpack.c.l.b16 %v1225
      %v1855 = vunpack.c.l.b16 %v1226
      %v1856 = vunpack.c.l.b16 %v1227
      %v1857 = vunpack.c.l.b16 %v1228
      %v1858 = vunpack.c.l.b16 %v1229
      %v1859 = vunpack.c.l.b16 %v1230
      %v1860 = vunpack.c.l.b16 %v1231
      %v1861 = vunpack.c.l.b16 %v1232
      %v1862 = vunpack.c.l.b16 %v1233
      %v1863 = vunpack.c.l.b16 %v1234
      %v1864 = vunpack.c.l.b16 %v1235
      %v1865 = vunpack.c.l.b16 %v1236
      %v1866 = vunpack.c.l.b16 %v1237
      %v1867 = vunpack.c.l.b16 %v1238
      %v1868 = vunpack.c.l.b16 %v1239
      %v1869 = vunpack.c.l.b16 %v1240
      %v1870 = vunpack.c.l.b16 %v1241
      %v1871 = vunpack.c.l.b16 %v1242
      %v1872 = vunpack.c.l.b16 %v1243
      %v1873 = vunpack.c.l.b16 %v1244
      %v1874 = vunpack.c.l.b16 %v1245
      %v1875 = vunpack.c.l.b16 %v1246
      %v1876 = vunpack.c.l.b16 %v1247
      %v1877 = vunpack.c.l.b16 %v1248
      %v1878 = vunpack.c.l.b16 %v1249
      %v1879 = vunpack.c.l.b16 %v1250
      %v1880 = vunpack.c.l.b16 %v1251
      %v1881 = vunpack.c.l.b16 %v1252
      %v1882 = vunpack.c.l.b16 %v1253
      %v1883 = vunpack.c.l.b16 %v1254
      %v1884 = vunpack.c.l.b16 %v1255
      %v1885 = vunpack.c.l.b16 %v1256
      %v1886 = vunpack.c.l.b16 %v1257
      %v1887 = vunpack.c.l.b16 %v1258
      %v1888 = vunpack.c.l.b16 %v1259
      %v1889 = vunpack.c.l.b16 %v1260
      %v1890 = vunpack.c.l.b16 %v1261
      %v1891 = vunpack.c.l.b16 %v1262
      %v1892 = vunpack.c.l.b16 %v1263
      %v1893 = vunpack.c.l.b16 %v1264
      %v1894 = vunpack.c.l.b16 %v1265
      %v1895 = vunpack.c.l.b16 %v1266
      %v1896 = vunpack.c.l.b16 %v1267
      %v1897 = vunpack.c.l.b16 %v1268
      %v1898 = vunpack.c.l.b16 %v1269
      %v1899 = vunpack.c.l.b16 %v1270
      %v1900 = vunpack.c.l.b16 %v1271
      %v1901 = vunpack.c.l.b16 %v1272
      %v1902 = vunpack.c.l.b16 %v1273
      %v1903 = vunpack.c.l.b16 %v1274
      %v1904 = vunpack.c.l.b16 %v1275
      %v1905 = vunpack.c.l.b16 %v1276
      %v1906 = vunpack.c.l.b16 %v1277
      %v1907 = vunpack.c.l.b16 %v1278
      %v1908 = vunpack.c.l.b16 %v1279
      %v1909 = vunpack.c.l.b16 %v1280
      %v1910 = vunpack.c.l.b16 %v1281
      %v1911 = vunpack.c.l.b16 %v1282
      %v1912 = vunpack.c.l.b16 %v1283
      %v1913 = vunpack.c.l.b16 %v1284
      %v1914 = vunpack.c.l.b16 %v1285
      %v1915 = vunpack.c.l.b16 %v1286
      %v1916 = vunpack.c.l.b16 %v1287
      %v1917 = vunpack.c.l.b16 %v1288
      %v1918 = vunpack.c.l.b16 %v1289
      %v1919 = vunpack.c.l.b16 %v1290
      %v1920 = vunpack.c.l.b16 %v1291
      %v1921 = vunpack.c.l.b16 %v1292
      %v1922 = vunpack.c.l.b16 %v1293
      %v1923 = vunpack.c.l.b16 %v1294
      %v1924 = vunpack.c.l.b16 %v1295
      %v1925 = vunpack.c.l.b16 %v1296
      %v1926 = vunpack.c.l.b16 %v1297
      %v1927 = vunpack.c.l.b16 %v1298
      %v1928 = vunpack.c.l.b16 %v1299
      %v1929 = vunpack.c.l.b16 %v1300
      %v1930 = vunpack.c.l.b16 %v1301
      %v1931 = vunpack.c.l.b16 %v1302
      %v1932 = vunpack.c.l.b16 %v1303
      %v1933 = vunpack.c.l.b16 %v1304
      %v1934 = vunpack.c.l.b16 %v1305
      %v1935 = vunpack.c.l.b16 %v1306
      %v1936 = vunpack.c.l.b16 %v1307
      %v1937 = vunpack.c.l.b16 %v1308
      %v1938 = vunpack.c.l.b16 %v1309
      %v1939 = vunpack.c.l.b16 %v1310
      %v1940 = vunpack.c.l.b16 %v1311
      %v1941 = vunpack.c.l.b16 %v1312
      %v1942 = vunpack.c.l.b16 %v1313
      %v1943 = vunpack.c.l.b16 %v1314
      %v1944 = vunpack.c.l.b16 %v1315
      %v1945 = vunpack.c.l.b16 %v1316
      %v1946 = vunpack.c.l.b16 %v1317
      %v1947 = vunpack.c.l.b16 %v1318
      %v1948 = vunpack.c.l.b16 %v1319
      %v1949 = vunpack.c.l.b16 %v1320
      %v1950 = vunpack.c.l.b16 %v1321
      %v1951 = vunpack.c.l.b16 %v1322
      %v1952 = vunpack.c.l.b16 %v1323
      %v1953 = vunpack.c.l.b16 %v1324
      %v1954 = vunpack.c.l.b16 %v1325
      %v1955 = vunpack.c.l.b16 %v1326
      %v1956 = vunpack.c.l.b16 %v1327
      %v1957 = vunpack.c.l.b16 %v1328
      %v1958 = vunpack.c.l.b16 %v1329
      %v1959 = vunpack.c.l.b16 %v1330
      %v1960 = vunpack.c.l.b16 %v1331
      %v1961 = vunpack.c.l.b16 %v1332
      %v1962 = vunpack.c.l.b16 %v1333
      %v1963 = vunpack.c.l.b16 %v1334
      %v1964 = vunpack.c.l.b16 %v1335
      %v1965 = vunpack.c.l.b16 %v1336
      %v1966 = vunpack.c.l.b16 %v1337
      %v1967 = vunpack.c.l.b16 %v1338
      %v1968 = vunpack.c.l.b16 %v1339
      %v1969 = vunpack.c.l.b16 %v1340
      %v1970 = vunpack.c.l.b16 %v1341
      %v1971 = vunpack.c.l.b16 %v1342
      %v1972 = vunpack.c.l.b16 %v1343
      %v1973 = vunpack.c.l.b16 %v1344
      %v1974 = vunpack.c.l.b16 %v1345
      %v1975 = vunpack.c.l.b16 %v1346
      %v1976 = vunpack.c.l.b16 %v1347
      %v1977 = vunpack.c.l.b16 %v1348
      %v1978 = vunpack.c.l.b16 %v1349
      %v1979 = vunpack.c.l.b16 %v1350
      %v1980 = vunpack.c.l.b16 %v1351
      %v1981 = vunpack.c.l.b16 %v1352
      %v1982 = vunpack.c.l.b16 %v1353
      %v1983 = vunpack.c.l.b16 %v1354
      %v1984 = vunpack.c.l.b16 %v1355
      %v1985 = vunpack.c.l.b16 %v1356
      %v1986 = vunpack.c.l.b16 %v1357
      %v1987 = vunpack.c.l.b16 %v1358
      %v1988 = vunpack.c.l.b16 %v1359
      %v1989 = vunpack.c.l.b16 %v1360
      %v1990 = vunpack.c.l.b16 %v1361
      %v1991 = vunpack.c.l.b16 %v1362
      %v1992 = vunpack.c.l.b16 %v1363
      %v1993 = vunpack.c.l.b16 %v1364
      %v1994 = vunpack.c.l.b16 %v1365
      %v1995 = vunpack.c.l.b16 %v1366
      %v1996 = vunpack.c.l.b16 %v1367
      %v1997 = vunpack.c.l.b16 %v1368
      %v1998 = vunpack.c.l.b16 %v1369
      %v1999 = vpack.c.b16 %v1744, %v1743
      %v2000 = vpack.c.b16 %v1746, %v1745
      %v2001 = vpack.c.b16 %v1748, %v1747
      %v2002 = vpack.c.b16 %v1750, %v1749
      %v2003 = vpack.c.b16 %v1752, %v1751
      %v2004 = vpack.c.b16 %v1754, %v1753
      %v2005 = vpack.c.b16 %v1756, %v1755
      %v2006 = vpack.c.b16 %v1758, %v1757
      %v2007 = vpack.c.b16 %v1760, %v1759
      %v2008 = vpack.c.b16 %v1762, %v1761
      %v2009 = vpack.c.b16 %v1764, %v1763
      %v2010 = vpack.c.b16 %v1766, %v1765
      %v2011 = vpack.c.b16 %v1768, %v1767
      %v2012 = vpack.c.b16 %v1770, %v1769
      %v2013 = vpack.c.b16 %v1772, %v1771
      %v2014 = vpack.c.b16 %v1774, %v1773
      %v2015 = vpack.c.b16 %v1776, %v1775
      %v2016 = vpack.c.b16 %v1778, %v1777
      %v2017 = vpack.c.b16 %v1780, %v1779
      %v2018 = vpack.c.b16 %v1782, %v1781
      %v2019 = vpack.c.b16 %v1784, %v1783
      %v2020 = vpack.c.b16 %v1786, %v1785
      %v2021 = vpack.c.b16 %v1788, %v1787
      %v2022 = vpack.c.b16 %v1790, %v1789
      %v2023 = vpack.c.b16 %v1792, %v1791
      %v2024 = vpack.c.b16 %v1794, %v1793
      %v2025 = vpack.c.b16 %v1796, %v1795
      %v2026 = vpack.c.b16 %v1798, %v1797
      %v2027 = vpack.c.b16 %v1800, %v1799
      %v2028 = vpack.c.b16 %v1802, %v1801
      %v2029 = vpack.c.b16 %v1804, %v1803
      %v2030 = vpack.c.b16 %v1806, %v1805
      %v2031 = vpack.c.b16 %v1808, %v1807
      %v2032 = vpack.c.b16 %v1810, %v1809
      %v2033 = vpack.c.b16 %v1812, %v1811
      %v2034 = vpack.c.b16 %v1814, %v1813
      %v2035 = vpack.c.b16 %v1816, %v1815
      %v2036 = vpack.c.b16 %v1818, %v1817
      %v2037 = vpack.c.b16 %v1820, %v1819
      %v2038 = vpack.c.b16 %v1822, %v1821
      %v2039 = vpack.c.b16 %v1824, %v1823
      %v2040 = vpack.c.b16 %v1826, %v1825
      %v2041 = vpack.c.b16 %v1828, %v1827
      %v2042 = vpack.c.b16 %v1830, %v1829
      %v2043 = vpack.c.b16 %v1832, %v1831
      %v2044 = vpack.c.b16 %v1834, %v1833
      %v2045 = vpack.c.b16 %v1836, %v1835
      %v2046 = vpack.c.b16 %v1838, %v1837
      %v2047 = vpack.c.b16 %v1840, %v1839
      %v2048 = vpack.c.b16 %v1842, %v1841
      %v2049 = vpack.c.b16 %v1844, %v1843
      %v2050 = vpack.c.b16 %v1846, %v1845
      %v2051 = vpack.c.b16 %v1848, %v1847
      %v2052 = vpack.c.b16 %v1850, %v1849
      %v2053 = vpack.c.b16 %v1852, %v1851
      %v2054 = vpack.c.b16 %v1854, %v1853
      %v2055 = vpack.c.b16 %v1856, %v1855
      %v2056 = vpack.c.b16 %v1858, %v1857
      %v2057 = vpack.c.b16 %v1860, %v1859
      %v2058 = vpack.c.b16 %v1862, %v1861
      %v2059 = vpack.c.b16 %v1864, %v1863
      %v2060 = vpack.c.b16 %v1866, %v1865
      %v2061 = vpack.c.b16 %v1868, %v1867
      %v2062 = vpack.c.b16 %v1870, %v1869
      %v2063 = vpack.c.b16 %v1872, %v1871
      %v2064 = vpack.c.b16 %v1874, %v1873
      %v2065 = vpack.c.b16 %v1876, %v1875
      %v2066 = vpack.c.b16 %v1878, %v1877
      %v2067 = vpack.c.b16 %v1880, %v1879
      %v2068 = vpack.c.b16 %v1882, %v1881
      %v2069 = vpack.c.b16 %v1884, %v1883
      %v2070 = vpack.c.b16 %v1886, %v1885
      %v2071 = vpack.c.b16 %v1888, %v1887
      %v2072 = vpack.c.b16 %v1890, %v1889
      %v2073 = vpack.c.b16 %v1892, %v1891
      %v2074 = vpack.c.b16 %v1894, %v1893
      %v2075 = vpack.c.b16 %v1896, %v1895
      %v2076 = vpack.c.b16 %v1898, %v1897
      %v2077 = vpack.c.b16 %v1900, %v1899
      %v2078 = vpack.c.b16 %v1902, %v1901
      %v2079 = vpack.c.b16 %v1904, %v1903
      %v2080 = vpack.c.b16 %v1906, %v1905
      %v2081 = vpack.c.b16 %v1908, %v1907
      %v2082 = vpack.c.b16 %v1910, %v1909
      %v2083 = vpack.c.b16 %v1912, %v1911
      %v2084 = vpack.c.b16 %v1914, %v1913
      %v2085 = vpack.c.b16 %v1916, %v1915
      %v2086 = vpack.c.b16 %v1918, %v1917
      %v2087 = vpack.c.b16 %v1920, %v1919
      %v2088 = vpack.c.b16 %v1922, %v1921
      %v2089 = vpack.c.b16 %v1924, %v1923
      %v2090 = vpack.c.b16 %v1926, %v1925
      %v2091 = vpack.c.b16 %v1928, %v1927
      %v2092 = vpack.c.b16 %v1930, %v1929
      %v2093 = vpack.c.b16 %v1932, %v1931
      %v2094 = vpack.c.b16 %v1934, %v1933
      %v2095 = vpack.c.b16 %v1936, %v1935
      %v2096 = vpack.c.b16 %v1938, %v1937
      %v2097 = vpack.c.b16 %v1940, %v1939
      %v2098 = vpack.c.b16 %v1942, %v1941
      %v2099 = vpack.c.b16 %v1944, %v1943
      %v2100 = vpack.c.b16 %v1946, %v1945
      %v2101 = vpack.c.b16 %v1948, %v1947
      %v2102 = vpack.c.b16 %v1950, %v1949
      %v2103 = vpack.c.b16 %v1952, %v1951
      %v2104 = vpack.c.b16 %v1954, %v1953
      %v2105 = vpack.c.b16 %v1956, %v1955
      %v2106 = vpack.c.b16 %v1958, %v1957
      %v2107 = vpack.c.b16 %v1960, %v1959
      %v2108 = vpack.c.b16 %v1962, %v1961
      %v2109 = vpack.c.b16 %v1964, %v1963
      %v2110 = vpack.c.b16 %v1966, %v1965
      %v2111 = vpack.c.b16 %v1968, %v1967
      %v2112 = vpack.c.b16 %v1970, %v1969
      %v2113 = vpack.c.b16 %v1972, %v1971
      %v2114 = vpack.c.b16 %v1974, %v1973
      %v2115 = vpack.c.b16 %v1976, %v1975
      %v2116 = vpack.c.b16 %v1978, %v1977
      %v2117 = vpack.c.b16 %v1980, %v1979
      %v2118 = vpack.c.b16 %v1982, %v1981
      %v2119 = vpack.c.b16 %v1984, %v1983
      %v2120 = vpack.c.b16 %v1986, %v1985
      %v2121 = vpack.c.b16 %v1988, %v1987
      %v2122 = vpack.c.b16 %v1990, %v1989
      %v2123 = vpack.c.b16 %v1992, %v1991
      %v2124 = vpack.c.b16 %v1994, %v1993
      %v2125 = vpack.c.b16 %v1996, %v1995
      %v2126 = vpack.c.b16 %v1998, %v1997
      %2255 = vmatprep.subr.bf16.mxu0 0
      %2256 = vmatpush1.bf16.msra.mxu0 %v2006
      %2257 = vmatprep.subr.bf16.mxu0 0
      %2258 = vmatpush1.bf16.msra.mxu0 %v2005
      %2259 = vmatprep.subr.bf16.mxu0 0
      %2260 = vmatpush1.bf16.msra.mxu0 %v2004
      %2261 = vmatprep.subr.bf16.mxu0 0
      %2262 = vmatpush1.bf16.msra.mxu0 %v2003
      %2263 = vmatprep.subr.bf16.mxu0 0
      %2264 = vmatpush1.bf16.msra.mxu0 %v2002
      %2265 = vmatprep.subr.bf16.mxu0 0
      %2266 = vmatpush1.bf16.msra.mxu0 %v2001
      %2267 = vmatprep.subr.bf16.mxu0 0
      %2268 = vmatpush1.bf16.msra.mxu0 %v2000
      %2269 = vmatprep.subr.bf16.mxu0 0
      %2270 = vmatpush1.bf16.msra.mxu0 %v1999
      %2271 = vmatprep.subr.bf16.mxu0 0
      %2272 = vmatpush2.bf16.msra.mxu0 %v2014
      %2273 = vmatprep.subr.bf16.mxu0 0
      %2274 = vmatpush2.bf16.msra.mxu0 %v2013
      %2275 = vmatprep.subr.bf16.mxu0 0
      %2276 = vmatpush2.bf16.msra.mxu0 %v2012
      %2277 = vmatprep.subr.bf16.mxu0 0
      %2278 = vmatpush2.bf16.msra.mxu0 %v2011
      %2279 = vmatprep.subr.bf16.mxu0 0
      %2280 = vmatpush2.bf16.msra.mxu0 %v2010
      %2281 = vmatprep.subr.bf16.mxu0 0
      %2282 = vmatpush2.bf16.msra.mxu0 %v2009
      %2283 = vmatprep.subr.bf16.mxu0 0
      %2284 = vmatpush2.bf16.msra.mxu0 %v2008
      %2285 = vmatprep.subr.bf16.mxu0 0
      %2286 = vmatpush2.bf16.msra.mxu0 %v2007
      %2287 = vmatprep.mubr.bf16.mxu0 %v1410
      %2288 = vmatmul.mubr.bf16.gmra.mxu0 %v1396
      %v2289 = vpop.f32.mrf.mxu0
      %v2290 = vadd.f32 %v1370, %v2289
      %v2291 = vpop.f32.mrf.mxu0
      %v2292 = vpop.f32.mrf.mxu0
      %v2293 = vpop.f32.mrf.mxu0
      %2294 = vdwg.mxu0
      %2295 = vmatprep.subr.bf16.mxu0 0
      %2296 = vmatpush1.bf16.msra.mxu0 %v2022
      %2297 = vmatprep.subr.bf16.mxu0 0
      %2298 = vmatpush1.bf16.msra.mxu0 %v2021
      %2299 = vmatprep.subr.bf16.mxu0 0
      %2300 = vmatpush1.bf16.msra.mxu0 %v2020
      %2301 = vmatprep.subr.bf16.mxu0 0
      %2302 = vmatpush1.bf16.msra.mxu0 %v2019
      %2303 = vmatprep.subr.bf16.mxu0 0
      %2304 = vmatpush1.bf16.msra.mxu0 %v2018
      %2305 = vmatprep.subr.bf16.mxu0 0
      %2306 = vmatpush1.bf16.msra.mxu0 %v2017
      %2307 = vmatprep.subr.bf16.mxu0 0
      %2308 = vmatpush1.bf16.msra.mxu0 %v2016
      %2309 = vmatprep.subr.bf16.mxu0 0
      %2310 = vmatpush1.bf16.msra.mxu0 %v2015
      %2311 = vmatprep.subr.bf16.mxu0 0
      %2312 = vmatpush2.bf16.msra.mxu0 %v2030
      %2313 = vmatprep.subr.bf16.mxu0 0
      %2314 = vmatpush2.bf16.msra.mxu0 %v2029
      %2315 = vmatprep.subr.bf16.mxu0 0
      %2316 = vmatpush2.bf16.msra.mxu0 %v2028
      %2317 = vmatprep.subr.bf16.mxu0 0
      %2318 = vmatpush2.bf16.msra.mxu0 %v2027
      %2319 = vmatprep.subr.bf16.mxu0 0
      %2320 = vmatpush2.bf16.msra.mxu0 %v2026
      %2321 = vmatprep.subr.bf16.mxu0 0
      %2322 = vmatpush2.bf16.msra.mxu0 %v2025
      %2323 = vmatprep.subr.bf16.mxu0 0
      %2324 = vmatpush2.bf16.msra.mxu0 %v2024
      %2325 = vmatprep.subr.bf16.mxu0 0
      %2326 = vmatpush2.bf16.msra.mxu0 %v2023
      %2327 = vmatprep.mubr.bf16.mxu0 %v1420
      %2328 = vmatmul.mubr.bf16.gmra.mxu0 %v1418
      %v2329 = vpop.f32.mrf.mxu0
      %v2330 = vadd.f32 %v2290, %v2329
      %v2331 = vpop.f32.mrf.mxu0
      %v2332 = vpop.f32.mrf.mxu0
      %v2333 = vpop.f32.mrf.mxu0
      %2334 = vdwg.mxu0
      %2335 = vmatprep.subr.bf16.mxu0 0
      %2336 = vmatpush1.bf16.msra.mxu0 %v2038
      %2337 = vmatprep.subr.bf16.mxu0 0
      %2338 = vmatpush1.bf16.msra.mxu0 %v2037
      %2339 = vmatprep.subr.bf16.mxu0 0
      %2340 = vmatpush1.bf16.msra.mxu0 %v2036
      %2341 = vmatprep.subr.bf16.mxu0 0
      %2342 = vmatpush1.bf16.msra.mxu0 %v2035
      %2343 = vmatprep.subr.bf16.mxu0 0
      %2344 = vmatpush1.bf16.msra.mxu0 %v2034
      %2345 = vmatprep.subr.bf16.mxu0 0
      %2346 = vmatpush1.bf16.msra.mxu0 %v2033
      %2347 = vmatprep.subr.bf16.mxu0 0
      %2348 = vmatpush1.bf16.msra.mxu0 %v2032
      %2349 = vmatprep.subr.bf16.mxu0 0
      %2350 = vmatpush1.bf16.msra.mxu0 %v2031
      %2351 = vmatprep.subr.bf16.mxu0 0
      %2352 = vmatpush2.bf16.msra.mxu0 %v2046
      %2353 = vmatprep.subr.bf16.mxu0 0
      %2354 = vmatpush2.bf16.msra.mxu0 %v2045
      %2355 = vmatprep.subr.bf16.mxu0 0
      %2356 = vmatpush2.bf16.msra.mxu0 %v2044
      %2357 = vmatprep.subr.bf16.mxu0 0
      %2358 = vmatpush2.bf16.msra.mxu0 %v2043
      %2359 = vmatprep.subr.bf16.mxu0 0
      %2360 = vmatpush2.bf16.msra.mxu0 %v2042
      %2361 = vmatprep.subr.bf16.mxu0 0
      %2362 = vmatpush2.bf16.msra.mxu0 %v2041
      %2363 = vmatprep.subr.bf16.mxu0 0
      %2364 = vmatpush2.bf16.msra.mxu0 %v2040
      %2365 = vmatprep.subr.bf16.mxu0 0
      %2366 = vmatpush2.bf16.msra.mxu0 %v2039
      %2367 = vmatprep.mubr.bf16.mxu0 %v1417
      %2368 = vmatmul.mubr.bf16.gmra.mxu0 %v1403
      %v2369 = vpop.f32.mrf.mxu0
      %v2370 = vadd.f32 %v2330, %v2369
      %v2371 = vpop.f32.mrf.mxu0
      %v2372 = vpop.f32.mrf.mxu0
      %v2373 = vpop.f32.mrf.mxu0
      %2374 = vdwg.mxu0
      %2375 = vmatprep.subr.bf16.mxu0 0
      %2376 = vmatpush1.bf16.msra.mxu0 %v2054
      %2377 = vmatprep.subr.bf16.mxu0 0
      %2378 = vmatpush1.bf16.msra.mxu0 %v2053
      %2379 = vmatprep.subr.bf16.mxu0 0
      %2380 = vmatpush1.bf16.msra.mxu0 %v2052
      %2381 = vmatprep.subr.bf16.mxu0 0
      %2382 = vmatpush1.bf16.msra.mxu0 %v2051
      %2383 = vmatprep.subr.bf16.mxu0 0
      %2384 = vmatpush1.bf16.msra.mxu0 %v2050
      %2385 = vmatprep.subr.bf16.mxu0 0
      %2386 = vmatpush1.bf16.msra.mxu0 %v2049
      %2387 = vmatprep.subr.bf16.mxu0 0
      %2388 = vmatpush1.bf16.msra.mxu0 %v2048
      %2389 = vmatprep.subr.bf16.mxu0 0
      %2390 = vmatpush1.bf16.msra.mxu0 %v2047
      %2391 = vmatprep.subr.bf16.mxu0 0
      %2392 = vmatpush2.bf16.msra.mxu0 %v2062
      %2393 = vmatprep.subr.bf16.mxu0 0
      %2394 = vmatpush2.bf16.msra.mxu0 %v2061
      %2395 = vmatprep.subr.bf16.mxu0 0
      %2396 = vmatpush2.bf16.msra.mxu0 %v2060
      %2397 = vmatprep.subr.bf16.mxu0 0
      %2398 = vmatpush2.bf16.msra.mxu0 %v2059
      %2399 = vmatprep.subr.bf16.mxu0 0
      %2400 = vmatpush2.bf16.msra.mxu0 %v2058
      %2401 = vmatprep.subr.bf16.mxu0 0
      %2402 = vmatpush2.bf16.msra.mxu0 %v2057
      %2403 = vmatprep.subr.bf16.mxu0 0
      %2404 = vmatpush2.bf16.msra.mxu0 %v2056
      %2405 = vmatprep.subr.bf16.mxu0 0
      %2406 = vmatpush2.bf16.msra.mxu0 %v2055
      %2407 = vmatprep.mubr.bf16.mxu0 %v1421
      %2408 = vmatmul.mubr.bf16.gmra.mxu0 %v1419
      %v2409 = vpop.f32.mrf.mxu0
      %v2410 = vadd.f32 %v2370, %v2409
      %v2411 = vpop.f32.mrf.mxu0
      %v2412 = vpop.f32.mrf.mxu0
      %v2413 = vpop.f32.mrf.mxu0
      %2414 = vdwg.mxu0
      %2415 = vmatprep.subr.bf16.mxu0 0
      %2416 = vmatpush1.bf16.msra.mxu0 %v2070
      %2417 = vmatprep.subr.bf16.mxu0 0
      %2418 = vmatpush1.bf16.msra.mxu0 %v2069
      %2419 = vmatprep.subr.bf16.mxu0 0
      %2420 = vmatpush1.bf16.msra.mxu0 %v2068
      %2421 = vmatprep.subr.bf16.mxu0 0
      %2422 = vmatpush1.bf16.msra.mxu0 %v2067
      %2423 = vmatprep.subr.bf16.mxu0 0
      %2424 = vmatpush1.bf16.msra.mxu0 %v2066
      %2425 = vmatprep.subr.bf16.mxu0 0
      %2426 = vmatpush1.bf16.msra.mxu0 %v2065
      %2427 = vmatprep.subr.bf16.mxu0 0
      %2428 = vmatpush1.bf16.msra.mxu0 %v2064
      %2429 = vmatprep.subr.bf16.mxu0 0
      %2430 = vmatpush1.bf16.msra.mxu0 %v2063
      %2431 = vmatprep.subr.bf16.mxu0 0
      %2432 = vmatpush2.bf16.msra.mxu0 %v2078
      %2433 = vmatprep.subr.bf16.mxu0 0
      %2434 = vmatpush2.bf16.msra.mxu0 %v2077
      %2435 = vmatprep.subr.bf16.mxu0 0
      %2436 = vmatpush2.bf16.msra.mxu0 %v2076
      %2437 = vmatprep.subr.bf16.mxu0 0
      %2438 = vmatpush2.bf16.msra.mxu0 %v2075
      %2439 = vmatprep.subr.bf16.mxu0 0
      %2440 = vmatpush2.bf16.msra.mxu0 %v2074
      %2441 = vmatprep.subr.bf16.mxu0 0
      %2442 = vmatpush2.bf16.msra.mxu0 %v2073
      %2443 = vmatprep.subr.bf16.mxu0 0
      %2444 = vmatpush2.bf16.msra.mxu0 %v2072
      %2445 = vmatprep.subr.bf16.mxu0 0
      %2446 = vmatpush2.bf16.msra.mxu0 %v2071
      %2447 = vmatprep.mubr.bf16.mxu0 %v1459
      %2448 = vmatmul.mubr.bf16.gmra.mxu0 %v1445
      %v2449 = vpop.f32.mrf.mxu0
      %v2450 = vadd.f32 %v2410, %v2449
      %v2451 = vpop.f32.mrf.mxu0
      %v2452 = vpop.f32.mrf.mxu0
      %v2453 = vpop.f32.mrf.mxu0
      %2454 = vdwg.mxu0
      %2455 = vmatprep.subr.bf16.mxu0 0
      %2456 = vmatpush1.bf16.msra.mxu0 %v2086
      %2457 = vmatprep.subr.bf16.mxu0 0
      %2458 = vmatpush1.bf16.msra.mxu0 %v2085
      %2459 = vmatprep.subr.bf16.mxu0 0
      %2460 = vmatpush1.bf16.msra.mxu0 %v2084
      %2461 = vmatprep.subr.bf16.mxu0 0
      %2462 = vmatpush1.bf16.msra.mxu0 %v2083
      %2463 = vmatprep.subr.bf16.mxu0 0
      %2464 = vmatpush1.bf16.msra.mxu0 %v2082
      %2465 = vmatprep.subr.bf16.mxu0 0
      %2466 = vmatpush1.bf16.msra.mxu0 %v2081
      %2467 = vmatprep.subr.bf16.mxu0 0
      %2468 = vmatpush1.bf16.msra.mxu0 %v2080
      %2469 = vmatprep.subr.bf16.mxu0 0
      %2470 = vmatpush1.bf16.msra.mxu0 %v2079
      %2471 = vmatprep.subr.bf16.mxu0 0
      %2472 = vmatpush2.bf16.msra.mxu0 %v2094
      %2473 = vmatprep.subr.bf16.mxu0 0
      %2474 = vmatpush2.bf16.msra.mxu0 %v2093
      %2475 = vmatprep.subr.bf16.mxu0 0
      %2476 = vmatpush2.bf16.msra.mxu0 %v2092
      %2477 = vmatprep.subr.bf16.mxu0 0
      %2478 = vmatpush2.bf16.msra.mxu0 %v2091
      %2479 = vmatprep.subr.bf16.mxu0 0
      %2480 = vmatpush2.bf16.msra.mxu0 %v2090
      %2481 = vmatprep.subr.bf16.mxu0 0
      %2482 = vmatpush2.bf16.msra.mxu0 %v2089
      %2483 = vmatprep.subr.bf16.mxu0 0
      %2484 = vmatpush2.bf16.msra.mxu0 %v2088
      %2485 = vmatprep.subr.bf16.mxu0 0
      %2486 = vmatpush2.bf16.msra.mxu0 %v2087
      %2487 = vmatprep.mubr.bf16.mxu0 %v1469
      %2488 = vmatmul.mubr.bf16.gmra.mxu0 %v1467
      %v2489 = vpop.f32.mrf.mxu0
      %v2490 = vadd.f32 %v2450, %v2489
      %v2491 = vpop.f32.mrf.mxu0
      %v2492 = vpop.f32.mrf.mxu0
      %v2493 = vpop.f32.mrf.mxu0
      %2494 = vdwg.mxu0
      %2495 = vmatprep.subr.bf16.mxu0 0
      %2496 = vmatpush1.bf16.msra.mxu0 %v2102
      %2497 = vmatprep.subr.bf16.mxu0 0
      %2498 = vmatpush1.bf16.msra.mxu0 %v2101
      %2499 = vmatprep.subr.bf16.mxu0 0
      %2500 = vmatpush1.bf16.msra.mxu0 %v2100
      %2501 = vmatprep.subr.bf16.mxu0 0
      %2502 = vmatpush1.bf16.msra.mxu0 %v2099
      %2503 = vmatprep.subr.bf16.mxu0 0
      %2504 = vmatpush1.bf16.msra.mxu0 %v2098
      %2505 = vmatprep.subr.bf16.mxu0 0
      %2506 = vmatpush1.bf16.msra.mxu0 %v2097
      %2507 = vmatprep.subr.bf16.mxu0 0
      %2508 = vmatpush1.bf16.msra.mxu0 %v2096
      %2509 = vmatprep.subr.bf16.mxu0 0
      %2510 = vmatpush1.bf16.msra.mxu0 %v2095
      %2511 = vmatprep.subr.bf16.mxu0 0
      %2512 = vmatpush2.bf16.msra.mxu0 %v2110
      %2513 = vmatprep.subr.bf16.mxu0 0
      %2514 = vmatpush2.bf16.msra.mxu0 %v2109
      %2515 = vmatprep.subr.bf16.mxu0 0
      %2516 = vmatpush2.bf16.msra.mxu0 %v2108
      %2517 = vmatprep.subr.bf16.mxu0 0
      %2518 = vmatpush2.bf16.msra.mxu0 %v2107
      %2519 = vmatprep.subr.bf16.mxu0 0
      %2520 = vmatpush2.bf16.msra.mxu0 %v2106
      %2521 = vmatprep.subr.bf16.mxu0 0
      %2522 = vmatpush2.bf16.msra.mxu0 %v2105
      %2523 = vmatprep.subr.bf16.mxu0 0
      %2524 = vmatpush2.bf16.msra.mxu0 %v2104
      %2525 = vmatprep.subr.bf16.mxu0 0
      %2526 = vmatpush2.bf16.msra.mxu0 %v2103
      %2527 = vmatprep.mubr.bf16.mxu0 %v1466
      %2528 = vmatmul.mubr.bf16.gmra.mxu0 %v1452
      %v2529 = vpop.f32.mrf.mxu0
      %v2530 = vadd.f32 %v2490, %v2529
      %v2531 = vpop.f32.mrf.mxu0
      %v2532 = vpop.f32.mrf.mxu0
      %v2533 = vpop.f32.mrf.mxu0
      %2534 = vdwg.mxu0
      %2535 = vmatprep.subr.bf16.mxu0 0
      %2536 = vmatpush1.bf16.msra.mxu0 %v2118
      %2537 = vmatprep.subr.bf16.mxu0 0
      %2538 = vmatpush1.bf16.msra.mxu0 %v2117
      %2539 = vmatprep.subr.bf16.mxu0 0
      %2540 = vmatpush1.bf16.msra.mxu0 %v2116
      %2541 = vmatprep.subr.bf16.mxu0 0
      %2542 = vmatpush1.bf16.msra.mxu0 %v2115
      %2543 = vmatprep.subr.bf16.mxu0 0
      %2544 = vmatpush1.bf16.msra.mxu0 %v2114
      %2545 = vmatprep.subr.bf16.mxu0 0
      %2546 = vmatpush1.bf16.msra.mxu0 %v2113
      %2547 = vmatprep.subr.bf16.mxu0 0
      %2548 = vmatpush1.bf16.msra.mxu0 %v2112
      %2549 = vmatprep.subr.bf16.mxu0 0
      %2550 = vmatpush1.bf16.msra.mxu0 %v2111
      %2551 = vmatprep.subr.bf16.mxu0 0
      %2552 = vmatpush2.bf16.msra.mxu0 %v2126
      %2553 = vmatprep.subr.bf16.mxu0 0
      %2554 = vmatpush2.bf16.msra.mxu0 %v2125
      %2555 = vmatprep.subr.bf16.mxu0 0
      %2556 = vmatpush2.bf16.msra.mxu0 %v2124
      %2557 = vmatprep.subr.bf16.mxu0 0
      %2558 = vmatpush2.bf16.msra.mxu0 %v2123
      %2559 = vmatprep.subr.bf16.mxu0 0
      %2560 = vmatpush2.bf16.msra.mxu0 %v2122
      %2561 = vmatprep.subr.bf16.mxu0 0
      %2562 = vmatpush2.bf16.msra.mxu0 %v2121
      %2563 = vmatprep.subr.bf16.mxu0 0
      %2564 = vmatpush2.bf16.msra.mxu0 %v2120
      %2565 = vmatprep.subr.bf16.mxu0 0
      %2566 = vmatpush2.bf16.msra.mxu0 %v2119
      %2567 = vmatprep.mubr.bf16.mxu0 %v1470
      %2568 = vmatmul.mubr.bf16.gmra.mxu0 %v1468
      %v2569 = vpop.f32.mrf.mxu0
      %v2570 = vadd.f32 %v2530, %v2569
      %v2571 = vpop.f32.mrf.mxu0
      %v2572 = vpop.f32.mrf.mxu0
      %v2573 = vpop.f32.mrf.mxu0
      %2574 = vdwg.mxu0
      %2575 = vst [vmem:[%s220] sm:$0x1] %v2570
      %p2576 = scmp.lt.s32.totalorder %s16, 1
      %s2577 = scalar_select %p2576, %s16, 1
      %s2578 = scalar_lea.vmem %s5, %s2577
      // Predicated region
      $region41: #{encoder_forward.3} parent=39 // pred_check
        %p2579 = pneg %p144
      $region42: #{encoder_forward.3} parent=39 // pred_check_branch
        %2581 = sbr.rel (%p2579) target = $region44
      $region43: #{encoder_forward.3} parent=39 // pred_region
        _
      $region44: #{encoder_forward.3} parent=39 // pred_fallthru
        _
    $region40: #{encoder_forward.3} parent=5 // pred_fallthru
      _
    %p2582 = scmp.le.s32.totalorder 2, %s11
    // Predicated region
    $region45: #{encoder_forward.3} parent=5 // pred_check
      %p2583 = pneg %p2582
    $region46: #{encoder_forward.3} parent=5 // pred_check_branch
      %2585 = sbr.rel (%p2583) target = $region48
    $region47: #{encoder_forward.3} parent=5 // pred_region
      %s2586 = ssub.s32 %s11, 2
      // Predicated region
      $region49: #{encoder_forward.3} parent=47 // pred_check
        %p2587 = pneg %p150
      $region50: #{encoder_forward.3} parent=47 // pred_check_branch
        %2589 = sbr.rel (%p2587) target = $region52
      $region51: #{encoder_forward.3} parent=47 // pred_region
        %p2590 = scmp.lt.s32.totalorder %s17, 1
        %s2591 = scalar_select %p2590, %s17, 1
        %s2592 = scalar_lea.vmem %s5, %s2591
      $region52: #{encoder_forward.3} parent=47 // pred_fallthru
        _
    $region48: #{encoder_forward.3} parent=5 // pred_fallthru
      _
  $region6: #{encoder_forward.3} parent=0 // loop_footer
    %s15 = sadd.s32 1, %s11
  $region7: #{encoder_forward.3} parent=0 // loop_footer_branch
    %10 = sbr.rel target = $region3
  $region8: #{encoder_forward.3} parent=0 // loop_exit
    _

</llo_original>
